<compile_context>
chip_gen: v7x
topology: tpu7x:2x2x1
jax: 0.10.0
libtpu: 0.0.40
codegen_flags: <defaults>
</compile_context>

<pallas_src>
import functools

import jax
import jax.numpy as jnp
from jax.experimental import pallas as pl
from jax.experimental.pallas import tpu as pltpu

_MM_DTYPE = jnp.bfloat16  # MXU matmul operand dtype (f32 accumulation)


# ----------------------------------------------------------------------------
# in-kernel helpers
# ----------------------------------------------------------------------------
def _roll(x, shift, axis):
    """Cyclic roll (jnp.roll semantics). Uses the XLU rotate when aligned."""
    size = x.shape[axis]
    shift = shift % size
    if shift == 0:
        return x
    aligned = ((axis == x.ndim - 1 and size % 128 == 0) or
               (axis == x.ndim - 2 and size % 8 == 0))
    if aligned:
        return pltpu.roll(x, shift, axis)
    return jnp.roll(x, shift, axis)  # fallback for unaligned shapes


def _instnorm_lrelu(y, gb_ref):
    """InstanceNorm3d(affine, eps=1e-5, biased var) + LeakyReLU(0.01).

    y      : (C, P) f32 value (per-sample, spatial flattened in lanes)
    gb_ref : (C, 2) ref, column 0 = gamma, column 1 = beta
    """
    inv_p = 1.0 / y.shape[1]
    mean = jnp.sum(y, axis=1, keepdims=True) * inv_p                 # (C, 1)
    ex2 = jnp.sum(y * y, axis=1, keepdims=True) * inv_p              # (C, 1)
    var = jnp.maximum(ex2 - mean * mean, 0.0)
    scale = gb_ref[:, 0:1] * jax.lax.rsqrt(var + 1e-5)
    shift = gb_ref[:, 1:2] - mean * scale
    y = y * scale + shift                                            # one FMA pass
    return jnp.maximum(y, 0.01 * y)                                  # LeakyReLU


def _group_partners(y1):
    """expand_rate == 2 partner gather: z0[c]=y1[2*(c//2)], z1[c]=y1[2*(c//2)+1]."""
    cm = y1.shape[0]
    even = (jax.lax.broadcasted_iota(jnp.int32, (cm, 1), 0) & 1) == 0
    z0 = jnp.where(even, y1, _roll(y1, 1, 0))
    z1 = jnp.where(even, _roll(y1, -1, 0), y1)
    return z0, z1


def _wcol(wc2_ref, t, li):
    """Per-channel weight column for tap t, in-group input li. -> (Cm, 1) f32."""
    c = 2 * t + li
    return wc2_ref[:, c:c + 1]


def _grouped3_stride1(z0, z1, wc2_ref, dims, masks):
    """Grouped 3x3x3 conv, stride 1, pad 1 (separable x->y->z roll factorization)."""
    D, H, W = dims
    mx_lo, mx_hi, my_lo, my_hi, mz_lo, mz_hi = masks
    # x-step: 2 rolled+masked copies per partner array (taps kx = 0, 1, 2).
    taps0 = (_roll(z0, 1, 1) * mx_lo, z0, _roll(z0, -1, 1) * mx_hi)
    taps1 = (_roll(z1, 1, 1) * mx_lo, z1, _roll(z1, -1, 1) * mx_hi)
    b_parts = []
    for kz in range(3):
        a_parts = []
        for ky in range(3):
            a = None
            for kx in range(3):
                t = (kz * 3 + ky) * 3 + kx
                term = (_wcol(wc2_ref, t, 0) * taps0[kx]
                        + _wcol(wc2_ref, t, 1) * taps1[kx])
                a = term if a is None else a + term
            a_parts.append(a)
        # y-step: ky=0 reads row qy-1 (roll +W), ky=2 reads qy+1 (roll -W)
        b = (_roll(a_parts[0], W, 1) * my_lo + a_parts[1]
             + _roll(a_parts[2], -W, 1) * my_hi)
        b_parts.append(b)
    # z-step
    return (_roll(b_parts[0], H * W, 1) * mz_lo + b_parts[1]
            + _roll(b_parts[2], -(H * W), 1) * mz_hi)


def _grouped3_stride2(z0, z1, wc2_ref, out_dims, maskx4, masky, maskz):
    """Grouped 3x3x3 conv, stride 2, pad 1 on phase-major (phx, phz, phy) slabs.

    z0, z1 : (Cm, 8*Po) partner-gathered activations.
    Tap kx=0 reads the phx==1 slab at mx-1, so one lane roll of the contiguous
    phx==1 half covers all x taps; y/z taps add 3 + 1 rolls.
    """
    Do, Ho, Wo = out_dims
    Po = Do * Ho * Wo

    r0 = _roll(z0[:, 4 * Po:], 1, 1) * maskx4            # rolled phx==1 half
    r1 = _roll(z1[:, 4 * Po:], 1, 1) * maskx4

    def slab(z, phz, phy, phx):
        s = 4 * phx + 2 * phz + phy
        return z[:, s * Po:(s + 1) * Po]

    def rslab(r, phz, phy):
        s = 2 * phz + phy
        return r[:, s * Po:(s + 1) * Po]

    b_parts = []
    for kz in range(3):
        phz = 0 if kz == 1 else 1
        a_parts = []
        for ky in range(3):
            phy = 0 if ky == 1 else 1
            a = None
            for kx in range(3):
                t = (kz * 3 + ky) * 3 + kx
                if kx == 0:                               # phase 1, shifted -1 (rolled)
                    u0, u1 = rslab(r0, phz, phy), rslab(r1, phz, phy)
                elif kx == 1:                             # phase 0, no shift
                    u0, u1 = slab(z0, phz, phy, 0), slab(z1, phz, phy, 0)
                else:                                     # phase 1, no shift
                    u0, u1 = slab(z0, phz, phy, 1), slab(z1, phz, phy, 1)
                term = _wcol(wc2_ref, t, 0) * u0 + _wcol(wc2_ref, t, 1) * u1
                a = term if a is None else a + term
            a_parts.append(a)
        # y-step: ky=0 reads row my-1 -> roll +Wo, mask my >= 1
        b = _roll(a_parts[0], Wo, 1) * masky + a_parts[1] + a_parts[2]
        b_parts.append(b)
    # z-step: kz=0 reads plane mz-1 -> roll +Ho*Wo, mask mz >= 1
    return _roll(b_parts[0], Ho * Wo, 1) * maskz + b_parts[1] + b_parts[2]


def _resnext_s1_body(x, prefs, dims, masks, residual):
    """One ResNeXtConv (stride 1) on a VMEM-resident (Cin, P) f32 activation."""
    w1, gb1, wc2, gb2, w3, gb3 = prefs
    y1 = jnp.dot(w1[...], x.astype(_MM_DTYPE), preferred_element_type=jnp.float32)
    y1 = _instnorm_lrelu(y1, gb1)
    z0, z1 = _group_partners(y1)
    y2 = _instnorm_lrelu(_grouped3_stride1(z0, z1, wc2, dims, masks), gb2)
    # NOTE(v6e): if the bundle dump shows VALU-bound, the per-tap combine above
    # could be moved onto the (nearly idle) MXU as small block-diagonal matmuls.
    y3 = jnp.dot(w3[...], y2.astype(_MM_DTYPE), preferred_element_type=jnp.float32)
    y3 = _instnorm_lrelu(y3, gb3)
    if residual:
        y3 = y3 + x
    return y3


# ----------------------------------------------------------------------------
# fused kernel (one batch sample per grid step)
# ----------------------------------------------------------------------------
def _fused_down_kernel(xp_ref, m_ref, *refs, out_dims, residuals):
    """AvgPool3d(2) + ResNeXtConv(stride=2) + extractor ResNeXtConv blocks.

    xp_ref : (1, Cin, 8*Po) bf16 phase-major input (phx, phz, phy | mz, my, mx)
    m_ref  : (8, 4*Po) f32 boundary masks
             rows: x_lo (Wo-periodic, covers the phx==1 half), x_hi, y_lo, y_hi,
                   z_lo, z_hi, pad, pad   (s1 masks use the first Po columns)
    refs   : 6 param refs per ResNeXt block (down block first), then o_ref.
    """
    *prefs, o_ref = refs
    Do, Ho, Wo = out_dims
    Po = Do * Ho * Wo

    maskx4 = m_ref[0:1, :]
    mx_lo = m_ref[0:1, 0:Po]
    mx_hi = m_ref[1:2, 0:Po]
    my_lo = m_ref[2:3, 0:Po]
    my_hi = m_ref[3:4, 0:Po]
    mz_lo = m_ref[4:5, 0:Po]
    mz_hi = m_ref[5:6, 0:Po]
    s1_masks = (mx_lo, mx_hi, my_lo, my_hi, mz_lo, mz_hi)

    x = xp_ref[0]                                         # (Cin, 8*Po) bf16

    # ---------------- downsample_resnext (stride 2) ----------------
    w1, gb1, wc2, gb2, w3, gb3 = prefs[0:6]
    y1 = jnp.dot(w1[...], x, preferred_element_type=jnp.float32)   # (Cm, 8*Po)
    y1 = _instnorm_lrelu(y1, gb1)                         # IN at full resolution
    z0, z1 = _group_partners(y1)
    acc = _grouped3_stride2(z0, z1, wc2, out_dims, maskx4, my_lo, mz_lo)
    y2 = _instnorm_lrelu(acc, gb2)                        # (Cm, Po)
    y3 = jnp.dot(w3[...], y2.astype(_MM_DTYPE), preferred_element_type=jnp.float32)
    y3 = _instnorm_lrelu(y3, gb3)                         # (Cin, Po)

    # ---------------- fused AvgPool3d(2) branch + add ----------------
    pooled = x[:, 0:Po].astype(jnp.float32)
    for s in range(1, 8):
        pooled = pooled + x[:, s * Po:(s + 1) * Po].astype(jnp.float32)
    y = y3 + pooled * 0.125

    # ---------------- extractor blocks (stride 1) ----------------
    num_ext = len(prefs) // 6 - 1
    for i in range(num_ext):
        y = _resnext_s1_body(y, prefs[6 * (i + 1):6 * (i + 2)],
                             out_dims, s1_masks, residuals[i])

    o_ref[0] = y.astype(o_ref.dtype)


# ----------------------------------------------------------------------------
# JAX glue (layout plumbing only)
# ----------------------------------------------------------------------------
def _make_masks(out_dims):
    """Per-axis boundary masks, packed into one compact (8, 4*Po) f32 slab."""
    Do, Ho, Wo = out_dims
    Po = Do * Ho * Wo
    q = jnp.arange(Po, dtype=jnp.int32)
    qx = q % Wo
    qy = (q // Wo) % Ho
    qz = q // (Ho * Wo)
    zpad = jnp.zeros((3 * Po,), jnp.float32)

    def pad4(m):
        return jnp.concatenate([m.astype(jnp.float32), zpad])

    q4 = jnp.arange(4 * Po, dtype=jnp.int32)
    rows = [
        ((q4 % Wo) != 0).astype(jnp.float32),   # x_lo (Wo-periodic over 4*Po)
        pad4(qx != Wo - 1),                     # x_hi
        pad4(qy != 0),                          # y_lo
        pad4(qy != Ho - 1),                     # y_hi
        pad4(qz != 0),                          # z_lo
        pad4(qz != Do - 1),                     # z_hi
        jnp.zeros((4 * Po,), jnp.float32),
        jnp.zeros((4 * Po,), jnp.float32),
    ]
    return jnp.stack(rows)                      # (8, 4*Po)


def down_forward(x_ncdhw, params, stride=2):
    """`Down.forward`: avgpool(x) + resnext_downsample(x), then extractor convs."""
    assert stride == 2, "the fused kernel's phase decomposition assumes stride=2"
    N, Cin, D, H, W = x_ncdhw.shape
    assert D % 2 == 0 and H % 2 == 0 and W % 2 == 0
    Do, Ho, Wo = D // 2, H // 2, W // 2
    Po = Do * Ho * Wo

    # bf16 phase-major permutation (halves the HBM traffic of this relayout).
    # Phase order (phx, phz, phy) keeps the phx==1 slabs contiguous.
    x = x_ncdhw.astype(_MM_DTYPE)
    xp = x.reshape(N, Cin, Do, 2, Ho, 2, Wo, 2)
    xp = jnp.transpose(xp, (0, 1, 7, 3, 5, 2, 4, 6)).reshape(N, Cin, 8 * Po)

    masks = _make_masks((Do, Ho, Wo))

    blocks = [params["down"]] + list(params["ext"])
    flat, specs = [], []
    for p in blocks:
        for name in ("w1", "gb1", "wc2", "gb2", "w3", "gb3"):
            a = p[name]
            flat.append(a)
            specs.append(pl.BlockSpec(a.shape, lambda n: (0, 0)))  # all params 2-D

    residuals = tuple(p["w1"].shape[1] == p["w3"].shape[0] for p in params["ext"])
    Cout = params["ext"][-1]["w3"].shape[0] if params["ext"] else Cin

    kern = functools.partial(_fused_down_kernel, out_dims=(Do, Ho, Wo),
                             residuals=residuals)
    y = pl.pallas_call(
        kern,
        out_shape=jax.ShapeDtypeStruct((N, Cout, Po), jnp.float32),
        grid=(N,),
        in_specs=[pl.BlockSpec((1, Cin, 8 * Po), lambda n: (n, 0, 0)),
                  pl.BlockSpec((8, 4 * Po), lambda n: (0, 0))] + specs,
        out_specs=pl.BlockSpec((1, Cout, Po), lambda n: (n, 0, 0)),
        compiler_params=pltpu.CompilerParams(
            dimension_semantics=("parallel",),            # batch across TCs (v7x)
            vmem_limit_bytes=48 * 1024 * 1024,            # headroom vs 64 MiB v7x
        ),
    )(xp, masks, *flat)

    return y.reshape(N, Cout, Do, Ho, Wo)                 # NCDHW


# ----------------------------------------------------------------------------
# Deterministic parameter construction (shapes follow ResNeXtConv.__init__)
# ----------------------------------------------------------------------------
def _trunc_normal(key, shape, std=0.06):
    return std * jax.random.truncated_normal(key, -2.0, 2.0, shape, jnp.float32)


def _make_resnext_params(key, cin, cout, expand_rate=2):
    # The channel-pair partner gather in the kernels assumes expand_rate == 2
    # (the module's default, used by `Down`).
    assert expand_rate == 2
    cm = cin * expand_rate
    k1, k2, k3 = jax.random.split(key, 3)
    w1 = _trunc_normal(k1, (cm, cin))                    # Conv3d(cin, cm, 1)
    w2 = _trunc_normal(k2, (cm, expand_rate, 3, 3, 3))   # grouped Conv3d(cm, cm, 3)
    w3 = _trunc_normal(k3, (cout, cm))                   # Conv3d(cm, cout, 1)
    # Compact (Cm, 54) tap-major columns: [c, ((kz*3+ky)*3+kx)*2 + li]
    wc2 = jnp.transpose(w2, (0, 2, 3, 4, 1)).reshape(cm, 54)
    # Conv biases omitted: cancelled exactly by the following InstanceNorm.

    def gb(c):  # (C, 2): column 0 = gamma (1.0), column 1 = beta (0.0)
        return jnp.concatenate(
            [jnp.ones((c, 1), jnp.float32), jnp.zeros((c, 1), jnp.float32)], axis=1)

    return {"w1": w1.astype(_MM_DTYPE), "wc2": wc2, "w3": w3.astype(_MM_DTYPE),
            "gb1": gb(cm), "gb2": gb(cm), "gb3": gb(cout)}


def make_down_params(key, cin, cout, num_conv=1):
    keys = jax.random.split(key, 1 + num_conv)
    params = {"down": _make_resnext_params(keys[0], cin, cin)}
    ext = []
    for i in range(num_conv):
        in_c = cin if i == 0 else cout
        ext.append(_make_resnext_params(keys[1 + i], in_c, cout))
    params["ext"] = ext
    return params


# ----------------------------------------------------------------------------
# Pure-JAX f32 reference of the PyTorch module (for numerical validation)
# ----------------------------------------------------------------------------
def _ref_in_lrelu(y, gb):
    mean = jnp.mean(y, axis=(2, 3, 4), keepdims=True)
    var = jnp.mean(jnp.square(y - mean), axis=(2, 3, 4), keepdims=True)
    g = gb[:, 0].reshape(1, -1, 1, 1, 1)
    b = gb[:, 1].reshape(1, -1, 1, 1, 1)
    y = (y - mean) * jax.lax.rsqrt(var + 1e-5) * g + b
    return jnp.where(y >= 0, y, 0.01 * y)


def _ref_resnext(x, p, stride):
    f32 = jnp.float32
    w1 = p["w1"].astype(f32)
    w3 = p["w3"].astype(f32)
    cm, cin = w1.shape
    cout = w3.shape[0]
    res = x

    y = _ref_in_lrelu(jnp.einsum("oc,ncdhw->nodhw", w1, x), p["gb1"])

    w2 = p["wc2"].reshape(cm, 3, 3, 3, 2)                 # [c, kz, ky, kx, li]
    N, C, D, H, W = y.shape
    yp = jnp.pad(y, ((0, 0), (0, 0), (1, 1), (1, 1), (1, 1)))
    Do = (D - 1) // stride + 1
    Ho = (H - 1) // stride + 1
    Wo = (W - 1) // stride + 1
    idx0 = (jnp.arange(cm) // 2) * 2
    acc = jnp.zeros((N, cm, Do, Ho, Wo), f32)
    for kz in range(3):
        for ky in range(3):
            for kx in range(3):
                patch = yp[:, :,
                           kz:kz + stride * (Do - 1) + 1:stride,
                           ky:ky + stride * (Ho - 1) + 1:stride,
                           kx:kx + stride * (Wo - 1) + 1:stride]
                p0 = patch[:, idx0]
                p1 = patch[:, idx0 + 1]
                c0 = w2[:, kz, ky, kx, 0].reshape(1, cm, 1, 1, 1)
                c1 = w2[:, kz, ky, kx, 1].reshape(1, cm, 1, 1, 1)
                acc = acc + c0 * p0 + c1 * p1
    y = _ref_in_lrelu(acc, p["gb2"])

    y = _ref_in_lrelu(jnp.einsum("oc,ncdhw->nodhw", w3, y), p["gb3"])
    if stride == 1 and cin == cout:
        y = y + res
    return y


def _ref_down_forward(x, params):
    f32 = jnp.float32
    # match the kernel's bf16 input rounding so the comparison isolates structure
    x = x.astype(jnp.bfloat16).astype(f32)
    N, C, D, H, W = x.shape
    pooled = x.reshape(N, C, D // 2, 2, H // 2, 2, W // 2, 2).mean(axis=(3, 5, 7))
    y = pooled + _ref_resnext(x, params["down"], 2)
    for p in params["ext"]:
        y = _ref_resnext(y, p, 1)
    return y


# ----------------------------------------------------------------------------
if __name__ == "__main__":
    key = jax.random.PRNGKey(0)
    kx, kp = jax.random.split(key)

    N, Cin, D, H, W = 2, 4, 16, 16, 16          # Po = 8*8*8 = 512 (lane-aligned)
    Cout = 8

    x = jax.random.normal(kx, (N, Cin, D, H, W), jnp.float32)   # NCDHW
    params = make_down_params(kp, Cin, Cout, num_conv=1)

    y = jax.jit(down_forward)(x, params)
    y = jax.block_until_ready(y)

    assert y.shape == (N, Cout, D // 2, H // 2, W // 2), y.shape
    assert bool(jnp.isfinite(y).all())

    # numerical check against the pure-JAX f32 reference (bf16 MXU tolerance)
    y_ref = jax.jit(_ref_down_forward)(x, params)
    rel = (jnp.linalg.norm((y.astype(jnp.float32) - y_ref).ravel())
           / jnp.linalg.norm(y_ref.ravel()))
    assert float(rel) < 0.08, float(rel)

    print("KERNEL_OK")
</pallas_src>

<mosaic_0001>
module attributes {stable_mosaic.version = 11 : i64} {
  func.func @_fused_down_kernel(%arg0: i32, %arg1: memref<1x4x4096xbf16, #tpu.memory_space<vmem>>, %arg2: memref<8x2048xf32, #tpu.memory_space<vmem>>, %arg3: memref<8x4xbf16, #tpu.memory_space<vmem>>, %arg4: memref<8x2xf32, #tpu.memory_space<vmem>>, %arg5: memref<8x54xf32, #tpu.memory_space<vmem>>, %arg6: memref<8x2xf32, #tpu.memory_space<vmem>>, %arg7: memref<4x8xbf16, #tpu.memory_space<vmem>>, %arg8: memref<4x2xf32, #tpu.memory_space<vmem>>, %arg9: memref<8x4xbf16, #tpu.memory_space<vmem>>, %arg10: memref<8x2xf32, #tpu.memory_space<vmem>>, %arg11: memref<8x54xf32, #tpu.memory_space<vmem>>, %arg12: memref<8x2xf32, #tpu.memory_space<vmem>>, %arg13: memref<8x8xbf16, #tpu.memory_space<vmem>>, %arg14: memref<8x2xf32, #tpu.memory_space<vmem>>, %arg15: memref<1x8x512xf32, #tpu.memory_space<vmem>>) attributes {dimension_semantics = [#tpu.dimension_semantics<parallel>], iteration_bounds = array<i64: 2>, scalar_prefetch = 0 : i64, scratch_operands = 0 : i64, tpu.core_type = #tpu.core_type<tc>, window_params = [{transform_indices = @transform_0, window_bounds = array<i64: 1, 4, 4096>}, {pipeline_mode = #tpu.pipeline_mode<synchronous>, transform_indices = @transform_1, window_bounds = array<i64: 8, 2048>}, {pipeline_mode = #tpu.pipeline_mode<synchronous>, transform_indices = @transform_2, window_bounds = array<i64: 8, 4>}, {pipeline_mode = #tpu.pipeline_mode<synchronous>, transform_indices = @transform_3, window_bounds = array<i64: 8, 2>}, {pipeline_mode = #tpu.pipeline_mode<synchronous>, transform_indices = @transform_4, window_bounds = array<i64: 8, 54>}, {pipeline_mode = #tpu.pipeline_mode<synchronous>, transform_indices = @transform_5, window_bounds = array<i64: 8, 2>}, {pipeline_mode = #tpu.pipeline_mode<synchronous>, transform_indices = @transform_6, window_bounds = array<i64: 4, 8>}, {pipeline_mode = #tpu.pipeline_mode<synchronous>, transform_indices = @transform_7, window_bounds = array<i64: 4, 2>}, {pipeline_mode = #tpu.pipeline_mode<synchronous>, transform_indices = @transform_8, window_bounds = array<i64: 8, 4>}, {pipeline_mode = #tpu.pipeline_mode<synchronous>, transform_indices = @transform_9, window_bounds = array<i64: 8, 2>}, {pipeline_mode = #tpu.pipeline_mode<synchronous>, transform_indices = @transform_10, window_bounds = array<i64: 8, 54>}, {pipeline_mode = #tpu.pipeline_mode<synchronous>, transform_indices = @transform_11, window_bounds = array<i64: 8, 2>}, {pipeline_mode = #tpu.pipeline_mode<synchronous>, transform_indices = @transform_12, window_bounds = array<i64: 8, 8>}, {pipeline_mode = #tpu.pipeline_mode<synchronous>, transform_indices = @transform_13, window_bounds = array<i64: 8, 2>}, {transform_indices = @transform_14, window_bounds = array<i64: 1, 8, 512>}]} {
    %c0 = arith.constant 0 : index
    %c0_0 = arith.constant 0 : index
    %0 = vector.load %arg2[%c0, %c0_0] : memref<8x2048xf32, #tpu.memory_space<vmem>>, vector<1x2048xf32>
    %c0_1 = arith.constant 0 : index
    %c0_2 = arith.constant 0 : index
    %1 = vector.load %arg2[%c0_1, %c0_2] : memref<8x2048xf32, #tpu.memory_space<vmem>>, vector<1x512xf32>
    %c1 = arith.constant 1 : index
    %c0_3 = arith.constant 0 : index
    %2 = vector.load %arg2[%c1, %c0_3] : memref<8x2048xf32, #tpu.memory_space<vmem>>, vector<1x512xf32>
    %c2 = arith.constant 2 : index
    %c0_4 = arith.constant 0 : index
    %3 = vector.load %arg2[%c2, %c0_4] : memref<8x2048xf32, #tpu.memory_space<vmem>>, vector<1x512xf32>
    %c3 = arith.constant 3 : index
    %c0_5 = arith.constant 0 : index
    %4 = vector.load %arg2[%c3, %c0_5] : memref<8x2048xf32, #tpu.memory_space<vmem>>, vector<1x512xf32>
    %c4 = arith.constant 4 : index
    %c0_6 = arith.constant 0 : index
    %5 = vector.load %arg2[%c4, %c0_6] : memref<8x2048xf32, #tpu.memory_space<vmem>>, vector<1x512xf32>
    %c5 = arith.constant 5 : index
    %c0_7 = arith.constant 0 : index
    %6 = vector.load %arg2[%c5, %c0_7] : memref<8x2048xf32, #tpu.memory_space<vmem>>, vector<1x512xf32>
    %c0_8 = arith.constant 0 : index
    %c0_9 = arith.constant 0 : index
    %c0_10 = arith.constant 0 : index
    %7 = vector.load %arg1[%c0_8, %c0_9, %c0_10] : memref<1x4x4096xbf16, #tpu.memory_space<vmem>>, vector<1x4x4096xbf16>
    %8 = vector.shape_cast %7 : vector<1x4x4096xbf16> to vector<4x4096xbf16>
    %c0_11 = arith.constant 0 : index
    %c0_12 = arith.constant 0 : index
    %9 = vector.load %arg3[%c0_11, %c0_12] : memref<8x4xbf16, #tpu.memory_space<vmem>>, vector<8x4xbf16>
    %cst = arith.constant dense<0.000000e+00> : vector<8x4096xf32>
    %10 = tpu.matmul %9, %8, %cst {dimension_numbers = #tpu.dot_dimension_numbers<[1], [0], [0], [1], [0, 0, 1, 1], [], []>} : vector<8x4xbf16>, vector<4x4096xbf16>, vector<8x4096xf32> -> vector<8x4096xf32>
    %cst_13 = arith.constant dense<0.000000e+00> : vector<8xf32>
    %11 = vector.multi_reduction <add>, %10, %cst_13 [1] : vector<8x4096xf32> to vector<8xf32>
    %12 = vector.shape_cast %11 : vector<8xf32> to vector<8x1xf32>
    %cst_14 = arith.constant 2.44140625E-4 : f32
    %13 = vector.broadcast %cst_14 : f32 to vector<8x1xf32>
    %14 = arith.mulf %12, %13 : vector<8x1xf32>
    %15 = arith.mulf %10, %10 : vector<8x4096xf32>
    %cst_15 = arith.constant dense<0.000000e+00> : vector<8xf32>
    %16 = vector.multi_reduction <add>, %15, %cst_15 [1] : vector<8x4096xf32> to vector<8xf32>
    %17 = vector.shape_cast %16 : vector<8xf32> to vector<8x1xf32>
    %cst_16 = arith.constant 2.44140625E-4 : f32
    %18 = vector.broadcast %cst_16 : f32 to vector<8x1xf32>
    %19 = arith.mulf %17, %18 : vector<8x1xf32>
    %20 = arith.mulf %14, %14 : vector<8x1xf32>
    %21 = arith.subf %19, %20 : vector<8x1xf32>
    %cst_17 = arith.constant 0.000000e+00 : f32
    %22 = vector.broadcast %cst_17 : f32 to vector<8x1xf32>
    %23 = arith.maximumf %21, %22 : vector<8x1xf32>
    %c0_18 = arith.constant 0 : index
    %c0_19 = arith.constant 0 : index
    %24 = vector.load %arg4[%c0_18, %c0_19] : memref<8x2xf32, #tpu.memory_space<vmem>>, vector<8x1xf32>
    %cst_20 = arith.constant 9.99999974E-6 : f32
    %25 = vector.broadcast %cst_20 : f32 to vector<8x1xf32>
    %26 = arith.addf %23, %25 : vector<8x1xf32>
    %27 = math.rsqrt %26 : vector<8x1xf32>
    %28 = arith.mulf %24, %27 : vector<8x1xf32>
    %c0_21 = arith.constant 0 : index
    %c1_22 = arith.constant 1 : index
    %29 = vector.load %arg4[%c0_21, %c1_22] : memref<8x2xf32, #tpu.memory_space<vmem>>, vector<8x1xf32>
    %30 = arith.mulf %14, %28 : vector<8x1xf32>
    %31 = arith.subf %29, %30 : vector<8x1xf32>
    %32 = vector.broadcast %28 : vector<8x1xf32> to vector<8x4096xf32>
    %33 = arith.mulf %10, %32 : vector<8x4096xf32>
    %34 = vector.broadcast %31 : vector<8x1xf32> to vector<8x4096xf32>
    %35 = arith.addf %33, %34 : vector<8x4096xf32>
    %cst_23 = arith.constant 0.00999999977 : f32
    %36 = vector.broadcast %cst_23 : f32 to vector<8x4096xf32>
    %37 = arith.mulf %36, %35 : vector<8x4096xf32>
    %38 = arith.maximumf %35, %37 : vector<8x4096xf32>
    %39 = tpu.iota {dimensions = array<i32: 0>} : vector<8x1xi32>
    %c1_i32 = arith.constant 1 : i32
    %40 = vector.broadcast %c1_i32 : i32 to vector<8x1xi32>
    %41 = arith.andi %39, %40 : vector<8x1xi32>
    %c0_i32 = arith.constant 0 : i32
    %42 = vector.broadcast %c0_i32 : i32 to vector<8x1xi32>
    %43 = arith.cmpi eq, %41, %42 : vector<8x1xi32>
    %c1_i32_24 = arith.constant 1 : i32
    %44 = tpu.dynamic_rotate %38 by %c1_i32_24 dim 0 : vector<8x4096xf32>, i32 -> vector<8x4096xf32>
    %45 = vector.shape_cast %43 : vector<8x1xi1> to vector<8x1xi1>
    %46 = vector.broadcast %45 : vector<8x1xi1> to vector<8x4096xi1>
    %47 = arith.select %46, %38, %44 : vector<8x4096xi1>, vector<8x4096xf32>
    %c7_i32 = arith.constant 7 : i32
    %48 = tpu.dynamic_rotate %38 by %c7_i32 dim 0 : vector<8x4096xf32>, i32 -> vector<8x4096xf32>
    %49 = vector.shape_cast %43 : vector<8x1xi1> to vector<8x1xi1>
    %50 = vector.broadcast %49 : vector<8x1xi1> to vector<8x4096xi1>
    %51 = arith.select %50, %48, %38 : vector<8x4096xi1>, vector<8x4096xf32>
    %52 = vector.extract_strided_slice %47 {offsets = [0, 2048], sizes = [8, 2048], strides = [1, 1]} : vector<8x4096xf32> to vector<8x2048xf32>
    %c1_i32_25 = arith.constant 1 : i32
    %53 = tpu.dynamic_rotate %52 by %c1_i32_25 dim 1 : vector<8x2048xf32>, i32 -> vector<8x2048xf32>
    %54 = vector.broadcast %0 : vector<1x2048xf32> to vector<8x2048xf32>
    %55 = arith.mulf %53, %54 : vector<8x2048xf32>
    %56 = vector.extract_strided_slice %51 {offsets = [0, 2048], sizes = [8, 2048], strides = [1, 1]} : vector<8x4096xf32> to vector<8x2048xf32>
    %c1_i32_26 = arith.constant 1 : i32
    %57 = tpu.dynamic_rotate %56 by %c1_i32_26 dim 1 : vector<8x2048xf32>, i32 -> vector<8x2048xf32>
    %58 = vector.broadcast %0 : vector<1x2048xf32> to vector<8x2048xf32>
    %59 = arith.mulf %57, %58 : vector<8x2048xf32>
    %60 = vector.extract_strided_slice %55 {offsets = [0, 1536], sizes = [8, 512], strides = [1, 1]} : vector<8x2048xf32> to vector<8x512xf32>
    %61 = vector.extract_strided_slice %59 {offsets = [0, 1536], sizes = [8, 512], strides = [1, 1]} : vector<8x2048xf32> to vector<8x512xf32>
    %c0_27 = arith.constant 0 : index
    %c0_28 = arith.constant 0 : index
    %62 = vector.load %arg5[%c0_27, %c0_28] : memref<8x54xf32, #tpu.memory_space<vmem>>, vector<8x1xf32>
    %63 = vector.broadcast %62 : vector<8x1xf32> to vector<8x512xf32>
    %64 = arith.mulf %63, %60 : vector<8x512xf32>
    %c0_29 = arith.constant 0 : index
    %c1_30 = arith.constant 1 : index
    %65 = vector.load %arg5[%c0_29, %c1_30] : memref<8x54xf32, #tpu.memory_space<vmem>>, vector<8x1xf32>
    %66 = vector.broadcast %65 : vector<8x1xf32> to vector<8x512xf32>
    %67 = arith.mulf %66, %61 : vector<8x512xf32>
    %68 = arith.addf %64, %67 : vector<8x512xf32>
    %69 = vector.extract_strided_slice %47 {offsets = [0, 1536], sizes = [8, 512], strides = [1, 1]} : vector<8x4096xf32> to vector<8x512xf32>
    %70 = vector.extract_strided_slice %51 {offsets = [0, 1536], sizes = [8, 512], strides = [1, 1]} : vector<8x4096xf32> to vector<8x512xf32>
    %c0_31 = arith.constant 0 : index
    %c2_32 = arith.constant 2 : index
    %71 = vector.load %arg5[%c0_31, %c2_32] : memref<8x54xf32, #tpu.memory_space<vmem>>, vector<8x1xf32>
    %72 = vector.broadcast %71 : vector<8x1xf32> to vector<8x512xf32>
    %73 = arith.mulf %72, %69 : vector<8x512xf32>
    %c0_33 = arith.constant 0 : index
    %c3_34 = arith.constant 3 : index
    %74 = vector.load %arg5[%c0_33, %c3_34] : memref<8x54xf32, #tpu.memory_space<vmem>>, vector<8x1xf32>
    %75 = vector.broadcast %74 : vector<8x1xf32> to vector<8x512xf32>
    %76 = arith.mulf %75, %70 : vector<8x512xf32>
    %77 = arith.addf %73, %76 : vector<8x512xf32>
    %78 = arith.addf %68, %77 : vector<8x512xf32>
    %79 = vector.extract_strided_slice %47 {offsets = [0, 3584], sizes = [8, 512], strides = [1, 1]} : vector<8x4096xf32> to vector<8x512xf32>
    %80 = vector.extract_strided_slice %51 {offsets = [0, 3584], sizes = [8, 512], strides = [1, 1]} : vector<8x4096xf32> to vector<8x512xf32>
    %c0_35 = arith.constant 0 : index
    %c4_36 = arith.constant 4 : index
    %81 = vector.load %arg5[%c0_35, %c4_36] : memref<8x54xf32, #tpu.memory_space<vmem>>, vector<8x1xf32>
    %82 = vector.broadcast %81 : vector<8x1xf32> to vector<8x512xf32>
    %83 = arith.mulf %82, %79 : vector<8x512xf32>
    %c0_37 = arith.constant 0 : index
    %c5_38 = arith.constant 5 : index
    %84 = vector.load %arg5[%c0_37, %c5_38] : memref<8x54xf32, #tpu.memory_space<vmem>>, vector<8x1xf32>
    %85 = vector.broadcast %84 : vector<8x1xf32> to vector<8x512xf32>
    %86 = arith.mulf %85, %80 : vector<8x512xf32>
    %87 = arith.addf %83, %86 : vector<8x512xf32>
    %88 = arith.addf %78, %87 : vector<8x512xf32>
    %89 = vector.extract_strided_slice %55 {offsets = [0, 1024], sizes = [8, 512], strides = [1, 1]} : vector<8x2048xf32> to vector<8x512xf32>
    %90 = vector.extract_strided_slice %59 {offsets = [0, 1024], sizes = [8, 512], strides = [1, 1]} : vector<8x2048xf32> to vector<8x512xf32>
    %c0_39 = arith.constant 0 : index
    %c6 = arith.constant 6 : index
    %91 = vector.load %arg5[%c0_39, %c6] : memref<8x54xf32, #tpu.memory_space<vmem>>, vector<8x1xf32>
    %92 = vector.broadcast %91 : vector<8x1xf32> to vector<8x512xf32>
    %93 = arith.mulf %92, %89 : vector<8x512xf32>
    %c0_40 = arith.constant 0 : index
    %c7 = arith.constant 7 : index
    %94 = vector.load %arg5[%c0_40, %c7] : memref<8x54xf32, #tpu.memory_space<vmem>>, vector<8x1xf32>
    %95 = vector.broadcast %94 : vector<8x1xf32> to vector<8x512xf32>
    %96 = arith.mulf %95, %90 : vector<8x512xf32>
    %97 = arith.addf %93, %96 : vector<8x512xf32>
    %98 = vector.extract_strided_slice %47 {offsets = [0, 1024], sizes = [8, 512], strides = [1, 1]} : vector<8x4096xf32> to vector<8x512xf32>
    %99 = vector.extract_strided_slice %51 {offsets = [0, 1024], sizes = [8, 512], strides = [1, 1]} : vector<8x4096xf32> to vector<8x512xf32>
    %c0_41 = arith.constant 0 : index
    %c8 = arith.constant 8 : index
    %100 = vector.load %arg5[%c0_41, %c8] : memref<8x54xf32, #tpu.memory_space<vmem>>, vector<8x1xf32>
    %101 = vector.broadcast %100 : vector<8x1xf32> to vector<8x512xf32>
    %102 = arith.mulf %101, %98 : vector<8x512xf32>
    %c0_42 = arith.constant 0 : index
    %c9 = arith.constant 9 : index
    %103 = vector.load %arg5[%c0_42, %c9] : memref<8x54xf32, #tpu.memory_space<vmem>>, vector<8x1xf32>
    %104 = vector.broadcast %103 : vector<8x1xf32> to vector<8x512xf32>
    %105 = arith.mulf %104, %99 : vector<8x512xf32>
    %106 = arith.addf %102, %105 : vector<8x512xf32>
    %107 = arith.addf %97, %106 : vector<8x512xf32>
    %108 = vector.extract_strided_slice %47 {offsets = [0, 3072], sizes = [8, 512], strides = [1, 1]} : vector<8x4096xf32> to vector<8x512xf32>
    %109 = vector.extract_strided_slice %51 {offsets = [0, 3072], sizes = [8, 512], strides = [1, 1]} : vector<8x4096xf32> to vector<8x512xf32>
    %c0_43 = arith.constant 0 : index
    %c10 = arith.constant 10 : index
    %110 = vector.load %arg5[%c0_43, %c10] : memref<8x54xf32, #tpu.memory_space<vmem>>, vector<8x1xf32>
    %111 = vector.broadcast %110 : vector<8x1xf32> to vector<8x512xf32>
    %112 = arith.mulf %111, %108 : vector<8x512xf32>
    %c0_44 = arith.constant 0 : index
    %c11 = arith.constant 11 : index
    %113 = vector.load %arg5[%c0_44, %c11] : memref<8x54xf32, #tpu.memory_space<vmem>>, vector<8x1xf32>
    %114 = vector.broadcast %113 : vector<8x1xf32> to vector<8x512xf32>
    %115 = arith.mulf %114, %109 : vector<8x512xf32>
    %116 = arith.addf %112, %115 : vector<8x512xf32>
    %117 = arith.addf %107, %116 : vector<8x512xf32>
    %118 = vector.extract_strided_slice %55 {offsets = [0, 1536], sizes = [8, 512], strides = [1, 1]} : vector<8x2048xf32> to vector<8x512xf32>
    %119 = vector.extract_strided_slice %59 {offsets = [0, 1536], sizes = [8, 512], strides = [1, 1]} : vector<8x2048xf32> to vector<8x512xf32>
    %c0_45 = arith.constant 0 : index
    %c12 = arith.constant 12 : index
    %120 = vector.load %arg5[%c0_45, %c12] : memref<8x54xf32, #tpu.memory_space<vmem>>, vector<8x1xf32>
    %121 = vector.broadcast %120 : vector<8x1xf32> to vector<8x512xf32>
    %122 = arith.mulf %121, %118 : vector<8x512xf32>
    %c0_46 = arith.constant 0 : index
    %c13 = arith.constant 13 : index
    %123 = vector.load %arg5[%c0_46, %c13] : memref<8x54xf32, #tpu.memory_space<vmem>>, vector<8x1xf32>
    %124 = vector.broadcast %123 : vector<8x1xf32> to vector<8x512xf32>
    %125 = arith.mulf %124, %119 : vector<8x512xf32>
    %126 = arith.addf %122, %125 : vector<8x512xf32>
    %127 = vector.extract_strided_slice %47 {offsets = [0, 1536], sizes = [8, 512], strides = [1, 1]} : vector<8x4096xf32> to vector<8x512xf32>
    %128 = vector.extract_strided_slice %51 {offsets = [0, 1536], sizes = [8, 512], strides = [1, 1]} : vector<8x4096xf32> to vector<8x512xf32>
    %c0_47 = arith.constant 0 : index
    %c14 = arith.constant 14 : index
    %129 = vector.load %arg5[%c0_47, %c14] : memref<8x54xf32, #tpu.memory_space<vmem>>, vector<8x1xf32>
    %130 = vector.broadcast %129 : vector<8x1xf32> to vector<8x512xf32>
    %131 = arith.mulf %130, %127 : vector<8x512xf32>
    %c0_48 = arith.constant 0 : index
    %c15 = arith.constant 15 : index
    %132 = vector.load %arg5[%c0_48, %c15] : memref<8x54xf32, #tpu.memory_space<vmem>>, vector<8x1xf32>
    %133 = vector.broadcast %132 : vector<8x1xf32> to vector<8x512xf32>
    %134 = arith.mulf %133, %128 : vector<8x512xf32>
    %135 = arith.addf %131, %134 : vector<8x512xf32>
    %136 = arith.addf %126, %135 : vector<8x512xf32>
    %137 = vector.extract_strided_slice %47 {offsets = [0, 3584], sizes = [8, 512], strides = [1, 1]} : vector<8x4096xf32> to vector<8x512xf32>
    %138 = vector.extract_strided_slice %51 {offsets = [0, 3584], sizes = [8, 512], strides = [1, 1]} : vector<8x4096xf32> to vector<8x512xf32>
    %c0_49 = arith.constant 0 : index
    %c16 = arith.constant 16 : index
    %139 = vector.load %arg5[%c0_49, %c16] : memref<8x54xf32, #tpu.memory_space<vmem>>, vector<8x1xf32>
    %140 = vector.broadcast %139 : vector<8x1xf32> to vector<8x512xf32>
    %141 = arith.mulf %140, %137 : vector<8x512xf32>
    %c0_50 = arith.constant 0 : index
    %c17 = arith.constant 17 : index
    %142 = vector.load %arg5[%c0_50, %c17] : memref<8x54xf32, #tpu.memory_space<vmem>>, vector<8x1xf32>
    %143 = vector.broadcast %142 : vector<8x1xf32> to vector<8x512xf32>
    %144 = arith.mulf %143, %138 : vector<8x512xf32>
    %145 = arith.addf %141, %144 : vector<8x512xf32>
    %146 = arith.addf %136, %145 : vector<8x512xf32>
    %c8_i32 = arith.constant 8 : i32
    %147 = tpu.dynamic_rotate %88 by %c8_i32 dim 1 : vector<8x512xf32>, i32 -> vector<8x512xf32>
    %148 = vector.broadcast %3 : vector<1x512xf32> to vector<8x512xf32>
    %149 = arith.mulf %147, %148 : vector<8x512xf32>
    %150 = arith.addf %149, %117 : vector<8x512xf32>
    %151 = arith.addf %150, %146 : vector<8x512xf32>
    %152 = vector.extract_strided_slice %55 {offsets = [0, 512], sizes = [8, 512], strides = [1, 1]} : vector<8x2048xf32> to vector<8x512xf32>
    %153 = vector.extract_strided_slice %59 {offsets = [0, 512], sizes = [8, 512], strides = [1, 1]} : vector<8x2048xf32> to vector<8x512xf32>
    %c0_51 = arith.constant 0 : index
    %c18 = arith.constant 18 : index
    %154 = vector.load %arg5[%c0_51, %c18] : memref<8x54xf32, #tpu.memory_space<vmem>>, vector<8x1xf32>
    %155 = vector.broadcast %154 : vector<8x1xf32> to vector<8x512xf32>
    %156 = arith.mulf %155, %152 : vector<8x512xf32>
    %c0_52 = arith.constant 0 : index
    %c19 = arith.constant 19 : index
    %157 = vector.load %arg5[%c0_52, %c19] : memref<8x54xf32, #tpu.memory_space<vmem>>, vector<8x1xf32>
    %158 = vector.broadcast %157 : vector<8x1xf32> to vector<8x512xf32>
    %159 = arith.mulf %158, %153 : vector<8x512xf32>
    %160 = arith.addf %156, %159 : vector<8x512xf32>
    %161 = vector.extract_strided_slice %47 {offsets = [0, 512], sizes = [8, 512], strides = [1, 1]} : vector<8x4096xf32> to vector<8x512xf32>
    %162 = vector.extract_strided_slice %51 {offsets = [0, 512], sizes = [8, 512], strides = [1, 1]} : vector<8x4096xf32> to vector<8x512xf32>
    %c0_53 = arith.constant 0 : index
    %c20 = arith.constant 20 : index
    %163 = vector.load %arg5[%c0_53, %c20] : memref<8x54xf32, #tpu.memory_space<vmem>>, vector<8x1xf32>
    %164 = vector.broadcast %163 : vector<8x1xf32> to vector<8x512xf32>
    %165 = arith.mulf %164, %161 : vector<8x512xf32>
    %c0_54 = arith.constant 0 : index
    %c21 = arith.constant 21 : index
    %166 = vector.load %arg5[%c0_54, %c21] : memref<8x54xf32, #tpu.memory_space<vmem>>, vector<8x1xf32>
    %167 = vector.broadcast %166 : vector<8x1xf32> to vector<8x512xf32>
    %168 = arith.mulf %167, %162 : vector<8x512xf32>
    %169 = arith.addf %165, %168 : vector<8x512xf32>
    %170 = arith.addf %160, %169 : vector<8x512xf32>
    %171 = vector.extract_strided_slice %47 {offsets = [0, 2560], sizes = [8, 512], strides = [1, 1]} : vector<8x4096xf32> to vector<8x512xf32>
    %172 = vector.extract_strided_slice %51 {offsets = [0, 2560], sizes = [8, 512], strides = [1, 1]} : vector<8x4096xf32> to vector<8x512xf32>
    %c0_55 = arith.constant 0 : index
    %c22 = arith.constant 22 : index
    %173 = vector.load %arg5[%c0_55, %c22] : memref<8x54xf32, #tpu.memory_space<vmem>>, vector<8x1xf32>
    %174 = vector.broadcast %173 : vector<8x1xf32> to vector<8x512xf32>
    %175 = arith.mulf %174, %171 : vector<8x512xf32>
    %c0_56 = arith.constant 0 : index
    %c23 = arith.constant 23 : index
    %176 = vector.load %arg5[%c0_56, %c23] : memref<8x54xf32, #tpu.memory_space<vmem>>, vector<8x1xf32>
    %177 = vector.broadcast %176 : vector<8x1xf32> to vector<8x512xf32>
    %178 = arith.mulf %177, %172 : vector<8x512xf32>
    %179 = arith.addf %175, %178 : vector<8x512xf32>
    %180 = arith.addf %170, %179 : vector<8x512xf32>
    %181 = vector.extract_strided_slice %55 {offsets = [0, 0], sizes = [8, 512], strides = [1, 1]} : vector<8x2048xf32> to vector<8x512xf32>
    %182 = vector.extract_strided_slice %59 {offsets = [0, 0], sizes = [8, 512], strides = [1, 1]} : vector<8x2048xf32> to vector<8x512xf32>
    %c0_57 = arith.constant 0 : index
    %c24 = arith.constant 24 : index
    %183 = vector.load %arg5[%c0_57, %c24] : memref<8x54xf32, #tpu.memory_space<vmem>>, vector<8x1xf32>
    %184 = vector.broadcast %183 : vector<8x1xf32> to vector<8x512xf32>
    %185 = arith.mulf %184, %181 : vector<8x512xf32>
    %c0_58 = arith.constant 0 : index
    %c25 = arith.constant 25 : index
    %186 = vector.load %arg5[%c0_58, %c25] : memref<8x54xf32, #tpu.memory_space<vmem>>, vector<8x1xf32>
    %187 = vector.broadcast %186 : vector<8x1xf32> to vector<8x512xf32>
    %188 = arith.mulf %187, %182 : vector<8x512xf32>
    %189 = arith.addf %185, %188 : vector<8x512xf32>
    %190 = vector.extract_strided_slice %47 {offsets = [0, 0], sizes = [8, 512], strides = [1, 1]} : vector<8x4096xf32> to vector<8x512xf32>
    %191 = vector.extract_strided_slice %51 {offsets = [0, 0], sizes = [8, 512], strides = [1, 1]} : vector<8x4096xf32> to vector<8x512xf32>
    %c0_59 = arith.constant 0 : index
    %c26 = arith.constant 26 : index
    %192 = vector.load %arg5[%c0_59, %c26] : memref<8x54xf32, #tpu.memory_space<vmem>>, vector<8x1xf32>
    %193 = vector.broadcast %192 : vector<8x1xf32> to vector<8x512xf32>
    %194 = arith.mulf %193, %190 : vector<8x512xf32>
    %c0_60 = arith.constant 0 : index
    %c27 = arith.constant 27 : index
    %195 = vector.load %arg5[%c0_60, %c27] : memref<8x54xf32, #tpu.memory_space<vmem>>, vector<8x1xf32>
    %196 = vector.broadcast %195 : vector<8x1xf32> to vector<8x512xf32>
    %197 = arith.mulf %196, %191 : vector<8x512xf32>
    %198 = arith.addf %194, %197 : vector<8x512xf32>
    %199 = arith.addf %189, %198 : vector<8x512xf32>
    %200 = vector.extract_strided_slice %47 {offsets = [0, 2048], sizes = [8, 512], strides = [1, 1]} : vector<8x4096xf32> to vector<8x512xf32>
    %201 = vector.extract_strided_slice %51 {offsets = [0, 2048], sizes = [8, 512], strides = [1, 1]} : vector<8x4096xf32> to vector<8x512xf32>
    %c0_61 = arith.constant 0 : index
    %c28 = arith.constant 28 : index
    %202 = vector.load %arg5[%c0_61, %c28] : memref<8x54xf32, #tpu.memory_space<vmem>>, vector<8x1xf32>
    %203 = vector.broadcast %202 : vector<8x1xf32> to vector<8x512xf32>
    %204 = arith.mulf %203, %200 : vector<8x512xf32>
    %c0_62 = arith.constant 0 : index
    %c29 = arith.constant 29 : index
    %205 = vector.load %arg5[%c0_62, %c29] : memref<8x54xf32, #tpu.memory_space<vmem>>, vector<8x1xf32>
    %206 = vector.broadcast %205 : vector<8x1xf32> to vector<8x512xf32>
    %207 = arith.mulf %206, %201 : vector<8x512xf32>
    %208 = arith.addf %204, %207 : vector<8x512xf32>
    %209 = arith.addf %199, %208 : vector<8x512xf32>
    %210 = vector.extract_strided_slice %55 {offsets = [0, 512], sizes = [8, 512], strides = [1, 1]} : vector<8x2048xf32> to vector<8x512xf32>
    %211 = vector.extract_strided_slice %59 {offsets = [0, 512], sizes = [8, 512], strides = [1, 1]} : vector<8x2048xf32> to vector<8x512xf32>
    %c0_63 = arith.constant 0 : index
    %c30 = arith.constant 30 : index
    %212 = vector.load %arg5[%c0_63, %c30] : memref<8x54xf32, #tpu.memory_space<vmem>>, vector<8x1xf32>
    %213 = vector.broadcast %212 : vector<8x1xf32> to vector<8x512xf32>
    %214 = arith.mulf %213, %210 : vector<8x512xf32>
    %c0_64 = arith.constant 0 : index
    %c31 = arith.constant 31 : index
    %215 = vector.load %arg5[%c0_64, %c31] : memref<8x54xf32, #tpu.memory_space<vmem>>, vector<8x1xf32>
    %216 = vector.broadcast %215 : vector<8x1xf32> to vector<8x512xf32>
    %217 = arith.mulf %216, %211 : vector<8x512xf32>
    %218 = arith.addf %214, %217 : vector<8x512xf32>
    %219 = vector.extract_strided_slice %47 {offsets = [0, 512], sizes = [8, 512], strides = [1, 1]} : vector<8x4096xf32> to vector<8x512xf32>
    %220 = vector.extract_strided_slice %51 {offsets = [0, 512], sizes = [8, 512], strides = [1, 1]} : vector<8x4096xf32> to vector<8x512xf32>
    %c0_65 = arith.constant 0 : index
    %c32 = arith.constant 32 : index
    %221 = vector.load %arg5[%c0_65, %c32] : memref<8x54xf32, #tpu.memory_space<vmem>>, vector<8x1xf32>
    %222 = vector.broadcast %221 : vector<8x1xf32> to vector<8x512xf32>
    %223 = arith.mulf %222, %219 : vector<8x512xf32>
    %c0_66 = arith.constant 0 : index
    %c33 = arith.constant 33 : index
    %224 = vector.load %arg5[%c0_66, %c33] : memref<8x54xf32, #tpu.memory_space<vmem>>, vector<8x1xf32>
    %225 = vector.broadcast %224 : vector<8x1xf32> to vector<8x512xf32>
    %226 = arith.mulf %225, %220 : vector<8x512xf32>
    %227 = arith.addf %223, %226 : vector<8x512xf32>
    %228 = arith.addf %218, %227 : vector<8x512xf32>
    %229 = vector.extract_strided_slice %47 {offsets = [0, 2560], sizes = [8, 512], strides = [1, 1]} : vector<8x4096xf32> to vector<8x512xf32>
    %230 = vector.extract_strided_slice %51 {offsets = [0, 2560], sizes = [8, 512], strides = [1, 1]} : vector<8x4096xf32> to vector<8x512xf32>
    %c0_67 = arith.constant 0 : index
    %c34 = arith.constant 34 : index
    %231 = vector.load %arg5[%c0_67, %c34] : memref<8x54xf32, #tpu.memory_space<vmem>>, vector<8x1xf32>
    %232 = vector.broadcast %231 : vector<8x1xf32> to vector<8x512xf32>
    %233 = arith.mulf %232, %229 : vector<8x512xf32>
    %c0_68 = arith.constant 0 : index
    %c35 = arith.constant 35 : index
    %234 = vector.load %arg5[%c0_68, %c35] : memref<8x54xf32, #tpu.memory_space<vmem>>, vector<8x1xf32>
    %235 = vector.broadcast %234 : vector<8x1xf32> to vector<8x512xf32>
    %236 = arith.mulf %235, %230 : vector<8x512xf32>
    %237 = arith.addf %233, %236 : vector<8x512xf32>
    %238 = arith.addf %228, %237 : vector<8x512xf32>
    %c8_i32_69 = arith.constant 8 : i32
    %239 = tpu.dynamic_rotate %180 by %c8_i32_69 dim 1 : vector<8x512xf32>, i32 -> vector<8x512xf32>
    %240 = vector.broadcast %3 : vector<1x512xf32> to vector<8x512xf32>
    %241 = arith.mulf %239, %240 : vector<8x512xf32>
    %242 = arith.addf %241, %209 : vector<8x512xf32>
    %243 = arith.addf %242, %238 : vector<8x512xf32>
    %244 = vector.extract_strided_slice %55 {offsets = [0, 1536], sizes = [8, 512], strides = [1, 1]} : vector<8x2048xf32> to vector<8x512xf32>
    %245 = vector.extract_strided_slice %59 {offsets = [0, 1536], sizes = [8, 512], strides = [1, 1]} : vector<8x2048xf32> to vector<8x512xf32>
    %c0_70 = arith.constant 0 : index
    %c36 = arith.constant 36 : index
    %246 = vector.load %arg5[%c0_70, %c36] : memref<8x54xf32, #tpu.memory_space<vmem>>, vector<8x1xf32>
    %247 = vector.broadcast %246 : vector<8x1xf32> to vector<8x512xf32>
    %248 = arith.mulf %247, %244 : vector<8x512xf32>
    %c0_71 = arith.constant 0 : index
    %c37 = arith.constant 37 : index
    %249 = vector.load %arg5[%c0_71, %c37] : memref<8x54xf32, #tpu.memory_space<vmem>>, vector<8x1xf32>
    %250 = vector.broadcast %249 : vector<8x1xf32> to vector<8x512xf32>
    %251 = arith.mulf %250, %245 : vector<8x512xf32>
    %252 = arith.addf %248, %251 : vector<8x512xf32>
    %253 = vector.extract_strided_slice %47 {offsets = [0, 1536], sizes = [8, 512], strides = [1, 1]} : vector<8x4096xf32> to vector<8x512xf32>
    %254 = vector.extract_strided_slice %51 {offsets = [0, 1536], sizes = [8, 512], strides = [1, 1]} : vector<8x4096xf32> to vector<8x512xf32>
    %c0_72 = arith.constant 0 : index
    %c38 = arith.constant 38 : index
    %255 = vector.load %arg5[%c0_72, %c38] : memref<8x54xf32, #tpu.memory_space<vmem>>, vector<8x1xf32>
    %256 = vector.broadcast %255 : vector<8x1xf32> to vector<8x512xf32>
    %257 = arith.mulf %256, %253 : vector<8x512xf32>
    %c0_73 = arith.constant 0 : index
    %c39 = arith.constant 39 : index
    %258 = vector.load %arg5[%c0_73, %c39] : memref<8x54xf32, #tpu.memory_space<vmem>>, vector<8x1xf32>
    %259 = vector.broadcast %258 : vector<8x1xf32> to vector<8x512xf32>
    %260 = arith.mulf %259, %254 : vector<8x512xf32>
    %261 = arith.addf %257, %260 : vector<8x512xf32>
    %262 = arith.addf %252, %261 : vector<8x512xf32>
    %263 = vector.extract_strided_slice %47 {offsets = [0, 3584], sizes = [8, 512], strides = [1, 1]} : vector<8x4096xf32> to vector<8x512xf32>
    %264 = vector.extract_strided_slice %51 {offsets = [0, 3584], sizes = [8, 512], strides = [1, 1]} : vector<8x4096xf32> to vector<8x512xf32>
    %c0_74 = arith.constant 0 : index
    %c40 = arith.constant 40 : index
    %265 = vector.load %arg5[%c0_74, %c40] : memref<8x54xf32, #tpu.memory_space<vmem>>, vector<8x1xf32>
    %266 = vector.broadcast %265 : vector<8x1xf32> to vector<8x512xf32>
    %267 = arith.mulf %266, %263 : vector<8x512xf32>
    %c0_75 = arith.constant 0 : index
    %c41 = arith.constant 41 : index
    %268 = vector.load %arg5[%c0_75, %c41] : memref<8x54xf32, #tpu.memory_space<vmem>>, vector<8x1xf32>
    %269 = vector.broadcast %268 : vector<8x1xf32> to vector<8x512xf32>
    %270 = arith.mulf %269, %264 : vector<8x512xf32>
    %271 = arith.addf %267, %270 : vector<8x512xf32>
    %272 = arith.addf %262, %271 : vector<8x512xf32>
    %273 = vector.extract_strided_slice %55 {offsets = [0, 1024], sizes = [8, 512], strides = [1, 1]} : vector<8x2048xf32> to vector<8x512xf32>
    %274 = vector.extract_strided_slice %59 {offsets = [0, 1024], sizes = [8, 512], strides = [1, 1]} : vector<8x2048xf32> to vector<8x512xf32>
    %c0_76 = arith.constant 0 : index
    %c42 = arith.constant 42 : index
    %275 = vector.load %arg5[%c0_76, %c42] : memref<8x54xf32, #tpu.memory_space<vmem>>, vector<8x1xf32>
    %276 = vector.broadcast %275 : vector<8x1xf32> to vector<8x512xf32>
    %277 = arith.mulf %276, %273 : vector<8x512xf32>
    %c0_77 = arith.constant 0 : index
    %c43 = arith.constant 43 : index
    %278 = vector.load %arg5[%c0_77, %c43] : memref<8x54xf32, #tpu.memory_space<vmem>>, vector<8x1xf32>
    %279 = vector.broadcast %278 : vector<8x1xf32> to vector<8x512xf32>
    %280 = arith.mulf %279, %274 : vector<8x512xf32>
    %281 = arith.addf %277, %280 : vector<8x512xf32>
    %282 = vector.extract_strided_slice %47 {offsets = [0, 1024], sizes = [8, 512], strides = [1, 1]} : vector<8x4096xf32> to vector<8x512xf32>
    %283 = vector.extract_strided_slice %51 {offsets = [0, 1024], sizes = [8, 512], strides = [1, 1]} : vector<8x4096xf32> to vector<8x512xf32>
    %c0_78 = arith.constant 0 : index
    %c44 = arith.constant 44 : index
    %284 = vector.load %arg5[%c0_78, %c44] : memref<8x54xf32, #tpu.memory_space<vmem>>, vector<8x1xf32>
    %285 = vector.broadcast %284 : vector<8x1xf32> to vector<8x512xf32>
    %286 = arith.mulf %285, %282 : vector<8x512xf32>
    %c0_79 = arith.constant 0 : index
    %c45 = arith.constant 45 : index
    %287 = vector.load %arg5[%c0_79, %c45] : memref<8x54xf32, #tpu.memory_space<vmem>>, vector<8x1xf32>
    %288 = vector.broadcast %287 : vector<8x1xf32> to vector<8x512xf32>
    %289 = arith.mulf %288, %283 : vector<8x512xf32>
    %290 = arith.addf %286, %289 : vector<8x512xf32>
    %291 = arith.addf %281, %290 : vector<8x512xf32>
    %292 = vector.extract_strided_slice %47 {offsets = [0, 3072], sizes = [8, 512], strides = [1, 1]} : vector<8x4096xf32> to vector<8x512xf32>
    %293 = vector.extract_strided_slice %51 {offsets = [0, 3072], sizes = [8, 512], strides = [1, 1]} : vector<8x4096xf32> to vector<8x512xf32>
    %c0_80 = arith.constant 0 : index
    %c46 = arith.constant 46 : index
    %294 = vector.load %arg5[%c0_80, %c46] : memref<8x54xf32, #tpu.memory_space<vmem>>, vector<8x1xf32>
    %295 = vector.broadcast %294 : vector<8x1xf32> to vector<8x512xf32>
    %296 = arith.mulf %295, %292 : vector<8x512xf32>
    %c0_81 = arith.constant 0 : index
    %c47 = arith.constant 47 : index
    %297 = vector.load %arg5[%c0_81, %c47] : memref<8x54xf32, #tpu.memory_space<vmem>>, vector<8x1xf32>
    %298 = vector.broadcast %297 : vector<8x1xf32> to vector<8x512xf32>
    %299 = arith.mulf %298, %293 : vector<8x512xf32>
    %300 = arith.addf %296, %299 : vector<8x512xf32>
    %301 = arith.addf %291, %300 : vector<8x512xf32>
    %302 = vector.extract_strided_slice %55 {offsets = [0, 1536], sizes = [8, 512], strides = [1, 1]} : vector<8x2048xf32> to vector<8x512xf32>
    %303 = vector.extract_strided_slice %59 {offsets = [0, 1536], sizes = [8, 512], strides = [1, 1]} : vector<8x2048xf32> to vector<8x512xf32>
    %c0_82 = arith.constant 0 : index
    %c48 = arith.constant 48 : index
    %304 = vector.load %arg5[%c0_82, %c48] : memref<8x54xf32, #tpu.memory_space<vmem>>, vector<8x1xf32>
    %305 = vector.broadcast %304 : vector<8x1xf32> to vector<8x512xf32>
    %306 = arith.mulf %305, %302 : vector<8x512xf32>
    %c0_83 = arith.constant 0 : index
    %c49 = arith.constant 49 : index
    %307 = vector.load %arg5[%c0_83, %c49] : memref<8x54xf32, #tpu.memory_space<vmem>>, vector<8x1xf32>
    %308 = vector.broadcast %307 : vector<8x1xf32> to vector<8x512xf32>
    %309 = arith.mulf %308, %303 : vector<8x512xf32>
    %310 = arith.addf %306, %309 : vector<8x512xf32>
    %311 = vector.extract_strided_slice %47 {offsets = [0, 1536], sizes = [8, 512], strides = [1, 1]} : vector<8x4096xf32> to vector<8x512xf32>
    %312 = vector.extract_strided_slice %51 {offsets = [0, 1536], sizes = [8, 512], strides = [1, 1]} : vector<8x4096xf32> to vector<8x512xf32>
    %c0_84 = arith.constant 0 : index
    %c50 = arith.constant 50 : index
    %313 = vector.load %arg5[%c0_84, %c50] : memref<8x54xf32, #tpu.memory_space<vmem>>, vector<8x1xf32>
    %314 = vector.broadcast %313 : vector<8x1xf32> to vector<8x512xf32>
    %315 = arith.mulf %314, %311 : vector<8x512xf32>
    %c0_85 = arith.constant 0 : index
    %c51 = arith.constant 51 : index
    %316 = vector.load %arg5[%c0_85, %c51] : memref<8x54xf32, #tpu.memory_space<vmem>>, vector<8x1xf32>
    %317 = vector.broadcast %316 : vector<8x1xf32> to vector<8x512xf32>
    %318 = arith.mulf %317, %312 : vector<8x512xf32>
    %319 = arith.addf %315, %318 : vector<8x512xf32>
    %320 = arith.addf %310, %319 : vector<8x512xf32>
    %321 = vector.extract_strided_slice %47 {offsets = [0, 3584], sizes = [8, 512], strides = [1, 1]} : vector<8x4096xf32> to vector<8x512xf32>
    %322 = vector.extract_strided_slice %51 {offsets = [0, 3584], sizes = [8, 512], strides = [1, 1]} : vector<8x4096xf32> to vector<8x512xf32>
    %c0_86 = arith.constant 0 : index
    %c52 = arith.constant 52 : index
    %323 = vector.load %arg5[%c0_86, %c52] : memref<8x54xf32, #tpu.memory_space<vmem>>, vector<8x1xf32>
    %324 = vector.broadcast %323 : vector<8x1xf32> to vector<8x512xf32>
    %325 = arith.mulf %324, %321 : vector<8x512xf32>
    %c0_87 = arith.constant 0 : index
    %c53 = arith.constant 53 : index
    %326 = vector.load %arg5[%c0_87, %c53] : memref<8x54xf32, #tpu.memory_space<vmem>>, vector<8x1xf32>
    %327 = vector.broadcast %326 : vector<8x1xf32> to vector<8x512xf32>
    %328 = arith.mulf %327, %322 : vector<8x512xf32>
    %329 = arith.addf %325, %328 : vector<8x512xf32>
    %330 = arith.addf %320, %329 : vector<8x512xf32>
    %c8_i32_88 = arith.constant 8 : i32
    %331 = tpu.dynamic_rotate %272 by %c8_i32_88 dim 1 : vector<8x512xf32>, i32 -> vector<8x512xf32>
    %332 = vector.broadcast %3 : vector<1x512xf32> to vector<8x512xf32>
    %333 = arith.mulf %331, %332 : vector<8x512xf32>
    %334 = arith.addf %333, %301 : vector<8x512xf32>
    %335 = arith.addf %334, %330 : vector<8x512xf32>
    %c64_i32 = arith.constant 64 : i32
    %336 = tpu.dynamic_rotate %151 by %c64_i32 dim 1 : vector<8x512xf32>, i32 -> vector<8x512xf32>
    %337 = vector.broadcast %5 : vector<1x512xf32> to vector<8x512xf32>
    %338 = arith.mulf %336, %337 : vector<8x512xf32>
    %339 = arith.addf %338, %243 : vector<8x512xf32>
    %340 = arith.addf %339, %335 : vector<8x512xf32>
    %cst_89 = arith.constant dense<0.000000e+00> : vector<8xf32>
    %341 = vector.multi_reduction <add>, %340, %cst_89 [1] : vector<8x512xf32> to vector<8xf32>
    %342 = vector.shape_cast %341 : vector<8xf32> to vector<8x1xf32>
    %cst_90 = arith.constant 0.001953125 : f32
    %343 = vector.broadcast %cst_90 : f32 to vector<8x1xf32>
    %344 = arith.mulf %342, %343 : vector<8x1xf32>
    %345 = arith.mulf %340, %340 : vector<8x512xf32>
    %cst_91 = arith.constant dense<0.000000e+00> : vector<8xf32>
    %346 = vector.multi_reduction <add>, %345, %cst_91 [1] : vector<8x512xf32> to vector<8xf32>
    %347 = vector.shape_cast %346 : vector<8xf32> to vector<8x1xf32>
    %cst_92 = arith.constant 0.001953125 : f32
    %348 = vector.broadcast %cst_92 : f32 to vector<8x1xf32>
    %349 = arith.mulf %347, %348 : vector<8x1xf32>
    %350 = arith.mulf %344, %344 : vector<8x1xf32>
    %351 = arith.subf %349, %350 : vector<8x1xf32>
    %cst_93 = arith.constant 0.000000e+00 : f32
    %352 = vector.broadcast %cst_93 : f32 to vector<8x1xf32>
    %353 = arith.maximumf %351, %352 : vector<8x1xf32>
    %c0_94 = arith.constant 0 : index
    %c0_95 = arith.constant 0 : index
    %354 = vector.load %arg6[%c0_94, %c0_95] : memref<8x2xf32, #tpu.memory_space<vmem>>, vector<8x1xf32>
    %cst_96 = arith.constant 9.99999974E-6 : f32
    %355 = vector.broadcast %cst_96 : f32 to vector<8x1xf32>
    %356 = arith.addf %353, %355 : vector<8x1xf32>
    %357 = math.rsqrt %356 : vector<8x1xf32>
    %358 = arith.mulf %354, %357 : vector<8x1xf32>
    %c0_97 = arith.constant 0 : index
    %c1_98 = arith.constant 1 : index
    %359 = vector.load %arg6[%c0_97, %c1_98] : memref<8x2xf32, #tpu.memory_space<vmem>>, vector<8x1xf32>
    %360 = arith.mulf %344, %358 : vector<8x1xf32>
    %361 = arith.subf %359, %360 : vector<8x1xf32>
    %362 = vector.broadcast %358 : vector<8x1xf32> to vector<8x512xf32>
    %363 = arith.mulf %340, %362 : vector<8x512xf32>
    %364 = vector.broadcast %361 : vector<8x1xf32> to vector<8x512xf32>
    %365 = arith.addf %363, %364 : vector<8x512xf32>
    %cst_99 = arith.constant 0.00999999977 : f32
    %366 = vector.broadcast %cst_99 : f32 to vector<8x512xf32>
    %367 = arith.mulf %366, %365 : vector<8x512xf32>
    %368 = arith.maximumf %365, %367 : vector<8x512xf32>
    %c0_100 = arith.constant 0 : index
    %c0_101 = arith.constant 0 : index
    %369 = vector.load %arg7[%c0_100, %c0_101] : memref<4x8xbf16, #tpu.memory_space<vmem>>, vector<4x8xbf16>
    %370 = arith.truncf %368 : vector<8x512xf32> to vector<8x512xbf16>
    %cst_102 = arith.constant dense<0.000000e+00> : vector<4x512xf32>
    %371 = tpu.matmul %369, %370, %cst_102 {dimension_numbers = #tpu.dot_dimension_numbers<[1], [0], [0], [1], [0, 0, 1, 1], [], []>} : vector<4x8xbf16>, vector<8x512xbf16>, vector<4x512xf32> -> vector<4x512xf32>
    %cst_103 = arith.constant dense<0.000000e+00> : vector<4xf32>
    %372 = vector.multi_reduction <add>, %371, %cst_103 [1] : vector<4x512xf32> to vector<4xf32>
    %373 = vector.shape_cast %372 : vector<4xf32> to vector<4x1xf32>
    %cst_104 = arith.constant 0.001953125 : f32
    %374 = vector.broadcast %cst_104 : f32 to vector<4x1xf32>
    %375 = arith.mulf %373, %374 : vector<4x1xf32>
    %376 = arith.mulf %371, %371 : vector<4x512xf32>
    %cst_105 = arith.constant dense<0.000000e+00> : vector<4xf32>
    %377 = vector.multi_reduction <add>, %376, %cst_105 [1] : vector<4x512xf32> to vector<4xf32>
    %378 = vector.shape_cast %377 : vector<4xf32> to vector<4x1xf32>
    %cst_106 = arith.constant 0.001953125 : f32
    %379 = vector.broadcast %cst_106 : f32 to vector<4x1xf32>
    %380 = arith.mulf %378, %379 : vector<4x1xf32>
    %381 = arith.mulf %375, %375 : vector<4x1xf32>
    %382 = arith.subf %380, %381 : vector<4x1xf32>
    %cst_107 = arith.constant 0.000000e+00 : f32
    %383 = vector.broadcast %cst_107 : f32 to vector<4x1xf32>
    %384 = arith.maximumf %382, %383 : vector<4x1xf32>
    %c0_108 = arith.constant 0 : index
    %c0_109 = arith.constant 0 : index
    %385 = vector.load %arg8[%c0_108, %c0_109] : memref<4x2xf32, #tpu.memory_space<vmem>>, vector<4x1xf32>
    %cst_110 = arith.constant 9.99999974E-6 : f32
    %386 = vector.broadcast %cst_110 : f32 to vector<4x1xf32>
    %387 = arith.addf %384, %386 : vector<4x1xf32>
    %388 = math.rsqrt %387 : vector<4x1xf32>
    %389 = arith.mulf %385, %388 : vector<4x1xf32>
    %c0_111 = arith.constant 0 : index
    %c1_112 = arith.constant 1 : index
    %390 = vector.load %arg8[%c0_111, %c1_112] : memref<4x2xf32, #tpu.memory_space<vmem>>, vector<4x1xf32>
    %391 = arith.mulf %375, %389 : vector<4x1xf32>
    %392 = arith.subf %390, %391 : vector<4x1xf32>
    %393 = vector.broadcast %389 : vector<4x1xf32> to vector<4x512xf32>
    %394 = arith.mulf %371, %393 : vector<4x512xf32>
    %395 = vector.broadcast %392 : vector<4x1xf32> to vector<4x512xf32>
    %396 = arith.addf %394, %395 : vector<4x512xf32>
    %cst_113 = arith.constant 0.00999999977 : f32
    %397 = vector.broadcast %cst_113 : f32 to vector<4x512xf32>
    %398 = arith.mulf %397, %396 : vector<4x512xf32>
    %399 = arith.maximumf %396, %398 : vector<4x512xf32>
    %400 = vector.extract_strided_slice %8 {offsets = [0, 0], sizes = [4, 512], strides = [1, 1]} : vector<4x4096xbf16> to vector<4x512xbf16>
    %401 = arith.extf %400 : vector<4x512xbf16> to vector<4x512xf32>
    %402 = vector.extract_strided_slice %8 {offsets = [0, 512], sizes = [4, 512], strides = [1, 1]} : vector<4x4096xbf16> to vector<4x512xbf16>
    %403 = arith.extf %402 : vector<4x512xbf16> to vector<4x512xf32>
    %404 = arith.addf %401, %403 : vector<4x512xf32>
    %405 = vector.extract_strided_slice %8 {offsets = [0, 1024], sizes = [4, 512], strides = [1, 1]} : vector<4x4096xbf16> to vector<4x512xbf16>
    %406 = arith.extf %405 : vector<4x512xbf16> to vector<4x512xf32>
    %407 = arith.addf %404, %406 : vector<4x512xf32>
    %408 = vector.extract_strided_slice %8 {offsets = [0, 1536], sizes = [4, 512], strides = [1, 1]} : vector<4x4096xbf16> to vector<4x512xbf16>
    %409 = arith.extf %408 : vector<4x512xbf16> to vector<4x512xf32>
    %410 = arith.addf %407, %409 : vector<4x512xf32>
    %411 = vector.extract_strided_slice %8 {offsets = [0, 2048], sizes = [4, 512], strides = [1, 1]} : vector<4x4096xbf16> to vector<4x512xbf16>
    %412 = arith.extf %411 : vector<4x512xbf16> to vector<4x512xf32>
    %413 = arith.addf %410, %412 : vector<4x512xf32>
    %414 = vector.extract_strided_slice %8 {offsets = [0, 2560], sizes = [4, 512], strides = [1, 1]} : vector<4x4096xbf16> to vector<4x512xbf16>
    %415 = arith.extf %414 : vector<4x512xbf16> to vector<4x512xf32>
    %416 = arith.addf %413, %415 : vector<4x512xf32>
    %417 = vector.extract_strided_slice %8 {offsets = [0, 3072], sizes = [4, 512], strides = [1, 1]} : vector<4x4096xbf16> to vector<4x512xbf16>
    %418 = arith.extf %417 : vector<4x512xbf16> to vector<4x512xf32>
    %419 = arith.addf %416, %418 : vector<4x512xf32>
    %420 = vector.extract_strided_slice %8 {offsets = [0, 3584], sizes = [4, 512], strides = [1, 1]} : vector<4x4096xbf16> to vector<4x512xbf16>
    %421 = arith.extf %420 : vector<4x512xbf16> to vector<4x512xf32>
    %422 = arith.addf %419, %421 : vector<4x512xf32>
    %cst_114 = arith.constant 1.250000e-01 : f32
    %423 = vector.broadcast %cst_114 : f32 to vector<4x512xf32>
    %424 = arith.mulf %422, %423 : vector<4x512xf32>
    %425 = arith.addf %399, %424 : vector<4x512xf32>
    %c0_115 = arith.constant 0 : index
    %c0_116 = arith.constant 0 : index
    %426 = vector.load %arg9[%c0_115, %c0_116] : memref<8x4xbf16, #tpu.memory_space<vmem>>, vector<8x4xbf16>
    %427 = arith.truncf %425 : vector<4x512xf32> to vector<4x512xbf16>
    %cst_117 = arith.constant dense<0.000000e+00> : vector<8x512xf32>
    %428 = tpu.matmul %426, %427, %cst_117 {dimension_numbers = #tpu.dot_dimension_numbers<[1], [0], [0], [1], [0, 0, 1, 1], [], []>} : vector<8x4xbf16>, vector<4x512xbf16>, vector<8x512xf32> -> vector<8x512xf32>
    %cst_118 = arith.constant dense<0.000000e+00> : vector<8xf32>
    %429 = vector.multi_reduction <add>, %428, %cst_118 [1] : vector<8x512xf32> to vector<8xf32>
    %430 = vector.shape_cast %429 : vector<8xf32> to vector<8x1xf32>
    %cst_119 = arith.constant 0.001953125 : f32
    %431 = vector.broadcast %cst_119 : f32 to vector<8x1xf32>
    %432 = arith.mulf %430, %431 : vector<8x1xf32>
    %433 = arith.mulf %428, %428 : vector<8x512xf32>
    %cst_120 = arith.constant dense<0.000000e+00> : vector<8xf32>
    %434 = vector.multi_reduction <add>, %433, %cst_120 [1] : vector<8x512xf32> to vector<8xf32>
    %435 = vector.shape_cast %434 : vector<8xf32> to vector<8x1xf32>
    %cst_121 = arith.constant 0.001953125 : f32
    %436 = vector.broadcast %cst_121 : f32 to vector<8x1xf32>
    %437 = arith.mulf %435, %436 : vector<8x1xf32>
    %438 = arith.mulf %432, %432 : vector<8x1xf32>
    %439 = arith.subf %437, %438 : vector<8x1xf32>
    %cst_122 = arith.constant 0.000000e+00 : f32
    %440 = vector.broadcast %cst_122 : f32 to vector<8x1xf32>
    %441 = arith.maximumf %439, %440 : vector<8x1xf32>
    %c0_123 = arith.constant 0 : index
    %c0_124 = arith.constant 0 : index
    %442 = vector.load %arg10[%c0_123, %c0_124] : memref<8x2xf32, #tpu.memory_space<vmem>>, vector<8x1xf32>
    %cst_125 = arith.constant 9.99999974E-6 : f32
    %443 = vector.broadcast %cst_125 : f32 to vector<8x1xf32>
    %444 = arith.addf %441, %443 : vector<8x1xf32>
    %445 = math.rsqrt %444 : vector<8x1xf32>
    %446 = arith.mulf %442, %445 : vector<8x1xf32>
    %c0_126 = arith.constant 0 : index
    %c1_127 = arith.constant 1 : index
    %447 = vector.load %arg10[%c0_126, %c1_127] : memref<8x2xf32, #tpu.memory_space<vmem>>, vector<8x1xf32>
    %448 = arith.mulf %432, %446 : vector<8x1xf32>
    %449 = arith.subf %447, %448 : vector<8x1xf32>
    %450 = vector.broadcast %446 : vector<8x1xf32> to vector<8x512xf32>
    %451 = arith.mulf %428, %450 : vector<8x512xf32>
    %452 = vector.broadcast %449 : vector<8x1xf32> to vector<8x512xf32>
    %453 = arith.addf %451, %452 : vector<8x512xf32>
    %cst_128 = arith.constant 0.00999999977 : f32
    %454 = vector.broadcast %cst_128 : f32 to vector<8x512xf32>
    %455 = arith.mulf %454, %453 : vector<8x512xf32>
    %456 = arith.maximumf %453, %455 : vector<8x512xf32>
    %457 = tpu.iota {dimensions = array<i32: 0>} : vector<8x1xi32>
    %c1_i32_129 = arith.constant 1 : i32
    %458 = vector.broadcast %c1_i32_129 : i32 to vector<8x1xi32>
    %459 = arith.andi %457, %458 : vector<8x1xi32>
    %c0_i32_130 = arith.constant 0 : i32
    %460 = vector.broadcast %c0_i32_130 : i32 to vector<8x1xi32>
    %461 = arith.cmpi eq, %459, %460 : vector<8x1xi32>
    %c1_i32_131 = arith.constant 1 : i32
    %462 = tpu.dynamic_rotate %456 by %c1_i32_131 dim 0 : vector<8x512xf32>, i32 -> vector<8x512xf32>
    %463 = vector.shape_cast %461 : vector<8x1xi1> to vector<8x1xi1>
    %464 = vector.broadcast %463 : vector<8x1xi1> to vector<8x512xi1>
    %465 = arith.select %464, %456, %462 : vector<8x512xi1>, vector<8x512xf32>
    %c7_i32_132 = arith.constant 7 : i32
    %466 = tpu.dynamic_rotate %456 by %c7_i32_132 dim 0 : vector<8x512xf32>, i32 -> vector<8x512xf32>
    %467 = vector.shape_cast %461 : vector<8x1xi1> to vector<8x1xi1>
    %468 = vector.broadcast %467 : vector<8x1xi1> to vector<8x512xi1>
    %469 = arith.select %468, %466, %456 : vector<8x512xi1>, vector<8x512xf32>
    %c1_i32_133 = arith.constant 1 : i32
    %470 = tpu.dynamic_rotate %465 by %c1_i32_133 dim 1 : vector<8x512xf32>, i32 -> vector<8x512xf32>
    %471 = vector.broadcast %1 : vector<1x512xf32> to vector<8x512xf32>
    %472 = arith.mulf %470, %471 : vector<8x512xf32>
    %c511_i32 = arith.constant 511 : i32
    %473 = tpu.dynamic_rotate %465 by %c511_i32 dim 1 : vector<8x512xf32>, i32 -> vector<8x512xf32>
    %474 = vector.broadcast %2 : vector<1x512xf32> to vector<8x512xf32>
    %475 = arith.mulf %473, %474 : vector<8x512xf32>
    %c1_i32_134 = arith.constant 1 : i32
    %476 = tpu.dynamic_rotate %469 by %c1_i32_134 dim 1 : vector<8x512xf32>, i32 -> vector<8x512xf32>
    %477 = vector.broadcast %1 : vector<1x512xf32> to vector<8x512xf32>
    %478 = arith.mulf %476, %477 : vector<8x512xf32>
    %c511_i32_135 = arith.constant 511 : i32
    %479 = tpu.dynamic_rotate %469 by %c511_i32_135 dim 1 : vector<8x512xf32>, i32 -> vector<8x512xf32>
    %480 = vector.broadcast %2 : vector<1x512xf32> to vector<8x512xf32>
    %481 = arith.mulf %479, %480 : vector<8x512xf32>
    %c0_136 = arith.constant 0 : index
    %c0_137 = arith.constant 0 : index
    %482 = vector.load %arg11[%c0_136, %c0_137] : memref<8x54xf32, #tpu.memory_space<vmem>>, vector<8x1xf32>
    %483 = vector.broadcast %482 : vector<8x1xf32> to vector<8x512xf32>
    %484 = arith.mulf %483, %472 : vector<8x512xf32>
    %c0_138 = arith.constant 0 : index
    %c1_139 = arith.constant 1 : index
    %485 = vector.load %arg11[%c0_138, %c1_139] : memref<8x54xf32, #tpu.memory_space<vmem>>, vector<8x1xf32>
    %486 = vector.broadcast %485 : vector<8x1xf32> to vector<8x512xf32>
    %487 = arith.mulf %486, %478 : vector<8x512xf32>
    %488 = arith.addf %484, %487 : vector<8x512xf32>
    %c0_140 = arith.constant 0 : index
    %c2_141 = arith.constant 2 : index
    %489 = vector.load %arg11[%c0_140, %c2_141] : memref<8x54xf32, #tpu.memory_space<vmem>>, vector<8x1xf32>
    %490 = vector.broadcast %489 : vector<8x1xf32> to vector<8x512xf32>
    %491 = arith.mulf %490, %465 : vector<8x512xf32>
    %c0_142 = arith.constant 0 : index
    %c3_143 = arith.constant 3 : index
    %492 = vector.load %arg11[%c0_142, %c3_143] : memref<8x54xf32, #tpu.memory_space<vmem>>, vector<8x1xf32>
    %493 = vector.broadcast %492 : vector<8x1xf32> to vector<8x512xf32>
    %494 = arith.mulf %493, %469 : vector<8x512xf32>
    %495 = arith.addf %491, %494 : vector<8x512xf32>
    %496 = arith.addf %488, %495 : vector<8x512xf32>
    %c0_144 = arith.constant 0 : index
    %c4_145 = arith.constant 4 : index
    %497 = vector.load %arg11[%c0_144, %c4_145] : memref<8x54xf32, #tpu.memory_space<vmem>>, vector<8x1xf32>
    %498 = vector.broadcast %497 : vector<8x1xf32> to vector<8x512xf32>
    %499 = arith.mulf %498, %475 : vector<8x512xf32>
    %c0_146 = arith.constant 0 : index
    %c5_147 = arith.constant 5 : index
    %500 = vector.load %arg11[%c0_146, %c5_147] : memref<8x54xf32, #tpu.memory_space<vmem>>, vector<8x1xf32>
    %501 = vector.broadcast %500 : vector<8x1xf32> to vector<8x512xf32>
    %502 = arith.mulf %501, %481 : vector<8x512xf32>
    %503 = arith.addf %499, %502 : vector<8x512xf32>
    %504 = arith.addf %496, %503 : vector<8x512xf32>
    %c0_148 = arith.constant 0 : index
    %c6_149 = arith.constant 6 : index
    %505 = vector.load %arg11[%c0_148, %c6_149] : memref<8x54xf32, #tpu.memory_space<vmem>>, vector<8x1xf32>
    %506 = vector.broadcast %505 : vector<8x1xf32> to vector<8x512xf32>
    %507 = arith.mulf %506, %472 : vector<8x512xf32>
    %c0_150 = arith.constant 0 : index
    %c7_151 = arith.constant 7 : index
    %508 = vector.load %arg11[%c0_150, %c7_151] : memref<8x54xf32, #tpu.memory_space<vmem>>, vector<8x1xf32>
    %509 = vector.broadcast %508 : vector<8x1xf32> to vector<8x512xf32>
    %510 = arith.mulf %509, %478 : vector<8x512xf32>
    %511 = arith.addf %507, %510 : vector<8x512xf32>
    %c0_152 = arith.constant 0 : index
    %c8_153 = arith.constant 8 : index
    %512 = vector.load %arg11[%c0_152, %c8_153] : memref<8x54xf32, #tpu.memory_space<vmem>>, vector<8x1xf32>
    %513 = vector.broadcast %512 : vector<8x1xf32> to vector<8x512xf32>
    %514 = arith.mulf %513, %465 : vector<8x512xf32>
    %c0_154 = arith.constant 0 : index
    %c9_155 = arith.constant 9 : index
    %515 = vector.load %arg11[%c0_154, %c9_155] : memref<8x54xf32, #tpu.memory_space<vmem>>, vector<8x1xf32>
    %516 = vector.broadcast %515 : vector<8x1xf32> to vector<8x512xf32>
    %517 = arith.mulf %516, %469 : vector<8x512xf32>
    %518 = arith.addf %514, %517 : vector<8x512xf32>
    %519 = arith.addf %511, %518 : vector<8x512xf32>
    %c0_156 = arith.constant 0 : index
    %c10_157 = arith.constant 10 : index
    %520 = vector.load %arg11[%c0_156, %c10_157] : memref<8x54xf32, #tpu.memory_space<vmem>>, vector<8x1xf32>
    %521 = vector.broadcast %520 : vector<8x1xf32> to vector<8x512xf32>
    %522 = arith.mulf %521, %475 : vector<8x512xf32>
    %c0_158 = arith.constant 0 : index
    %c11_159 = arith.constant 11 : index
    %523 = vector.load %arg11[%c0_158, %c11_159] : memref<8x54xf32, #tpu.memory_space<vmem>>, vector<8x1xf32>
    %524 = vector.broadcast %523 : vector<8x1xf32> to vector<8x512xf32>
    %525 = arith.mulf %524, %481 : vector<8x512xf32>
    %526 = arith.addf %522, %525 : vector<8x512xf32>
    %527 = arith.addf %519, %526 : vector<8x512xf32>
    %c0_160 = arith.constant 0 : index
    %c12_161 = arith.constant 12 : index
    %528 = vector.load %arg11[%c0_160, %c12_161] : memref<8x54xf32, #tpu.memory_space<vmem>>, vector<8x1xf32>
    %529 = vector.broadcast %528 : vector<8x1xf32> to vector<8x512xf32>
    %530 = arith.mulf %529, %472 : vector<8x512xf32>
    %c0_162 = arith.constant 0 : index
    %c13_163 = arith.constant 13 : index
    %531 = vector.load %arg11[%c0_162, %c13_163] : memref<8x54xf32, #tpu.memory_space<vmem>>, vector<8x1xf32>
    %532 = vector.broadcast %531 : vector<8x1xf32> to vector<8x512xf32>
    %533 = arith.mulf %532, %478 : vector<8x512xf32>
    %534 = arith.addf %530, %533 : vector<8x512xf32>
    %c0_164 = arith.constant 0 : index
    %c14_165 = arith.constant 14 : index
    %535 = vector.load %arg11[%c0_164, %c14_165] : memref<8x54xf32, #tpu.memory_space<vmem>>, vector<8x1xf32>
    %536 = vector.broadcast %535 : vector<8x1xf32> to vector<8x512xf32>
    %537 = arith.mulf %536, %465 : vector<8x512xf32>
    %c0_166 = arith.constant 0 : index
    %c15_167 = arith.constant 15 : index
    %538 = vector.load %arg11[%c0_166, %c15_167] : memref<8x54xf32, #tpu.memory_space<vmem>>, vector<8x1xf32>
    %539 = vector.broadcast %538 : vector<8x1xf32> to vector<8x512xf32>
    %540 = arith.mulf %539, %469 : vector<8x512xf32>
    %541 = arith.addf %537, %540 : vector<8x512xf32>
    %542 = arith.addf %534, %541 : vector<8x512xf32>
    %c0_168 = arith.constant 0 : index
    %c16_169 = arith.constant 16 : index
    %543 = vector.load %arg11[%c0_168, %c16_169] : memref<8x54xf32, #tpu.memory_space<vmem>>, vector<8x1xf32>
    %544 = vector.broadcast %543 : vector<8x1xf32> to vector<8x512xf32>
    %545 = arith.mulf %544, %475 : vector<8x512xf32>
    %c0_170 = arith.constant 0 : index
    %c17_171 = arith.constant 17 : index
    %546 = vector.load %arg11[%c0_170, %c17_171] : memref<8x54xf32, #tpu.memory_space<vmem>>, vector<8x1xf32>
    %547 = vector.broadcast %546 : vector<8x1xf32> to vector<8x512xf32>
    %548 = arith.mulf %547, %481 : vector<8x512xf32>
    %549 = arith.addf %545, %548 : vector<8x512xf32>
    %550 = arith.addf %542, %549 : vector<8x512xf32>
    %c8_i32_172 = arith.constant 8 : i32
    %551 = tpu.dynamic_rotate %504 by %c8_i32_172 dim 1 : vector<8x512xf32>, i32 -> vector<8x512xf32>
    %552 = vector.broadcast %3 : vector<1x512xf32> to vector<8x512xf32>
    %553 = arith.mulf %551, %552 : vector<8x512xf32>
    %554 = arith.addf %553, %527 : vector<8x512xf32>
    %c504_i32 = arith.constant 504 : i32
    %555 = tpu.dynamic_rotate %550 by %c504_i32 dim 1 : vector<8x512xf32>, i32 -> vector<8x512xf32>
    %556 = vector.broadcast %4 : vector<1x512xf32> to vector<8x512xf32>
    %557 = arith.mulf %555, %556 : vector<8x512xf32>
    %558 = arith.addf %554, %557 : vector<8x512xf32>
    %c0_173 = arith.constant 0 : index
    %c18_174 = arith.constant 18 : index
    %559 = vector.load %arg11[%c0_173, %c18_174] : memref<8x54xf32, #tpu.memory_space<vmem>>, vector<8x1xf32>
    %560 = vector.broadcast %559 : vector<8x1xf32> to vector<8x512xf32>
    %561 = arith.mulf %560, %472 : vector<8x512xf32>
    %c0_175 = arith.constant 0 : index
    %c19_176 = arith.constant 19 : index
    %562 = vector.load %arg11[%c0_175, %c19_176] : memref<8x54xf32, #tpu.memory_space<vmem>>, vector<8x1xf32>
    %563 = vector.broadcast %562 : vector<8x1xf32> to vector<8x512xf32>
    %564 = arith.mulf %563, %478 : vector<8x512xf32>
    %565 = arith.addf %561, %564 : vector<8x512xf32>
    %c0_177 = arith.constant 0 : index
    %c20_178 = arith.constant 20 : index
    %566 = vector.load %arg11[%c0_177, %c20_178] : memref<8x54xf32, #tpu.memory_space<vmem>>, vector<8x1xf32>
    %567 = vector.broadcast %566 : vector<8x1xf32> to vector<8x512xf32>
    %568 = arith.mulf %567, %465 : vector<8x512xf32>
    %c0_179 = arith.constant 0 : index
    %c21_180 = arith.constant 21 : index
    %569 = vector.load %arg11[%c0_179, %c21_180] : memref<8x54xf32, #tpu.memory_space<vmem>>, vector<8x1xf32>
    %570 = vector.broadcast %569 : vector<8x1xf32> to vector<8x512xf32>
    %571 = arith.mulf %570, %469 : vector<8x512xf32>
    %572 = arith.addf %568, %571 : vector<8x512xf32>
    %573 = arith.addf %565, %572 : vector<8x512xf32>
    %c0_181 = arith.constant 0 : index
    %c22_182 = arith.constant 22 : index
    %574 = vector.load %arg11[%c0_181, %c22_182] : memref<8x54xf32, #tpu.memory_space<vmem>>, vector<8x1xf32>
    %575 = vector.broadcast %574 : vector<8x1xf32> to vector<8x512xf32>
    %576 = arith.mulf %575, %475 : vector<8x512xf32>
    %c0_183 = arith.constant 0 : index
    %c23_184 = arith.constant 23 : index
    %577 = vector.load %arg11[%c0_183, %c23_184] : memref<8x54xf32, #tpu.memory_space<vmem>>, vector<8x1xf32>
    %578 = vector.broadcast %577 : vector<8x1xf32> to vector<8x512xf32>
    %579 = arith.mulf %578, %481 : vector<8x512xf32>
    %580 = arith.addf %576, %579 : vector<8x512xf32>
    %581 = arith.addf %573, %580 : vector<8x512xf32>
    %c0_185 = arith.constant 0 : index
    %c24_186 = arith.constant 24 : index
    %582 = vector.load %arg11[%c0_185, %c24_186] : memref<8x54xf32, #tpu.memory_space<vmem>>, vector<8x1xf32>
    %583 = vector.broadcast %582 : vector<8x1xf32> to vector<8x512xf32>
    %584 = arith.mulf %583, %472 : vector<8x512xf32>
    %c0_187 = arith.constant 0 : index
    %c25_188 = arith.constant 25 : index
    %585 = vector.load %arg11[%c0_187, %c25_188] : memref<8x54xf32, #tpu.memory_space<vmem>>, vector<8x1xf32>
    %586 = vector.broadcast %585 : vector<8x1xf32> to vector<8x512xf32>
    %587 = arith.mulf %586, %478 : vector<8x512xf32>
    %588 = arith.addf %584, %587 : vector<8x512xf32>
    %c0_189 = arith.constant 0 : index
    %c26_190 = arith.constant 26 : index
    %589 = vector.load %arg11[%c0_189, %c26_190] : memref<8x54xf32, #tpu.memory_space<vmem>>, vector<8x1xf32>
    %590 = vector.broadcast %589 : vector<8x1xf32> to vector<8x512xf32>
    %591 = arith.mulf %590, %465 : vector<8x512xf32>
    %c0_191 = arith.constant 0 : index
    %c27_192 = arith.constant 27 : index
    %592 = vector.load %arg11[%c0_191, %c27_192] : memref<8x54xf32, #tpu.memory_space<vmem>>, vector<8x1xf32>
    %593 = vector.broadcast %592 : vector<8x1xf32> to vector<8x512xf32>
    %594 = arith.mulf %593, %469 : vector<8x512xf32>
    %595 = arith.addf %591, %594 : vector<8x512xf32>
    %596 = arith.addf %588, %595 : vector<8x512xf32>
    %c0_193 = arith.constant 0 : index
    %c28_194 = arith.constant 28 : index
    %597 = vector.load %arg11[%c0_193, %c28_194] : memref<8x54xf32, #tpu.memory_space<vmem>>, vector<8x1xf32>
    %598 = vector.broadcast %597 : vector<8x1xf32> to vector<8x512xf32>
    %599 = arith.mulf %598, %475 : vector<8x512xf32>
    %c0_195 = arith.constant 0 : index
    %c29_196 = arith.constant 29 : index
    %600 = vector.load %arg11[%c0_195, %c29_196] : memref<8x54xf32, #tpu.memory_space<vmem>>, vector<8x1xf32>
    %601 = vector.broadcast %600 : vector<8x1xf32> to vector<8x512xf32>
    %602 = arith.mulf %601, %481 : vector<8x512xf32>
    %603 = arith.addf %599, %602 : vector<8x512xf32>
    %604 = arith.addf %596, %603 : vector<8x512xf32>
    %c0_197 = arith.constant 0 : index
    %c30_198 = arith.constant 30 : index
    %605 = vector.load %arg11[%c0_197, %c30_198] : memref<8x54xf32, #tpu.memory_space<vmem>>, vector<8x1xf32>
    %606 = vector.broadcast %605 : vector<8x1xf32> to vector<8x512xf32>
    %607 = arith.mulf %606, %472 : vector<8x512xf32>
    %c0_199 = arith.constant 0 : index
    %c31_200 = arith.constant 31 : index
    %608 = vector.load %arg11[%c0_199, %c31_200] : memref<8x54xf32, #tpu.memory_space<vmem>>, vector<8x1xf32>
    %609 = vector.broadcast %608 : vector<8x1xf32> to vector<8x512xf32>
    %610 = arith.mulf %609, %478 : vector<8x512xf32>
    %611 = arith.addf %607, %610 : vector<8x512xf32>
    %c0_201 = arith.constant 0 : index
    %c32_202 = arith.constant 32 : index
    %612 = vector.load %arg11[%c0_201, %c32_202] : memref<8x54xf32, #tpu.memory_space<vmem>>, vector<8x1xf32>
    %613 = vector.broadcast %612 : vector<8x1xf32> to vector<8x512xf32>
    %614 = arith.mulf %613, %465 : vector<8x512xf32>
    %c0_203 = arith.constant 0 : index
    %c33_204 = arith.constant 33 : index
    %615 = vector.load %arg11[%c0_203, %c33_204] : memref<8x54xf32, #tpu.memory_space<vmem>>, vector<8x1xf32>
    %616 = vector.broadcast %615 : vector<8x1xf32> to vector<8x512xf32>
    %617 = arith.mulf %616, %469 : vector<8x512xf32>
    %618 = arith.addf %614, %617 : vector<8x512xf32>
    %619 = arith.addf %611, %618 : vector<8x512xf32>
    %c0_205 = arith.constant 0 : index
    %c34_206 = arith.constant 34 : index
    %620 = vector.load %arg11[%c0_205, %c34_206] : memref<8x54xf32, #tpu.memory_space<vmem>>, vector<8x1xf32>
    %621 = vector.broadcast %620 : vector<8x1xf32> to vector<8x512xf32>
    %622 = arith.mulf %621, %475 : vector<8x512xf32>
    %c0_207 = arith.constant 0 : index
    %c35_208 = arith.constant 35 : index
    %623 = vector.load %arg11[%c0_207, %c35_208] : memref<8x54xf32, #tpu.memory_space<vmem>>, vector<8x1xf32>
    %624 = vector.broadcast %623 : vector<8x1xf32> to vector<8x512xf32>
    %625 = arith.mulf %624, %481 : vector<8x512xf32>
    %626 = arith.addf %622, %625 : vector<8x512xf32>
    %627 = arith.addf %619, %626 : vector<8x512xf32>
    %c8_i32_209 = arith.constant 8 : i32
    %628 = tpu.dynamic_rotate %581 by %c8_i32_209 dim 1 : vector<8x512xf32>, i32 -> vector<8x512xf32>
    %629 = vector.broadcast %3 : vector<1x512xf32> to vector<8x512xf32>
    %630 = arith.mulf %628, %629 : vector<8x512xf32>
    %631 = arith.addf %630, %604 : vector<8x512xf32>
    %c504_i32_210 = arith.constant 504 : i32
    %632 = tpu.dynamic_rotate %627 by %c504_i32_210 dim 1 : vector<8x512xf32>, i32 -> vector<8x512xf32>
    %633 = vector.broadcast %4 : vector<1x512xf32> to vector<8x512xf32>
    %634 = arith.mulf %632, %633 : vector<8x512xf32>
    %635 = arith.addf %631, %634 : vector<8x512xf32>
    %c0_211 = arith.constant 0 : index
    %c36_212 = arith.constant 36 : index
    %636 = vector.load %arg11[%c0_211, %c36_212] : memref<8x54xf32, #tpu.memory_space<vmem>>, vector<8x1xf32>
    %637 = vector.broadcast %636 : vector<8x1xf32> to vector<8x512xf32>
    %638 = arith.mulf %637, %472 : vector<8x512xf32>
    %c0_213 = arith.constant 0 : index
    %c37_214 = arith.constant 37 : index
    %639 = vector.load %arg11[%c0_213, %c37_214] : memref<8x54xf32, #tpu.memory_space<vmem>>, vector<8x1xf32>
    %640 = vector.broadcast %639 : vector<8x1xf32> to vector<8x512xf32>
    %641 = arith.mulf %640, %478 : vector<8x512xf32>
    %642 = arith.addf %638, %641 : vector<8x512xf32>
    %c0_215 = arith.constant 0 : index
    %c38_216 = arith.constant 38 : index
    %643 = vector.load %arg11[%c0_215, %c38_216] : memref<8x54xf32, #tpu.memory_space<vmem>>, vector<8x1xf32>
    %644 = vector.broadcast %643 : vector<8x1xf32> to vector<8x512xf32>
    %645 = arith.mulf %644, %465 : vector<8x512xf32>
    %c0_217 = arith.constant 0 : index
    %c39_218 = arith.constant 39 : index
    %646 = vector.load %arg11[%c0_217, %c39_218] : memref<8x54xf32, #tpu.memory_space<vmem>>, vector<8x1xf32>
    %647 = vector.broadcast %646 : vector<8x1xf32> to vector<8x512xf32>
    %648 = arith.mulf %647, %469 : vector<8x512xf32>
    %649 = arith.addf %645, %648 : vector<8x512xf32>
    %650 = arith.addf %642, %649 : vector<8x512xf32>
    %c0_219 = arith.constant 0 : index
    %c40_220 = arith.constant 40 : index
    %651 = vector.load %arg11[%c0_219, %c40_220] : memref<8x54xf32, #tpu.memory_space<vmem>>, vector<8x1xf32>
    %652 = vector.broadcast %651 : vector<8x1xf32> to vector<8x512xf32>
    %653 = arith.mulf %652, %475 : vector<8x512xf32>
    %c0_221 = arith.constant 0 : index
    %c41_222 = arith.constant 41 : index
    %654 = vector.load %arg11[%c0_221, %c41_222] : memref<8x54xf32, #tpu.memory_space<vmem>>, vector<8x1xf32>
    %655 = vector.broadcast %654 : vector<8x1xf32> to vector<8x512xf32>
    %656 = arith.mulf %655, %481 : vector<8x512xf32>
    %657 = arith.addf %653, %656 : vector<8x512xf32>
    %658 = arith.addf %650, %657 : vector<8x512xf32>
    %c0_223 = arith.constant 0 : index
    %c42_224 = arith.constant 42 : index
    %659 = vector.load %arg11[%c0_223, %c42_224] : memref<8x54xf32, #tpu.memory_space<vmem>>, vector<8x1xf32>
    %660 = vector.broadcast %659 : vector<8x1xf32> to vector<8x512xf32>
    %661 = arith.mulf %660, %472 : vector<8x512xf32>
    %c0_225 = arith.constant 0 : index
    %c43_226 = arith.constant 43 : index
    %662 = vector.load %arg11[%c0_225, %c43_226] : memref<8x54xf32, #tpu.memory_space<vmem>>, vector<8x1xf32>
    %663 = vector.broadcast %662 : vector<8x1xf32> to vector<8x512xf32>
    %664 = arith.mulf %663, %478 : vector<8x512xf32>
    %665 = arith.addf %661, %664 : vector<8x512xf32>
    %c0_227 = arith.constant 0 : index
    %c44_228 = arith.constant 44 : index
    %666 = vector.load %arg11[%c0_227, %c44_228] : memref<8x54xf32, #tpu.memory_space<vmem>>, vector<8x1xf32>
    %667 = vector.broadcast %666 : vector<8x1xf32> to vector<8x512xf32>
    %668 = arith.mulf %667, %465 : vector<8x512xf32>
    %c0_229 = arith.constant 0 : index
    %c45_230 = arith.constant 45 : index
    %669 = vector.load %arg11[%c0_229, %c45_230] : memref<8x54xf32, #tpu.memory_space<vmem>>, vector<8x1xf32>
    %670 = vector.broadcast %669 : vector<8x1xf32> to vector<8x512xf32>
    %671 = arith.mulf %670, %469 : vector<8x512xf32>
    %672 = arith.addf %668, %671 : vector<8x512xf32>
    %673 = arith.addf %665, %672 : vector<8x512xf32>
    %c0_231 = arith.constant 0 : index
    %c46_232 = arith.constant 46 : index
    %674 = vector.load %arg11[%c0_231, %c46_232] : memref<8x54xf32, #tpu.memory_space<vmem>>, vector<8x1xf32>
    %675 = vector.broadcast %674 : vector<8x1xf32> to vector<8x512xf32>
    %676 = arith.mulf %675, %475 : vector<8x512xf32>
    %c0_233 = arith.constant 0 : index
    %c47_234 = arith.constant 47 : index
    %677 = vector.load %arg11[%c0_233, %c47_234] : memref<8x54xf32, #tpu.memory_space<vmem>>, vector<8x1xf32>
    %678 = vector.broadcast %677 : vector<8x1xf32> to vector<8x512xf32>
    %679 = arith.mulf %678, %481 : vector<8x512xf32>
    %680 = arith.addf %676, %679 : vector<8x512xf32>
    %681 = arith.addf %673, %680 : vector<8x512xf32>
    %c0_235 = arith.constant 0 : index
    %c48_236 = arith.constant 48 : index
    %682 = vector.load %arg11[%c0_235, %c48_236] : memref<8x54xf32, #tpu.memory_space<vmem>>, vector<8x1xf32>
    %683 = vector.broadcast %682 : vector<8x1xf32> to vector<8x512xf32>
    %684 = arith.mulf %683, %472 : vector<8x512xf32>
    %c0_237 = arith.constant 0 : index
    %c49_238 = arith.constant 49 : index
    %685 = vector.load %arg11[%c0_237, %c49_238] : memref<8x54xf32, #tpu.memory_space<vmem>>, vector<8x1xf32>
    %686 = vector.broadcast %685 : vector<8x1xf32> to vector<8x512xf32>
    %687 = arith.mulf %686, %478 : vector<8x512xf32>
    %688 = arith.addf %684, %687 : vector<8x512xf32>
    %c0_239 = arith.constant 0 : index
    %c50_240 = arith.constant 50 : index
    %689 = vector.load %arg11[%c0_239, %c50_240] : memref<8x54xf32, #tpu.memory_space<vmem>>, vector<8x1xf32>
    %690 = vector.broadcast %689 : vector<8x1xf32> to vector<8x512xf32>
    %691 = arith.mulf %690, %465 : vector<8x512xf32>
    %c0_241 = arith.constant 0 : index
    %c51_242 = arith.constant 51 : index
    %692 = vector.load %arg11[%c0_241, %c51_242] : memref<8x54xf32, #tpu.memory_space<vmem>>, vector<8x1xf32>
    %693 = vector.broadcast %692 : vector<8x1xf32> to vector<8x512xf32>
    %694 = arith.mulf %693, %469 : vector<8x512xf32>
    %695 = arith.addf %691, %694 : vector<8x512xf32>
    %696 = arith.addf %688, %695 : vector<8x512xf32>
    %c0_243 = arith.constant 0 : index
    %c52_244 = arith.constant 52 : index
    %697 = vector.load %arg11[%c0_243, %c52_244] : memref<8x54xf32, #tpu.memory_space<vmem>>, vector<8x1xf32>
    %698 = vector.broadcast %697 : vector<8x1xf32> to vector<8x512xf32>
    %699 = arith.mulf %698, %475 : vector<8x512xf32>
    %c0_245 = arith.constant 0 : index
    %c53_246 = arith.constant 53 : index
    %700 = vector.load %arg11[%c0_245, %c53_246] : memref<8x54xf32, #tpu.memory_space<vmem>>, vector<8x1xf32>
    %701 = vector.broadcast %700 : vector<8x1xf32> to vector<8x512xf32>
    %702 = arith.mulf %701, %481 : vector<8x512xf32>
    %703 = arith.addf %699, %702 : vector<8x512xf32>
    %704 = arith.addf %696, %703 : vector<8x512xf32>
    %c8_i32_247 = arith.constant 8 : i32
    %705 = tpu.dynamic_rotate %658 by %c8_i32_247 dim 1 : vector<8x512xf32>, i32 -> vector<8x512xf32>
    %706 = vector.broadcast %3 : vector<1x512xf32> to vector<8x512xf32>
    %707 = arith.mulf %705, %706 : vector<8x512xf32>
    %708 = arith.addf %707, %681 : vector<8x512xf32>
    %c504_i32_248 = arith.constant 504 : i32
    %709 = tpu.dynamic_rotate %704 by %c504_i32_248 dim 1 : vector<8x512xf32>, i32 -> vector<8x512xf32>
    %710 = vector.broadcast %4 : vector<1x512xf32> to vector<8x512xf32>
    %711 = arith.mulf %709, %710 : vector<8x512xf32>
    %712 = arith.addf %708, %711 : vector<8x512xf32>
    %c64_i32_249 = arith.constant 64 : i32
    %713 = tpu.dynamic_rotate %558 by %c64_i32_249 dim 1 : vector<8x512xf32>, i32 -> vector<8x512xf32>
    %714 = vector.broadcast %5 : vector<1x512xf32> to vector<8x512xf32>
    %715 = arith.mulf %713, %714 : vector<8x512xf32>
    %716 = arith.addf %715, %635 : vector<8x512xf32>
    %c448_i32 = arith.constant 448 : i32
    %717 = tpu.dynamic_rotate %712 by %c448_i32 dim 1 : vector<8x512xf32>, i32 -> vector<8x512xf32>
    %718 = vector.broadcast %6 : vector<1x512xf32> to vector<8x512xf32>
    %719 = arith.mulf %717, %718 : vector<8x512xf32>
    %720 = arith.addf %716, %719 : vector<8x512xf32>
    %cst_250 = arith.constant dense<0.000000e+00> : vector<8xf32>
    %721 = vector.multi_reduction <add>, %720, %cst_250 [1] : vector<8x512xf32> to vector<8xf32>
    %722 = vector.shape_cast %721 : vector<8xf32> to vector<8x1xf32>
    %cst_251 = arith.constant 0.001953125 : f32
    %723 = vector.broadcast %cst_251 : f32 to vector<8x1xf32>
    %724 = arith.mulf %722, %723 : vector<8x1xf32>
    %725 = arith.mulf %720, %720 : vector<8x512xf32>
    %cst_252 = arith.constant dense<0.000000e+00> : vector<8xf32>
    %726 = vector.multi_reduction <add>, %725, %cst_252 [1] : vector<8x512xf32> to vector<8xf32>
    %727 = vector.shape_cast %726 : vector<8xf32> to vector<8x1xf32>
    %cst_253 = arith.constant 0.001953125 : f32
    %728 = vector.broadcast %cst_253 : f32 to vector<8x1xf32>
    %729 = arith.mulf %727, %728 : vector<8x1xf32>
    %730 = arith.mulf %724, %724 : vector<8x1xf32>
    %731 = arith.subf %729, %730 : vector<8x1xf32>
    %cst_254 = arith.constant 0.000000e+00 : f32
    %732 = vector.broadcast %cst_254 : f32 to vector<8x1xf32>
    %733 = arith.maximumf %731, %732 : vector<8x1xf32>
    %c0_255 = arith.constant 0 : index
    %c0_256 = arith.constant 0 : index
    %734 = vector.load %arg12[%c0_255, %c0_256] : memref<8x2xf32, #tpu.memory_space<vmem>>, vector<8x1xf32>
    %cst_257 = arith.constant 9.99999974E-6 : f32
    %735 = vector.broadcast %cst_257 : f32 to vector<8x1xf32>
    %736 = arith.addf %733, %735 : vector<8x1xf32>
    %737 = math.rsqrt %736 : vector<8x1xf32>
    %738 = arith.mulf %734, %737 : vector<8x1xf32>
    %c0_258 = arith.constant 0 : index
    %c1_259 = arith.constant 1 : index
    %739 = vector.load %arg12[%c0_258, %c1_259] : memref<8x2xf32, #tpu.memory_space<vmem>>, vector<8x1xf32>
    %740 = arith.mulf %724, %738 : vector<8x1xf32>
    %741 = arith.subf %739, %740 : vector<8x1xf32>
    %742 = vector.broadcast %738 : vector<8x1xf32> to vector<8x512xf32>
    %743 = arith.mulf %720, %742 : vector<8x512xf32>
    %744 = vector.broadcast %741 : vector<8x1xf32> to vector<8x512xf32>
    %745 = arith.addf %743, %744 : vector<8x512xf32>
    %cst_260 = arith.constant 0.00999999977 : f32
    %746 = vector.broadcast %cst_260 : f32 to vector<8x512xf32>
    %747 = arith.mulf %746, %745 : vector<8x512xf32>
    %748 = arith.maximumf %745, %747 : vector<8x512xf32>
    %c0_261 = arith.constant 0 : index
    %c0_262 = arith.constant 0 : index
    %749 = vector.load %arg13[%c0_261, %c0_262] : memref<8x8xbf16, #tpu.memory_space<vmem>>, vector<8x8xbf16>
    %750 = arith.truncf %748 : vector<8x512xf32> to vector<8x512xbf16>
    %cst_263 = arith.constant dense<0.000000e+00> : vector<8x512xf32>
    %751 = tpu.matmul %749, %750, %cst_263 {dimension_numbers = #tpu.dot_dimension_numbers<[1], [0], [0], [1], [0, 0, 1, 1], [], []>} : vector<8x8xbf16>, vector<8x512xbf16>, vector<8x512xf32> -> vector<8x512xf32>
    %cst_264 = arith.constant dense<0.000000e+00> : vector<8xf32>
    %752 = vector.multi_reduction <add>, %751, %cst_264 [1] : vector<8x512xf32> to vector<8xf32>
    %753 = vector.shape_cast %752 : vector<8xf32> to vector<8x1xf32>
    %cst_265 = arith.constant 0.001953125 : f32
    %754 = vector.broadcast %cst_265 : f32 to vector<8x1xf32>
    %755 = arith.mulf %753, %754 : vector<8x1xf32>
    %756 = arith.mulf %751, %751 : vector<8x512xf32>
    %cst_266 = arith.constant dense<0.000000e+00> : vector<8xf32>
    %757 = vector.multi_reduction <add>, %756, %cst_266 [1] : vector<8x512xf32> to vector<8xf32>
    %758 = vector.shape_cast %757 : vector<8xf32> to vector<8x1xf32>
    %cst_267 = arith.constant 0.001953125 : f32
    %759 = vector.broadcast %cst_267 : f32 to vector<8x1xf32>
    %760 = arith.mulf %758, %759 : vector<8x1xf32>
    %761 = arith.mulf %755, %755 : vector<8x1xf32>
    %762 = arith.subf %760, %761 : vector<8x1xf32>
    %cst_268 = arith.constant 0.000000e+00 : f32
    %763 = vector.broadcast %cst_268 : f32 to vector<8x1xf32>
    %764 = arith.maximumf %762, %763 : vector<8x1xf32>
    %c0_269 = arith.constant 0 : index
    %c0_270 = arith.constant 0 : index
    %765 = vector.load %arg14[%c0_269, %c0_270] : memref<8x2xf32, #tpu.memory_space<vmem>>, vector<8x1xf32>
    %cst_271 = arith.constant 9.99999974E-6 : f32
    %766 = vector.broadcast %cst_271 : f32 to vector<8x1xf32>
    %767 = arith.addf %764, %766 : vector<8x1xf32>
    %768 = math.rsqrt %767 : vector<8x1xf32>
    %769 = arith.mulf %765, %768 : vector<8x1xf32>
    %c0_272 = arith.constant 0 : index
    %c1_273 = arith.constant 1 : index
    %770 = vector.load %arg14[%c0_272, %c1_273] : memref<8x2xf32, #tpu.memory_space<vmem>>, vector<8x1xf32>
    %771 = arith.mulf %755, %769 : vector<8x1xf32>
    %772 = arith.subf %770, %771 : vector<8x1xf32>
    %773 = vector.broadcast %769 : vector<8x1xf32> to vector<8x512xf32>
    %774 = arith.mulf %751, %773 : vector<8x512xf32>
    %775 = vector.broadcast %772 : vector<8x1xf32> to vector<8x512xf32>
    %776 = arith.addf %774, %775 : vector<8x512xf32>
    %cst_274 = arith.constant 0.00999999977 : f32
    %777 = vector.broadcast %cst_274 : f32 to vector<8x512xf32>
    %778 = arith.mulf %777, %776 : vector<8x512xf32>
    %779 = arith.maximumf %776, %778 : vector<8x512xf32>
    %c0_275 = arith.constant 0 : index
    %c0_276 = arith.constant 0 : index
    %c0_277 = arith.constant 0 : index
    %780 = vector.load %arg15[%c0_275, %c0_276, %c0_277] : memref<1x8x512xf32, #tpu.memory_space<vmem>>, vector<1x8x512xf32>
    %781 = vector.shape_cast %780 : vector<1x8x512xf32> to vector<8x512xf32>
    %782 = vector.shape_cast %779 : vector<8x512xf32> to vector<1x8x512xf32>
    tpu.vector_store %arg15[%c0_275, %c0_276, %c0_277], %782 {strides = array<i32>} : memref<1x8x512xf32, #tpu.memory_space<vmem>>, vector<1x8x512xf32>,
    return
  }
  func.func @transform_0(%arg0: i32) -> (i32, i32, i32) {
    %c0_i32 = arith.constant 0 : i32
    %c0_i32_0 = arith.constant 0 : i32
    %c0_i32_1 = arith.constant 0 : i32
    return %arg0, %c0_i32, %c0_i32_0 : i32, i32, i32
  }
  func.func @transform_1(%arg0: i32) -> (i32, i32) {
    %c0_i32 = arith.constant 0 : i32
    %c0_i32_0 = arith.constant 0 : i32
    %c0_i32_1 = arith.constant 0 : i32
    return %c0_i32, %c0_i32_0 : i32, i32
  }
  func.func @transform_2(%arg0: i32) -> (i32, i32) {
    %c0_i32 = arith.constant 0 : i32
    %c0_i32_0 = arith.constant 0 : i32
    %c0_i32_1 = arith.constant 0 : i32
    return %c0_i32, %c0_i32_0 : i32, i32
  }
  func.func @transform_3(%arg0: i32) -> (i32, i32) {
    %c0_i32 = arith.constant 0 : i32
    %c0_i32_0 = arith.constant 0 : i32
    %c0_i32_1 = arith.constant 0 : i32
    return %c0_i32, %c0_i32_0 : i32, i32
  }
  func.func @transform_4(%arg0: i32) -> (i32, i32) {
    %c0_i32 = arith.constant 0 : i32
    %c0_i32_0 = arith.constant 0 : i32
    %c0_i32_1 = arith.constant 0 : i32
    return %c0_i32, %c0_i32_0 : i32, i32
  }
  func.func @transform_5(%arg0: i32) -> (i32, i32) {
    %c0_i32 = arith.constant 0 : i32
    %c0_i32_0 = arith.constant 0 : i32
    %c0_i32_1 = arith.constant 0 : i32
    return %c0_i32, %c0_i32_0 : i32, i32
  }
  func.func @transform_6(%arg0: i32) -> (i32, i32) {
    %c0_i32 = arith.constant 0 : i32
    %c0_i32_0 = arith.constant 0 : i32
    %c0_i32_1 = arith.constant 0 : i32
    return %c0_i32, %c0_i32_0 : i32, i32
  }
  func.func @transform_7(%arg0: i32) -> (i32, i32) {
    %c0_i32 = arith.constant 0 : i32
    %c0_i32_0 = arith.constant 0 : i32
    %c0_i32_1 = arith.constant 0 : i32
    return %c0_i32, %c0_i32_0 : i32, i32
  }
  func.func @transform_8(%arg0: i32) -> (i32, i32) {
    %c0_i32 = arith.constant 0 : i32
    %c0_i32_0 = arith.constant 0 : i32
    %c0_i32_1 = arith.constant 0 : i32
    return %c0_i32, %c0_i32_0 : i32, i32
  }
  func.func @transform_9(%arg0: i32) -> (i32, i32) {
    %c0_i32 = arith.constant 0 : i32
    %c0_i32_0 = arith.constant 0 : i32
    %c0_i32_1 = arith.constant 0 : i32
    return %c0_i32, %c0_i32_0 : i32, i32
  }
  func.func @transform_10(%arg0: i32) -> (i32, i32) {
    %c0_i32 = arith.constant 0 : i32
    %c0_i32_0 = arith.constant 0 : i32
    %c0_i32_1 = arith.constant 0 : i32
    return %c0_i32, %c0_i32_0 : i32, i32
  }
  func.func @transform_11(%arg0: i32) -> (i32, i32) {
    %c0_i32 = arith.constant 0 : i32
    %c0_i32_0 = arith.constant 0 : i32
    %c0_i32_1 = arith.constant 0 : i32
    return %c0_i32, %c0_i32_0 : i32, i32
  }
  func.func @transform_12(%arg0: i32) -> (i32, i32) {
    %c0_i32 = arith.constant 0 : i32
    %c0_i32_0 = arith.constant 0 : i32
    %c0_i32_1 = arith.constant 0 : i32
    return %c0_i32, %c0_i32_0 : i32, i32
  }
  func.func @transform_13(%arg0: i32) -> (i32, i32) {
    %c0_i32 = arith.constant 0 : i32
    %c0_i32_0 = arith.constant 0 : i32
    %c0_i32_1 = arith.constant 0 : i32
    return %c0_i32, %c0_i32_0 : i32, i32
  }
  func.func @transform_14(%arg0: i32) -> (i32, i32, i32) {
    %c0_i32 = arith.constant 0 : i32
    %c0_i32_0 = arith.constant 0 : i32
    %c0_i32_1 = arith.constant 0 : i32
    return %arg0, %c0_i32, %c0_i32_0 : i32, i32, i32
  }
}

</mosaic_0001>

<llo_original>
// kernel: down_forward.1
$region0: #{down_forward.1}
  #allocation0 [shape = 'u32[]', space=smem, size = 0x4, offset = 0x4, fixed_abs, tag = 'smem constant byte address 0x4 - core index']
  #allocation1 [shape = 'u32[144,128]{1,0:T(1,128)}', space=vmem, size = 0x12000, scoped, tag = 'internal scratch']
  %s0 = inlined_call_operand.vmem [shape: bf16[2,4,4096], index: 0, kind: input, shape index: {}]
  %s1 = inlined_call_operand.vmem [shape: f32[8,2048], index: 1, kind: input, shape index: {}]
  %s2 = inlined_call_operand.vmem [shape: bf16[8,4], index: 2, kind: input, shape index: {}]
  %s3 = inlined_call_operand.vmem [shape: f32[8,2], index: 3, kind: input, shape index: {}]
  %s4 = inlined_call_operand.vmem [shape: f32[8,54], index: 4, kind: input, shape index: {}]
  %s5 = inlined_call_operand.vmem [shape: f32[8,2], index: 5, kind: input, shape index: {}]
  %s6 = inlined_call_operand.vmem [shape: bf16[4,8], index: 6, kind: input, shape index: {}]
  %s7 = inlined_call_operand.vmem [shape: f32[4,2], index: 7, kind: input, shape index: {}]
  %s8 = inlined_call_operand.vmem [shape: bf16[8,4], index: 8, kind: input, shape index: {}]
  %s9 = inlined_call_operand.vmem [shape: f32[8,2], index: 9, kind: input, shape index: {}]
  %s10 = inlined_call_operand.vmem [shape: f32[8,54], index: 10, kind: input, shape index: {}]
  %s11 = inlined_call_operand.vmem [shape: f32[8,2], index: 11, kind: input, shape index: {}]
  %s12 = inlined_call_operand.vmem [shape: bf16[8,8], index: 12, kind: input, shape index: {}]
  %s13 = inlined_call_operand.vmem [shape: f32[8,2], index: 13, kind: input, shape index: {}]
  %s14 = inlined_call_operand.vmem [shape: f32[2,8,512], index: 14, kind: output, shape index: {}]
  %s15 = sld [smem:[#allocation0]]
  $region89: #{down_forward.1} parent=0
    _
  %s17 = ssub.s32 1, %s15
  %s18 = scalar_select 0, %s17, %s15
  loop: start=0, step=1, limit=4
  $region2: #{down_forward.1} parent=0 // loop_pre_header
    _
  $region3: #{down_forward.1} parent=0 // loop_header
    %s20 = sphi 0, %s24
    %p21 = scmp.ge.s32.totalorder %s20, 4
    %s30 = sphi 0, %s32
    %s33 = sphi 0, %s30
    %s34 = sphi 0, %s33
    %s50 = sphi 0, %s34
    %s54 = sphi 0, %s54
    %s56 = sphi 0, %s54
    %s57 = sphi 0, %s56
    %s71 = sphi 0, %s57
    %s75 = sphi 0, %s75
    %s77 = sphi 0, %s75
    %s78 = sphi 0, %s77
    %s92 = sphi 0, %s78
    %s96 = sphi 0, %s96
    %s98 = sphi 0, %s96
    %s99 = sphi 0, %s98
    %s113 = sphi 0, %s99
    %s117 = sphi 0, %s117
    %s119 = sphi 0, %s117
    %s120 = sphi 0, %s119
    %s134 = sphi 0, %s120
    %s138 = sphi 0, %s138
    %s140 = sphi 0, %s138
    %s141 = sphi 0, %s140
    %s155 = sphi 0, %s141
    %s159 = sphi 0, %s159
    %s161 = sphi 0, %s159
    %s162 = sphi 0, %s161
    %s176 = sphi 0, %s162
    %s180 = sphi 0, %s180
    %s182 = sphi 0, %s180
    %s183 = sphi 0, %s182
    %s197 = sphi 0, %s183
    %s201 = sphi 0, %s201
    %s203 = sphi 0, %s201
    %s204 = sphi 0, %s203
    %s218 = sphi 0, %s204
    %s222 = sphi 0, %s222
    %s224 = sphi 0, %s222
    %s225 = sphi 0, %s224
    %s239 = sphi 0, %s225
    %s243 = sphi 0, %s243
    %s245 = sphi 0, %s243
    %s246 = sphi 0, %s245
    %s260 = sphi 0, %s246
    %s264 = sphi 0, %s264
    %s266 = sphi 0, %s264
    %s267 = sphi 0, %s266
    %s281 = sphi 0, %s267
    %s285 = sphi 0, %s285
    %s287 = sphi 0, %s285
    %s288 = sphi 0, %s287
    %s302 = sphi 0, %s288
    %s306 = sphi 0, %s306
    %s308 = sphi 0, %s306
    %s309 = sphi 0, %s308
    %s323 = sphi 0, %s309
    %s329 = sphi 0, %s331
    %s332 = sphi 0, %s329
    %s333 = sphi 0, %s332
    %s349 = sphi 0, %s333
  $region4: #{down_forward.1} parent=0 // loop_header_branch
    %23 = sbr.rel (%p21) target = $region8
  $region5: #{down_forward.1} parent=0 // loop_body
    %s25 = ssub.s32 %s20, 1
    %s26 = ssub.s32 %s20, 2
    %s27 = sadd.s32 %s20, 1
    %s28 = ssub.s32 %s20, %s27
    %p29 = scmp.eq.s32.totalorder %s28, 0
    %s31 = sadd.s32 %s30, 1
    %s32 = scalar_select %p29, %s30, %s31
    %p35 = pneg %p29
    %p36 = scmp.eq.s32.totalorder %s20, 1
    %p37 = por %p35, %p36
    %p38 = scmp.ne.s32.totalorder %s30, %s33
    %p39 = scmp.eq.s32.totalorder %s20, 0
    %p40 = por %p38, %p39
    %p41 = scmp.ne.s32.totalorder %s30, %s33
    %p42 = scmp.eq.s32.totalorder %s25, 1
    %p43 = por %p41, %p42
    %p44 = scmp.ne.s32.totalorder %s33, %s34
    %p45 = scmp.eq.s32.totalorder %s25, 0
    %p46 = por %p44, %p45
    %p47 = scmp.ne.s32.totalorder %s33, %s34
    %p48 = scmp.eq.s32.totalorder %s26, 1
    %p49 = por %p47, %p48
    %p51 = scmp.ne.s32.totalorder %s34, %s50
    %p52 = scmp.eq.s32.totalorder %s26, 0
    %p53 = por %p51, %p52
    %s55 = sadd.s32 %s54, 1
    %p58 = scmp.eq.s32.totalorder %s20, 1
    %p59 = scmp.ne.s32.totalorder %s54, %s56
    %p60 = scmp.eq.s32.totalorder %s20, 0
    %p61 = por %p59, %p60
    %p62 = scmp.ne.s32.totalorder %s54, %s56
    %p63 = scmp.eq.s32.totalorder %s25, 1
    %p64 = por %p62, %p63
    %p65 = scmp.ne.s32.totalorder %s56, %s57
    %p66 = scmp.eq.s32.totalorder %s25, 0
    %p67 = por %p65, %p66
    %p68 = scmp.ne.s32.totalorder %s56, %s57
    %p69 = scmp.eq.s32.totalorder %s26, 1
    %p70 = por %p68, %p69
    %p72 = scmp.ne.s32.totalorder %s57, %s71
    %p73 = scmp.eq.s32.totalorder %s26, 0
    %p74 = por %p72, %p73
    %s76 = sadd.s32 %s75, 1
    %p79 = scmp.eq.s32.totalorder %s20, 1
    %p80 = scmp.ne.s32.totalorder %s75, %s77
    %p81 = scmp.eq.s32.totalorder %s20, 0
    %p82 = por %p80, %p81
    %p83 = scmp.ne.s32.totalorder %s75, %s77
    %p84 = scmp.eq.s32.totalorder %s25, 1
    %p85 = por %p83, %p84
    %p86 = scmp.ne.s32.totalorder %s77, %s78
    %p87 = scmp.eq.s32.totalorder %s25, 0
    %p88 = por %p86, %p87
    %p89 = scmp.ne.s32.totalorder %s77, %s78
    %p90 = scmp.eq.s32.totalorder %s26, 1
    %p91 = por %p89, %p90
    %p93 = scmp.ne.s32.totalorder %s78, %s92
    %p94 = scmp.eq.s32.totalorder %s26, 0
    %p95 = por %p93, %p94
    %s97 = sadd.s32 %s96, 1
    %p100 = scmp.eq.s32.totalorder %s20, 1
    %p101 = scmp.ne.s32.totalorder %s96, %s98
    %p102 = scmp.eq.s32.totalorder %s20, 0
    %p103 = por %p101, %p102
    %p104 = scmp.ne.s32.totalorder %s96, %s98
    %p105 = scmp.eq.s32.totalorder %s25, 1
    %p106 = por %p104, %p105
    %p107 = scmp.ne.s32.totalorder %s98, %s99
    %p108 = scmp.eq.s32.totalorder %s25, 0
    %p109 = por %p107, %p108
    %p110 = scmp.ne.s32.totalorder %s98, %s99
    %p111 = scmp.eq.s32.totalorder %s26, 1
    %p112 = por %p110, %p111
    %p114 = scmp.ne.s32.totalorder %s99, %s113
    %p115 = scmp.eq.s32.totalorder %s26, 0
    %p116 = por %p114, %p115
    %s118 = sadd.s32 %s117, 1
    %p121 = scmp.eq.s32.totalorder %s20, 1
    %p122 = scmp.ne.s32.totalorder %s117, %s119
    %p123 = scmp.eq.s32.totalorder %s20, 0
    %p124 = por %p122, %p123
    %p125 = scmp.ne.s32.totalorder %s117, %s119
    %p126 = scmp.eq.s32.totalorder %s25, 1
    %p127 = por %p125, %p126
    %p128 = scmp.ne.s32.totalorder %s119, %s120
    %p129 = scmp.eq.s32.totalorder %s25, 0
    %p130 = por %p128, %p129
    %p131 = scmp.ne.s32.totalorder %s119, %s120
    %p132 = scmp.eq.s32.totalorder %s26, 1
    %p133 = por %p131, %p132
    %p135 = scmp.ne.s32.totalorder %s120, %s134
    %p136 = scmp.eq.s32.totalorder %s26, 0
    %p137 = por %p135, %p136
    %s139 = sadd.s32 %s138, 1
    %p142 = scmp.eq.s32.totalorder %s20, 1
    %p143 = scmp.ne.s32.totalorder %s138, %s140
    %p144 = scmp.eq.s32.totalorder %s20, 0
    %p145 = por %p143, %p144
    %p146 = scmp.ne.s32.totalorder %s138, %s140
    %p147 = scmp.eq.s32.totalorder %s25, 1
    %p148 = por %p146, %p147
    %p149 = scmp.ne.s32.totalorder %s140, %s141
    %p150 = scmp.eq.s32.totalorder %s25, 0
    %p151 = por %p149, %p150
    %p152 = scmp.ne.s32.totalorder %s140, %s141
    %p153 = scmp.eq.s32.totalorder %s26, 1
    %p154 = por %p152, %p153
    %p156 = scmp.ne.s32.totalorder %s141, %s155
    %p157 = scmp.eq.s32.totalorder %s26, 0
    %p158 = por %p156, %p157
    %s160 = sadd.s32 %s159, 1
    %p163 = scmp.eq.s32.totalorder %s20, 1
    %p164 = scmp.ne.s32.totalorder %s159, %s161
    %p165 = scmp.eq.s32.totalorder %s20, 0
    %p166 = por %p164, %p165
    %p167 = scmp.ne.s32.totalorder %s159, %s161
    %p168 = scmp.eq.s32.totalorder %s25, 1
    %p169 = por %p167, %p168
    %p170 = scmp.ne.s32.totalorder %s161, %s162
    %p171 = scmp.eq.s32.totalorder %s25, 0
    %p172 = por %p170, %p171
    %p173 = scmp.ne.s32.totalorder %s161, %s162
    %p174 = scmp.eq.s32.totalorder %s26, 1
    %p175 = por %p173, %p174
    %p177 = scmp.ne.s32.totalorder %s162, %s176
    %p178 = scmp.eq.s32.totalorder %s26, 0
    %p179 = por %p177, %p178
    %s181 = sadd.s32 %s180, 1
    %p184 = scmp.eq.s32.totalorder %s20, 1
    %p185 = scmp.ne.s32.totalorder %s180, %s182
    %p186 = scmp.eq.s32.totalorder %s20, 0
    %p187 = por %p185, %p186
    %p188 = scmp.ne.s32.totalorder %s180, %s182
    %p189 = scmp.eq.s32.totalorder %s25, 1
    %p190 = por %p188, %p189
    %p191 = scmp.ne.s32.totalorder %s182, %s183
    %p192 = scmp.eq.s32.totalorder %s25, 0
    %p193 = por %p191, %p192
    %p194 = scmp.ne.s32.totalorder %s182, %s183
    %p195 = scmp.eq.s32.totalorder %s26, 1
    %p196 = por %p194, %p195
    %p198 = scmp.ne.s32.totalorder %s183, %s197
    %p199 = scmp.eq.s32.totalorder %s26, 0
    %p200 = por %p198, %p199
    %s202 = sadd.s32 %s201, 1
    %p205 = scmp.eq.s32.totalorder %s20, 1
    %p206 = scmp.ne.s32.totalorder %s201, %s203
    %p207 = scmp.eq.s32.totalorder %s20, 0
    %p208 = por %p206, %p207
    %p209 = scmp.ne.s32.totalorder %s201, %s203
    %p210 = scmp.eq.s32.totalorder %s25, 1
    %p211 = por %p209, %p210
    %p212 = scmp.ne.s32.totalorder %s203, %s204
    %p213 = scmp.eq.s32.totalorder %s25, 0
    %p214 = por %p212, %p213
    %p215 = scmp.ne.s32.totalorder %s203, %s204
    %p216 = scmp.eq.s32.totalorder %s26, 1
    %p217 = por %p215, %p216
    %p219 = scmp.ne.s32.totalorder %s204, %s218
    %p220 = scmp.eq.s32.totalorder %s26, 0
    %p221 = por %p219, %p220
    %s223 = sadd.s32 %s222, 1
    %p226 = scmp.eq.s32.totalorder %s20, 1
    %p227 = scmp.ne.s32.totalorder %s222, %s224
    %p228 = scmp.eq.s32.totalorder %s20, 0
    %p229 = por %p227, %p228
    %p230 = scmp.ne.s32.totalorder %s222, %s224
    %p231 = scmp.eq.s32.totalorder %s25, 1
    %p232 = por %p230, %p231
    %p233 = scmp.ne.s32.totalorder %s224, %s225
    %p234 = scmp.eq.s32.totalorder %s25, 0
    %p235 = por %p233, %p234
    %p236 = scmp.ne.s32.totalorder %s224, %s225
    %p237 = scmp.eq.s32.totalorder %s26, 1
    %p238 = por %p236, %p237
    %p240 = scmp.ne.s32.totalorder %s225, %s239
    %p241 = scmp.eq.s32.totalorder %s26, 0
    %p242 = por %p240, %p241
    %s244 = sadd.s32 %s243, 1
    %p247 = scmp.eq.s32.totalorder %s20, 1
    %p248 = scmp.ne.s32.totalorder %s243, %s245
    %p249 = scmp.eq.s32.totalorder %s20, 0
    %p250 = por %p248, %p249
    %p251 = scmp.ne.s32.totalorder %s243, %s245
    %p252 = scmp.eq.s32.totalorder %s25, 1
    %p253 = por %p251, %p252
    %p254 = scmp.ne.s32.totalorder %s245, %s246
    %p255 = scmp.eq.s32.totalorder %s25, 0
    %p256 = por %p254, %p255
    %p257 = scmp.ne.s32.totalorder %s245, %s246
    %p258 = scmp.eq.s32.totalorder %s26, 1
    %p259 = por %p257, %p258
    %p261 = scmp.ne.s32.totalorder %s246, %s260
    %p262 = scmp.eq.s32.totalorder %s26, 0
    %p263 = por %p261, %p262
    %s265 = sadd.s32 %s264, 1
    %p268 = scmp.eq.s32.totalorder %s20, 1
    %p269 = scmp.ne.s32.totalorder %s264, %s266
    %p270 = scmp.eq.s32.totalorder %s20, 0
    %p271 = por %p269, %p270
    %p272 = scmp.ne.s32.totalorder %s264, %s266
    %p273 = scmp.eq.s32.totalorder %s25, 1
    %p274 = por %p272, %p273
    %p275 = scmp.ne.s32.totalorder %s266, %s267
    %p276 = scmp.eq.s32.totalorder %s25, 0
    %p277 = por %p275, %p276
    %p278 = scmp.ne.s32.totalorder %s266, %s267
    %p279 = scmp.eq.s32.totalorder %s26, 1
    %p280 = por %p278, %p279
    %p282 = scmp.ne.s32.totalorder %s267, %s281
    %p283 = scmp.eq.s32.totalorder %s26, 0
    %p284 = por %p282, %p283
    %s286 = sadd.s32 %s285, 1
    %p289 = scmp.eq.s32.totalorder %s20, 1
    %p290 = scmp.ne.s32.totalorder %s285, %s287
    %p291 = scmp.eq.s32.totalorder %s20, 0
    %p292 = por %p290, %p291
    %p293 = scmp.ne.s32.totalorder %s285, %s287
    %p294 = scmp.eq.s32.totalorder %s25, 1
    %p295 = por %p293, %p294
    %p296 = scmp.ne.s32.totalorder %s287, %s288
    %p297 = scmp.eq.s32.totalorder %s25, 0
    %p298 = por %p296, %p297
    %p299 = scmp.ne.s32.totalorder %s287, %s288
    %p300 = scmp.eq.s32.totalorder %s26, 1
    %p301 = por %p299, %p300
    %p303 = scmp.ne.s32.totalorder %s288, %s302
    %p304 = scmp.eq.s32.totalorder %s26, 0
    %p305 = por %p303, %p304
    %s307 = sadd.s32 %s306, 1
    %p310 = scmp.eq.s32.totalorder %s20, 1
    %p311 = scmp.ne.s32.totalorder %s306, %s308
    %p312 = scmp.eq.s32.totalorder %s20, 0
    %p313 = por %p311, %p312
    %p314 = scmp.ne.s32.totalorder %s306, %s308
    %p315 = scmp.eq.s32.totalorder %s25, 1
    %p316 = por %p314, %p315
    %p317 = scmp.ne.s32.totalorder %s308, %s309
    %p318 = scmp.eq.s32.totalorder %s25, 0
    %p319 = por %p317, %p318
    %p320 = scmp.ne.s32.totalorder %s308, %s309
    %p321 = scmp.eq.s32.totalorder %s26, 1
    %p322 = por %p320, %p321
    %p324 = scmp.ne.s32.totalorder %s309, %s323
    %p325 = scmp.eq.s32.totalorder %s26, 0
    %p326 = por %p324, %p325
    %s327 = ssub.s32 %s20, %s27
    %p328 = scmp.eq.s32.totalorder %s327, 0
    %s330 = sadd.s32 %s329, 1
    %s331 = scalar_select %p328, %s329, %s330
    %p334 = pneg %p328
    %p335 = scmp.eq.s32.totalorder %s20, 1
    %p336 = por %p334, %p335
    %p337 = scmp.ne.s32.totalorder %s329, %s332
    %p338 = scmp.eq.s32.totalorder %s20, 0
    %p339 = por %p337, %p338
    %p340 = scmp.ne.s32.totalorder %s329, %s332
    %p341 = scmp.eq.s32.totalorder %s25, 1
    %p342 = por %p340, %p341
    %p343 = scmp.ne.s32.totalorder %s332, %s333
    %p344 = scmp.eq.s32.totalorder %s25, 0
    %p345 = por %p343, %p344
    %p346 = scmp.ne.s32.totalorder %s332, %s333
    %p347 = scmp.eq.s32.totalorder %s26, 1
    %p348 = por %p346, %p347
    %p350 = scmp.ne.s32.totalorder %s333, %s349
    %p351 = scmp.eq.s32.totalorder %s26, 0
    %p352 = por %p350, %p351
    %p353 = scmp.le.s32.totalorder 1, %s20
    %p354 = scmp.lt.s32.totalorder %s20, 3
    %p355 = pnand %p353, %p354
    %p356 = pneg %p355
    // Predicated region
    $region9: #{down_forward.1} parent=5 // pred_check
      _
    $region10: #{down_forward.1} parent=5 // pred_check_branch
      %358 = sbr.rel (%p355) target = $region12
    $region11: #{down_forward.1} parent=5 // pred_region
      %s359 = ssub.s32 %s20, 1
      // Predicated region
      $region13: #{down_forward.1} parent=11 // pred_check
        %p360 = pneg %p67
      $region14: #{down_forward.1} parent=11 // pred_check_branch
        %362 = sbr.rel (%p360) target = $region16
      $region15: #{down_forward.1} parent=11 // pred_region
        _
      $region16: #{down_forward.1} parent=11 // pred_fallthru
        _
      // Predicated region
      $region17: #{down_forward.1} parent=11 // pred_check
        %p363 = pneg %p88
      $region18: #{down_forward.1} parent=11 // pred_check_branch
        %365 = sbr.rel (%p363) target = $region20
      $region19: #{down_forward.1} parent=11 // pred_region
        _
      $region20: #{down_forward.1} parent=11 // pred_fallthru
        _
      // Predicated region
      $region21: #{down_forward.1} parent=11 // pred_check
        %p366 = pneg %p109
      $region22: #{down_forward.1} parent=11 // pred_check_branch
        %368 = sbr.rel (%p366) target = $region24
      $region23: #{down_forward.1} parent=11 // pred_region
        _
      $region24: #{down_forward.1} parent=11 // pred_fallthru
        _
      // Predicated region
      $region25: #{down_forward.1} parent=11 // pred_check
        %p369 = pneg %p130
      $region26: #{down_forward.1} parent=11 // pred_check_branch
        %371 = sbr.rel (%p369) target = $region28
      $region27: #{down_forward.1} parent=11 // pred_region
        _
      $region28: #{down_forward.1} parent=11 // pred_fallthru
        _
      // Predicated region
      $region29: #{down_forward.1} parent=11 // pred_check
        %p372 = pneg %p151
      $region30: #{down_forward.1} parent=11 // pred_check_branch
        %374 = sbr.rel (%p372) target = $region32
      $region31: #{down_forward.1} parent=11 // pred_region
        _
      $region32: #{down_forward.1} parent=11 // pred_fallthru
        _
      // Predicated region
      $region33: #{down_forward.1} parent=11 // pred_check
        %p375 = pneg %p172
      $region34: #{down_forward.1} parent=11 // pred_check_branch
        %377 = sbr.rel (%p375) target = $region36
      $region35: #{down_forward.1} parent=11 // pred_region
        _
      $region36: #{down_forward.1} parent=11 // pred_fallthru
        _
      // Predicated region
      $region37: #{down_forward.1} parent=11 // pred_check
        %p378 = pneg %p193
      $region38: #{down_forward.1} parent=11 // pred_check_branch
        %380 = sbr.rel (%p378) target = $region40
      $region39: #{down_forward.1} parent=11 // pred_region
        _
      $region40: #{down_forward.1} parent=11 // pred_fallthru
        _
      // Predicated region
      $region41: #{down_forward.1} parent=11 // pred_check
        %p381 = pneg %p214
      $region42: #{down_forward.1} parent=11 // pred_check_branch
        %383 = sbr.rel (%p381) target = $region44
      $region43: #{down_forward.1} parent=11 // pred_region
        _
      $region44: #{down_forward.1} parent=11 // pred_fallthru
        _
      // Predicated region
      $region45: #{down_forward.1} parent=11 // pred_check
        %p384 = pneg %p235
      $region46: #{down_forward.1} parent=11 // pred_check_branch
        %386 = sbr.rel (%p384) target = $region48
      $region47: #{down_forward.1} parent=11 // pred_region
        _
      $region48: #{down_forward.1} parent=11 // pred_fallthru
        _
      // Predicated region
      $region49: #{down_forward.1} parent=11 // pred_check
        %p387 = pneg %p256
      $region50: #{down_forward.1} parent=11 // pred_check_branch
        %389 = sbr.rel (%p387) target = $region52
      $region51: #{down_forward.1} parent=11 // pred_region
        _
      $region52: #{down_forward.1} parent=11 // pred_fallthru
        _
      // Predicated region
      $region53: #{down_forward.1} parent=11 // pred_check
        %p390 = pneg %p277
      $region54: #{down_forward.1} parent=11 // pred_check_branch
        %392 = sbr.rel (%p390) target = $region56
      $region55: #{down_forward.1} parent=11 // pred_region
        _
      $region56: #{down_forward.1} parent=11 // pred_fallthru
        _
      // Predicated region
      $region57: #{down_forward.1} parent=11 // pred_check
        %p393 = pneg %p298
      $region58: #{down_forward.1} parent=11 // pred_check_branch
        %395 = sbr.rel (%p393) target = $region60
      $region59: #{down_forward.1} parent=11 // pred_region
        _
      $region60: #{down_forward.1} parent=11 // pred_fallthru
        _
      // Predicated region
      $region61: #{down_forward.1} parent=11 // pred_check
        %p396 = pneg %p319
      $region62: #{down_forward.1} parent=11 // pred_check_branch
        %398 = sbr.rel (%p396) target = $region64
      $region63: #{down_forward.1} parent=11 // pred_region
        _
      $region64: #{down_forward.1} parent=11 // pred_fallthru
        _
    $region12: #{down_forward.1} parent=5 // pred_fallthru
      _
    %p399 = scmp.lt.s32.totalorder %s20, 2
    // Predicated region
    $region65: #{down_forward.1} parent=5 // pred_check
      %p400 = pneg %p399
    $region66: #{down_forward.1} parent=5 // pred_check_branch
      %402 = sbr.rel (%p400) target = $region68
    $region67: #{down_forward.1} parent=5 // pred_region
      // Predicated region
      $region69: #{down_forward.1} parent=67 // pred_check
        %p403 = pneg %p40
      $region70: #{down_forward.1} parent=67 // pred_check_branch
        %405 = sbr.rel (%p403) target = $region72
      $region71: #{down_forward.1} parent=67 // pred_region
        %p406 = scmp.lt.s32.totalorder %s20, 1
        %s407 = scalar_select %p406, %s20, 1
        %s408 = smul.addr %s407, 32
        %s409 = smul.addr %s408, 2
        %s410 = scalar_lea.vmem %s0, %s409
      $region72: #{down_forward.1} parent=67 // pred_fallthru
        _
    $region68: #{down_forward.1} parent=5 // pred_fallthru
      _
    %p411 = scmp.le.s32.totalorder 1, %s20
    %p412 = scmp.lt.s32.totalorder %s20, 3
    %p413 = pnand %p411, %p412
    %p414 = pneg %p413
    // Predicated region
    $region73: #{down_forward.1} parent=5 // pred_check
      _
    $region74: #{down_forward.1} parent=5 // pred_check_branch
      %416 = sbr.rel (%p413) target = $region76
    $region75: #{down_forward.1} parent=5 // pred_region
      %s417 = ssub.s32 %s20, 1
      %p418 = scmp.lt.s32.totalorder %s25, 1
      %s419 = scalar_select %p418, %s25, 1
      %s420 = smul.addr %s419, 32
      %s421 = smul.addr %s420, 2
      %s422 = scalar_lea.vmem %s0, %s421
      %p423 = pneg %p46
      %p424 = pneg %p43
      %p425 = pneg %p67
      %p426 = pneg %p64
      %p427 = pneg %p88
      %p428 = pneg %p85
      %p429 = pneg %p109
      %p430 = pneg %p106
      %p431 = pneg %p130
      %p432 = pneg %p127
      %p433 = pneg %p151
      %p434 = pneg %p148
      %p435 = pneg %p172
      %p436 = pneg %p169
      %p437 = pneg %p193
      %p438 = pneg %p190
      %p439 = pneg %p214
      %p440 = pneg %p211
      %p441 = pneg %p235
      %p442 = pneg %p232
      %p443 = pneg %p256
      %p444 = pneg %p253
      %p445 = pneg %p277
      %p446 = pneg %p274
      %p447 = pneg %p298
      %p448 = pneg %p295
      %p449 = pneg %p319
      %p450 = pneg %p316
      %p451 = pneg %p345
      %p452 = pneg %p342
      %p453 = scmp.lt.s32.totalorder %s25, 1
      %s454 = scalar_select %p453, %s25, 1
      %s455 = smul.addr %s454, 4
      %s456 = smul.addr %s455, 8
      %s457 = scalar_lea.vmem %s14, %s456
      %p458 = scmp.lt.s32.totalorder %s25, 1
      %s459 = scalar_select %p458, %s25, 1
      %s460 = smul.addr %s459, 32
      %s461 = smul.addr %s460, 2
      %s462 = scalar_lea.vmem %s0, %s461
      %p463 = scmp.lt.s32.totalorder %s25, 1
      %s464 = scalar_select %p463, %s25, 1
      %s465 = smul.addr %s464, 4
      %s466 = smul.addr %s465, 8
      %s467 = scalar_lea.vmem %s14, %s466
      %v469 = vld [vmem:[%s1] ss:$8 sm:$0xf]
      %v470 = vld [vmem:[%s1] ss:$8 sm:$0xf0]
      %v471 = vor.u32 %v469, %v470
      %s472 = scalar_lea.vmem %s1, 64
      %v473 = vld [vmem:[%s472] ss:$8 sm:$0xf]
      %v474 = vld [vmem:[%s472] ss:$8 sm:$0xf0]
      %v475 = vor.u32 %v473, %v474
      %v476 = vld [vmem:[%s1] ss:$8 sm:$0xf]
      %s477 = scalar_lea.vmem %s1, 1
      %v478 = vld [vmem:[%s477] ss:$8 sm:$0xf]
      %s479 = scalar_lea.vmem %s1, 2
      %v480 = vld [vmem:[%s479] ss:$8 sm:$0xf]
      %s481 = scalar_lea.vmem %s1, 3
      %v482 = vld [vmem:[%s481] ss:$8 sm:$0xf]
      %s483 = scalar_lea.vmem %s1, 4
      %v484 = vld [vmem:[%s483] ss:$8 sm:$0xf]
      %s485 = scalar_lea.vmem %s1, 5
      %v486 = vld [vmem:[%s485] ss:$8 sm:$0xf]
      %v487 = vld [vmem:[%s462] sm:$0xff]
      %v488 = vld [vmem:[%s462 + $0x8] sm:$0xff]
      %v489 = vld [vmem:[%s462 + $0x10] sm:$0xff]
      %v490 = vld [vmem:[%s462 + $0x18] sm:$0xff]
      %v491 = vld [vmem:[%s462 + $0x20] sm:$0xff]
      %v492 = vld [vmem:[%s462 + $0x28] sm:$0xff]
      %v493 = vld [vmem:[%s462 + $0x30] sm:$0xff]
      %v494 = vld [vmem:[%s462 + $0x38] sm:$0xff]
      %v495 = vld [vmem:[%s2] sm:$0xf]
      %v504 = vcombine.high %v487, %v487
      %v506 = vunpack.c.l.s4 1983009808
      %v507 = vunpack.c.0.s8 %v506
      %v508 = vlaneseq
      %v509 = vshrl.u32 %v508, 7
      %v510 = vsub.s32 %v507, %v509
      %v511 = vrot.slane %v487, %v510
      %v513 = vunpack.c.l.s4 1983009808
      %v514 = vunpack.c.0.s8 %v513
      %v515 = vlaneseq
      %v516 = vshrl.u32 %v515, 7
      %v517 = vsub.s32 %v514, %v516
      %v518 = vrot.slane %v504, %v517
      %v519 = vcombine.high %v511, %v511
      %v520 = vcombine.high %v518, %v518
      %v521 = vcombine.high %v488, %v488
      %v523 = vunpack.c.l.s4 1983009808
      %v524 = vunpack.c.0.s8 %v523
      %v525 = vlaneseq
      %v526 = vshrl.u32 %v525, 7
      %v527 = vsub.s32 %v524, %v526
      %v528 = vrot.slane %v488, %v527
      %v530 = vunpack.c.l.s4 1983009808
      %v531 = vunpack.c.0.s8 %v530
      %v532 = vlaneseq
      %v533 = vshrl.u32 %v532, 7
      %v534 = vsub.s32 %v531, %v533
      %v535 = vrot.slane %v521, %v534
      %v536 = vcombine.high %v528, %v528
      %v537 = vcombine.high %v535, %v535
      %v538 = vcombine.high %v489, %v489
      %v540 = vunpack.c.l.s4 1983009808
      %v541 = vunpack.c.0.s8 %v540
      %v542 = vlaneseq
      %v543 = vshrl.u32 %v542, 7
      %v544 = vsub.s32 %v541, %v543
      %v545 = vrot.slane %v489, %v544
      %v547 = vunpack.c.l.s4 1983009808
      %v548 = vunpack.c.0.s8 %v547
      %v549 = vlaneseq
      %v550 = vshrl.u32 %v549, 7
      %v551 = vsub.s32 %v548, %v550
      %v552 = vrot.slane %v538, %v551
      %v553 = vcombine.high %v545, %v545
      %v554 = vcombine.high %v552, %v552
      %v555 = vcombine.high %v490, %v490
      %v557 = vunpack.c.l.s4 1983009808
      %v558 = vunpack.c.0.s8 %v557
      %v559 = vlaneseq
      %v560 = vshrl.u32 %v559, 7
      %v561 = vsub.s32 %v558, %v560
      %v562 = vrot.slane %v490, %v561
      %v564 = vunpack.c.l.s4 1983009808
      %v565 = vunpack.c.0.s8 %v564
      %v566 = vlaneseq
      %v567 = vshrl.u32 %v566, 7
      %v568 = vsub.s32 %v565, %v567
      %v569 = vrot.slane %v555, %v568
      %v570 = vcombine.high %v562, %v562
      %v571 = vcombine.high %v569, %v569
      %v572 = vcombine.high %v491, %v491
      %v574 = vunpack.c.l.s4 1983009808
      %v575 = vunpack.c.0.s8 %v574
      %v576 = vlaneseq
      %v577 = vshrl.u32 %v576, 7
      %v578 = vsub.s32 %v575, %v577
      %v579 = vrot.slane %v491, %v578
      %v581 = vunpack.c.l.s4 1983009808
      %v582 = vunpack.c.0.s8 %v581
      %v583 = vlaneseq
      %v584 = vshrl.u32 %v583, 7
      %v585 = vsub.s32 %v582, %v584
      %v586 = vrot.slane %v572, %v585
      %v587 = vcombine.high %v579, %v579
      %v588 = vcombine.high %v586, %v586
      %v589 = vcombine.high %v492, %v492
      %v591 = vunpack.c.l.s4 1983009808
      %v592 = vunpack.c.0.s8 %v591
      %v593 = vlaneseq
      %v594 = vshrl.u32 %v593, 7
      %v595 = vsub.s32 %v592, %v594
      %v596 = vrot.slane %v492, %v595
      %v598 = vunpack.c.l.s4 1983009808
      %v599 = vunpack.c.0.s8 %v598
      %v600 = vlaneseq
      %v601 = vshrl.u32 %v600, 7
      %v602 = vsub.s32 %v599, %v601
      %v603 = vrot.slane %v589, %v602
      %v604 = vcombine.high %v596, %v596
      %v605 = vcombine.high %v603, %v603
      %v606 = vcombine.high %v493, %v493
      %v608 = vunpack.c.l.s4 1983009808
      %v609 = vunpack.c.0.s8 %v608
      %v610 = vlaneseq
      %v611 = vshrl.u32 %v610, 7
      %v612 = vsub.s32 %v609, %v611
      %v613 = vrot.slane %v493, %v612
      %v615 = vunpack.c.l.s4 1983009808
      %v616 = vunpack.c.0.s8 %v615
      %v617 = vlaneseq
      %v618 = vshrl.u32 %v617, 7
      %v619 = vsub.s32 %v616, %v618
      %v620 = vrot.slane %v606, %v619
      %v621 = vcombine.high %v613, %v613
      %v622 = vcombine.high %v620, %v620
      %v623 = vcombine.high %v494, %v494
      %v625 = vunpack.c.l.s4 1983009808
      %v626 = vunpack.c.0.s8 %v625
      %v627 = vlaneseq
      %v628 = vshrl.u32 %v627, 7
      %v629 = vsub.s32 %v626, %v628
      %v630 = vrot.slane %v494, %v629
      %v632 = vunpack.c.l.s4 1983009808
      %v633 = vunpack.c.0.s8 %v632
      %v634 = vlaneseq
      %v635 = vshrl.u32 %v634, 7
      %v636 = vsub.s32 %v633, %v635
      %v637 = vrot.slane %v623, %v636
      %v638 = vcombine.high %v630, %v630
      %v639 = vcombine.high %v637, %v637
      %vm640 = vcmask 31744
      %v642 = vsel %vm640, %v495, 0
      %vm644 = vcmask 1041408
      %v646 = vsel %vm644, %v511, 0
      %v649 = vsel %vm644, %v519, 0
      %v652 = vsel %vm644, %v518, 0
      %v655 = vsel %vm644, %v520, 0
      %v658 = vsel %vm644, %v528, 0
      %v661 = vsel %vm644, %v536, 0
      %v664 = vsel %vm644, %v535, 0
      %v667 = vsel %vm644, %v537, 0
      %v670 = vsel %vm644, %v545, 0
      %v673 = vsel %vm644, %v553, 0
      %v676 = vsel %vm644, %v552, 0
      %v679 = vsel %vm644, %v554, 0
      %v682 = vsel %vm644, %v562, 0
      %v685 = vsel %vm644, %v570, 0
      %v688 = vsel %vm644, %v569, 0
      %v691 = vsel %vm644, %v571, 0
      %v694 = vsel %vm644, %v579, 0
      %v697 = vsel %vm644, %v587, 0
      %v700 = vsel %vm644, %v586, 0
      %v703 = vsel %vm644, %v588, 0
      %v706 = vsel %vm644, %v596, 0
      %v709 = vsel %vm644, %v604, 0
      %v712 = vsel %vm644, %v603, 0
      %v715 = vsel %vm644, %v605, 0
      %v718 = vsel %vm644, %v613, 0
      %v721 = vsel %vm644, %v621, 0
      %v724 = vsel %vm644, %v620, 0
      %v727 = vsel %vm644, %v622, 0
      %v730 = vsel %vm644, %v630, 0
      %v733 = vsel %vm644, %v638, 0
      %v736 = vsel %vm644, %v637, 0
      %v739 = vsel %vm644, %v639, 0
      %741 = vmatprep.subr.bf16.mxu0 %v649
      %742 = vmatpush1.bf16.msra.mxu0 %v646
      %743 = vmatprep.subr.bf16.mxu0 0
      %744 = vmatpush1.bf16.msra.mxu0 0
      %745 = vmatprep.subr.bf16.mxu0 0
      %746 = vmatpush1.bf16.msra.mxu0 0
      %747 = vmatprep.subr.bf16.mxu0 0
      %748 = vmatpush1.bf16.msra.mxu0 0
      %749 = vmatprep.subr.bf16.mxu0 0
      %750 = vmatpush1.bf16.msra.mxu0 0
      %751 = vmatprep.subr.bf16.mxu0 0
      %752 = vmatpush1.bf16.msra.mxu0 0
      %753 = vmatprep.subr.bf16.mxu0 0
      %754 = vmatpush1.bf16.msra.mxu0 0
      %755 = vmatprep.subr.bf16.mxu0 0
      %756 = vmatpush1.bf16.msra.mxu0 0
      %757 = vmatprep.subr.bf16.mxu0 0
      %758 = vmatpush1.bf16.msra.mxu0 0
      %759 = vmatprep.subr.bf16.mxu0 0
      %760 = vmatpush1.bf16.msra.mxu0 0
      %761 = vmatprep.subr.bf16.mxu0 0
      %762 = vmatpush1.bf16.msra.mxu0 0
      %763 = vmatprep.subr.bf16.mxu0 0
      %764 = vmatpush1.bf16.msra.mxu0 0
      %765 = vmatprep.subr.bf16.mxu0 0
      %766 = vmatpush1.bf16.msra.mxu0 0
      %767 = vmatprep.subr.bf16.mxu0 0
      %768 = vmatpush1.bf16.msra.mxu0 0
      %769 = vmatprep.subr.bf16.mxu0 0
      %770 = vmatpush1.bf16.msra.mxu0 0
      %771 = vmatprep.subr.bf16.mxu0 0
      %772 = vmatpush1.bf16.msra.mxu0 0
      %773 = vmatprep.mubr.bf16.mxu0 0
      %774 = vmatmul.mubr.bf16.gmra.mrb[0].mxu0 %v642
      %v775 = vpop.f32.mrb[0].mxu0
      %v776 = vadd.f32 0.0, %v775
      %v777 = vpop.f32.mrb[0].mxu0
      %v778 = vadd.f32 0.0, %v777
      %v779 = vpop.f32.mrb[0].mxu0
      %v780 = vpop.f32.mrb[0].mxu0
      %781 = vdwg.mxu0
      %782 = vmatprep.subr.bf16.mxu0 %v655
      %783 = vmatpush1.bf16.msra.mxu0 %v652
      %784 = vmatprep.subr.bf16.mxu0 0
      %785 = vmatpush1.bf16.msra.mxu0 0
      %786 = vmatprep.subr.bf16.mxu0 0
      %787 = vmatpush1.bf16.msra.mxu0 0
      %788 = vmatprep.subr.bf16.mxu0 0
      %789 = vmatpush1.bf16.msra.mxu0 0
      %790 = vmatprep.subr.bf16.mxu0 0
      %791 = vmatpush1.bf16.msra.mxu0 0
      %792 = vmatprep.subr.bf16.mxu0 0
      %793 = vmatpush1.bf16.msra.mxu0 0
      %794 = vmatprep.subr.bf16.mxu0 0
      %795 = vmatpush1.bf16.msra.mxu0 0
      %796 = vmatprep.subr.bf16.mxu0 0
      %797 = vmatpush1.bf16.msra.mxu0 0
      %798 = vmatprep.subr.bf16.mxu0 0
      %799 = vmatpush1.bf16.msra.mxu0 0
      %800 = vmatprep.subr.bf16.mxu0 0
      %801 = vmatpush1.bf16.msra.mxu0 0
      %802 = vmatprep.subr.bf16.mxu0 0
      %803 = vmatpush1.bf16.msra.mxu0 0
      %804 = vmatprep.subr.bf16.mxu0 0
      %805 = vmatpush1.bf16.msra.mxu0 0
      %806 = vmatprep.subr.bf16.mxu0 0
      %807 = vmatpush1.bf16.msra.mxu0 0
      %808 = vmatprep.subr.bf16.mxu0 0
      %809 = vmatpush1.bf16.msra.mxu0 0
      %810 = vmatprep.subr.bf16.mxu0 0
      %811 = vmatpush1.bf16.msra.mxu0 0
      %812 = vmatprep.subr.bf16.mxu0 0
      %813 = vmatpush1.bf16.msra.mxu0 0
      %814 = vmatprep.mubr.bf16.mxu0 0
      %815 = vmatmul.mubr.bf16.gmra.mrb[0].mxu0 %v642
      %v816 = vpop.f32.mrb[0].mxu0
      %v817 = vadd.f32 0.0, %v816
      %v818 = vpop.f32.mrb[0].mxu0
      %v819 = vadd.f32 0.0, %v818
      %v820 = vpop.f32.mrb[0].mxu0
      %v821 = vpop.f32.mrb[0].mxu0
      %822 = vdwg.mxu0
      %823 = vmatprep.subr.bf16.mxu0 %v661
      %824 = vmatpush1.bf16.msra.mxu0 %v658
      %825 = vmatprep.subr.bf16.mxu0 0
      %826 = vmatpush1.bf16.msra.mxu0 0
      %827 = vmatprep.subr.bf16.mxu0 0
      %828 = vmatpush1.bf16.msra.mxu0 0
      %829 = vmatprep.subr.bf16.mxu0 0
      %830 = vmatpush1.bf16.msra.mxu0 0
      %831 = vmatprep.subr.bf16.mxu0 0
      %832 = vmatpush1.bf16.msra.mxu0 0
      %833 = vmatprep.subr.bf16.mxu0 0
      %834 = vmatpush1.bf16.msra.mxu0 0
      %835 = vmatprep.subr.bf16.mxu0 0
      %836 = vmatpush1.bf16.msra.mxu0 0
      %837 = vmatprep.subr.bf16.mxu0 0
      %838 = vmatpush1.bf16.msra.mxu0 0
      %839 = vmatprep.subr.bf16.mxu0 0
      %840 = vmatpush1.bf16.msra.mxu0 0
      %841 = vmatprep.subr.bf16.mxu0 0
      %842 = vmatpush1.bf16.msra.mxu0 0
      %843 = vmatprep.subr.bf16.mxu0 0
      %844 = vmatpush1.bf16.msra.mxu0 0
      %845 = vmatprep.subr.bf16.mxu0 0
      %846 = vmatpush1.bf16.msra.mxu0 0
      %847 = vmatprep.subr.bf16.mxu0 0
      %848 = vmatpush1.bf16.msra.mxu0 0
      %849 = vmatprep.subr.bf16.mxu0 0
      %850 = vmatpush1.bf16.msra.mxu0 0
      %851 = vmatprep.subr.bf16.mxu0 0
      %852 = vmatpush1.bf16.msra.mxu0 0
      %853 = vmatprep.subr.bf16.mxu0 0
      %854 = vmatpush1.bf16.msra.mxu0 0
      %855 = vmatprep.mubr.bf16.mxu0 0
      %856 = vmatmul.mubr.bf16.gmra.mrb[0].mxu0 %v642
      %v857 = vpop.f32.mrb[0].mxu0
      %v858 = vadd.f32 0.0, %v857
      %v859 = vpop.f32.mrb[0].mxu0
      %v860 = vadd.f32 0.0, %v859
      %v861 = vpop.f32.mrb[0].mxu0
      %v862 = vpop.f32.mrb[0].mxu0
      %863 = vdwg.mxu0
      %864 = vmatprep.subr.bf16.mxu0 %v667
      %865 = vmatpush1.bf16.msra.mxu0 %v664
      %866 = vmatprep.subr.bf16.mxu0 0
      %867 = vmatpush1.bf16.msra.mxu0 0
      %868 = vmatprep.subr.bf16.mxu0 0
      %869 = vmatpush1.bf16.msra.mxu0 0
      %870 = vmatprep.subr.bf16.mxu0 0
      %871 = vmatpush1.bf16.msra.mxu0 0
      %872 = vmatprep.subr.bf16.mxu0 0
      %873 = vmatpush1.bf16.msra.mxu0 0
      %874 = vmatprep.subr.bf16.mxu0 0
      %875 = vmatpush1.bf16.msra.mxu0 0
      %876 = vmatprep.subr.bf16.mxu0 0
      %877 = vmatpush1.bf16.msra.mxu0 0
      %878 = vmatprep.subr.bf16.mxu0 0
      %879 = vmatpush1.bf16.msra.mxu0 0
      %880 = vmatprep.subr.bf16.mxu0 0
      %881 = vmatpush1.bf16.msra.mxu0 0
      %882 = vmatprep.subr.bf16.mxu0 0
      %883 = vmatpush1.bf16.msra.mxu0 0
      %884 = vmatprep.subr.bf16.mxu0 0
      %885 = vmatpush1.bf16.msra.mxu0 0
      %886 = vmatprep.subr.bf16.mxu0 0
      %887 = vmatpush1.bf16.msra.mxu0 0
      %888 = vmatprep.subr.bf16.mxu0 0
      %889 = vmatpush1.bf16.msra.mxu0 0
      %890 = vmatprep.subr.bf16.mxu0 0
      %891 = vmatpush1.bf16.msra.mxu0 0
      %892 = vmatprep.subr.bf16.mxu0 0
      %893 = vmatpush1.bf16.msra.mxu0 0
      %894 = vmatprep.subr.bf16.mxu0 0
      %895 = vmatpush1.bf16.msra.mxu0 0
      %896 = vmatprep.mubr.bf16.mxu0 0
      %897 = vmatmul.mubr.bf16.gmra.mrb[0].mxu0 %v642
      %v898 = vpop.f32.mrb[0].mxu0
      %v899 = vadd.f32 0.0, %v898
      %v900 = vpop.f32.mrb[0].mxu0
      %v901 = vadd.f32 0.0, %v900
      %v902 = vpop.f32.mrb[0].mxu0
      %v903 = vpop.f32.mrb[0].mxu0
      %904 = vdwg.mxu0
      %905 = vmatprep.subr.bf16.mxu0 %v673
      %906 = vmatpush1.bf16.msra.mxu0 %v670
      %907 = vmatprep.subr.bf16.mxu0 0
      %908 = vmatpush1.bf16.msra.mxu0 0
      %909 = vmatprep.subr.bf16.mxu0 0
      %910 = vmatpush1.bf16.msra.mxu0 0
      %911 = vmatprep.subr.bf16.mxu0 0
      %912 = vmatpush1.bf16.msra.mxu0 0
      %913 = vmatprep.subr.bf16.mxu0 0
      %914 = vmatpush1.bf16.msra.mxu0 0
      %915 = vmatprep.subr.bf16.mxu0 0
      %916 = vmatpush1.bf16.msra.mxu0 0
      %917 = vmatprep.subr.bf16.mxu0 0
      %918 = vmatpush1.bf16.msra.mxu0 0
      %919 = vmatprep.subr.bf16.mxu0 0
      %920 = vmatpush1.bf16.msra.mxu0 0
      %921 = vmatprep.subr.bf16.mxu0 0
      %922 = vmatpush1.bf16.msra.mxu0 0
      %923 = vmatprep.subr.bf16.mxu0 0
      %924 = vmatpush1.bf16.msra.mxu0 0
      %925 = vmatprep.subr.bf16.mxu0 0
      %926 = vmatpush1.bf16.msra.mxu0 0
      %927 = vmatprep.subr.bf16.mxu0 0
      %928 = vmatpush1.bf16.msra.mxu0 0
      %929 = vmatprep.subr.bf16.mxu0 0
      %930 = vmatpush1.bf16.msra.mxu0 0
      %931 = vmatprep.subr.bf16.mxu0 0
      %932 = vmatpush1.bf16.msra.mxu0 0
      %933 = vmatprep.subr.bf16.mxu0 0
      %934 = vmatpush1.bf16.msra.mxu0 0
      %935 = vmatprep.subr.bf16.mxu0 0
      %936 = vmatpush1.bf16.msra.mxu0 0
      %937 = vmatprep.mubr.bf16.mxu0 0
      %938 = vmatmul.mubr.bf16.gmra.mrb[0].mxu0 %v642
      %v939 = vpop.f32.mrb[0].mxu0
      %v940 = vadd.f32 0.0, %v939
      %v941 = vpop.f32.mrb[0].mxu0
      %v942 = vadd.f32 0.0, %v941
      %v943 = vpop.f32.mrb[0].mxu0
      %v944 = vpop.f32.mrb[0].mxu0
      %945 = vdwg.mxu0
      %946 = vmatprep.subr.bf16.mxu0 %v679
      %947 = vmatpush1.bf16.msra.mxu0 %v676
      %948 = vmatprep.subr.bf16.mxu0 0
      %949 = vmatpush1.bf16.msra.mxu0 0
      %950 = vmatprep.subr.bf16.mxu0 0
      %951 = vmatpush1.bf16.msra.mxu0 0
      %952 = vmatprep.subr.bf16.mxu0 0
      %953 = vmatpush1.bf16.msra.mxu0 0
      %954 = vmatprep.subr.bf16.mxu0 0
      %955 = vmatpush1.bf16.msra.mxu0 0
      %956 = vmatprep.subr.bf16.mxu0 0
      %957 = vmatpush1.bf16.msra.mxu0 0
      %958 = vmatprep.subr.bf16.mxu0 0
      %959 = vmatpush1.bf16.msra.mxu0 0
      %960 = vmatprep.subr.bf16.mxu0 0
      %961 = vmatpush1.bf16.msra.mxu0 0
      %962 = vmatprep.subr.bf16.mxu0 0
      %963 = vmatpush1.bf16.msra.mxu0 0
      %964 = vmatprep.subr.bf16.mxu0 0
      %965 = vmatpush1.bf16.msra.mxu0 0
      %966 = vmatprep.subr.bf16.mxu0 0
      %967 = vmatpush1.bf16.msra.mxu0 0
      %968 = vmatprep.subr.bf16.mxu0 0
      %969 = vmatpush1.bf16.msra.mxu0 0
      %970 = vmatprep.subr.bf16.mxu0 0
      %971 = vmatpush1.bf16.msra.mxu0 0
      %972 = vmatprep.subr.bf16.mxu0 0
      %973 = vmatpush1.bf16.msra.mxu0 0
      %974 = vmatprep.subr.bf16.mxu0 0
      %975 = vmatpush1.bf16.msra.mxu0 0
      %976 = vmatprep.subr.bf16.mxu0 0
      %977 = vmatpush1.bf16.msra.mxu0 0
      %978 = vmatprep.mubr.bf16.mxu0 0
      %979 = vmatmul.mubr.bf16.gmra.mrb[0].mxu0 %v642
      %v980 = vpop.f32.mrb[0].mxu0
      %v981 = vadd.f32 0.0, %v980
      %v982 = vpop.f32.mrb[0].mxu0
      %v983 = vadd.f32 0.0, %v982
      %v984 = vpop.f32.mrb[0].mxu0
      %v985 = vpop.f32.mrb[0].mxu0
      %986 = vdwg.mxu0
      %987 = vmatprep.subr.bf16.mxu0 %v685
      %988 = vmatpush1.bf16.msra.mxu0 %v682
      %989 = vmatprep.subr.bf16.mxu0 0
      %990 = vmatpush1.bf16.msra.mxu0 0
      %991 = vmatprep.subr.bf16.mxu0 0
      %992 = vmatpush1.bf16.msra.mxu0 0
      %993 = vmatprep.subr.bf16.mxu0 0
      %994 = vmatpush1.bf16.msra.mxu0 0
      %995 = vmatprep.subr.bf16.mxu0 0
      %996 = vmatpush1.bf16.msra.mxu0 0
      %997 = vmatprep.subr.bf16.mxu0 0
      %998 = vmatpush1.bf16.msra.mxu0 0
      %999 = vmatprep.subr.bf16.mxu0 0
      %1000 = vmatpush1.bf16.msra.mxu0 0
      %1001 = vmatprep.subr.bf16.mxu0 0
      %1002 = vmatpush1.bf16.msra.mxu0 0
      %1003 = vmatprep.subr.bf16.mxu0 0
      %1004 = vmatpush1.bf16.msra.mxu0 0
      %1005 = vmatprep.subr.bf16.mxu0 0
      %1006 = vmatpush1.bf16.msra.mxu0 0
      %1007 = vmatprep.subr.bf16.mxu0 0
      %1008 = vmatpush1.bf16.msra.mxu0 0
      %1009 = vmatprep.subr.bf16.mxu0 0
      %1010 = vmatpush1.bf16.msra.mxu0 0
      %1011 = vmatprep.subr.bf16.mxu0 0
      %1012 = vmatpush1.bf16.msra.mxu0 0
      %1013 = vmatprep.subr.bf16.mxu0 0
      %1014 = vmatpush1.bf16.msra.mxu0 0
      %1015 = vmatprep.subr.bf16.mxu0 0
      %1016 = vmatpush1.bf16.msra.mxu0 0
      %1017 = vmatprep.subr.bf16.mxu0 0
      %1018 = vmatpush1.bf16.msra.mxu0 0
      %1019 = vmatprep.mubr.bf16.mxu0 0
      %1020 = vmatmul.mubr.bf16.gmra.mrb[0].mxu0 %v642
      %v1021 = vpop.f32.mrb[0].mxu0
      %v1022 = vadd.f32 0.0, %v1021
      %v1023 = vpop.f32.mrb[0].mxu0
      %v1024 = vadd.f32 0.0, %v1023
      %v1025 = vpop.f32.mrb[0].mxu0
      %v1026 = vpop.f32.mrb[0].mxu0
      %1027 = vdwg.mxu0
      %1028 = vmatprep.subr.bf16.mxu0 %v691
      %1029 = vmatpush1.bf16.msra.mxu0 %v688
      %1030 = vmatprep.subr.bf16.mxu0 0
      %1031 = vmatpush1.bf16.msra.mxu0 0
      %1032 = vmatprep.subr.bf16.mxu0 0
      %1033 = vmatpush1.bf16.msra.mxu0 0
      %1034 = vmatprep.subr.bf16.mxu0 0
      %1035 = vmatpush1.bf16.msra.mxu0 0
      %1036 = vmatprep.subr.bf16.mxu0 0
      %1037 = vmatpush1.bf16.msra.mxu0 0
      %1038 = vmatprep.subr.bf16.mxu0 0
      %1039 = vmatpush1.bf16.msra.mxu0 0
      %1040 = vmatprep.subr.bf16.mxu0 0
      %1041 = vmatpush1.bf16.msra.mxu0 0
      %1042 = vmatprep.subr.bf16.mxu0 0
      %1043 = vmatpush1.bf16.msra.mxu0 0
      %1044 = vmatprep.subr.bf16.mxu0 0
      %1045 = vmatpush1.bf16.msra.mxu0 0
      %1046 = vmatprep.subr.bf16.mxu0 0
      %1047 = vmatpush1.bf16.msra.mxu0 0
      %1048 = vmatprep.subr.bf16.mxu0 0
      %1049 = vmatpush1.bf16.msra.mxu0 0
      %1050 = vmatprep.subr.bf16.mxu0 0
      %1051 = vmatpush1.bf16.msra.mxu0 0
      %1052 = vmatprep.subr.bf16.mxu0 0
      %1053 = vmatpush1.bf16.msra.mxu0 0
      %1054 = vmatprep.subr.bf16.mxu0 0
      %1055 = vmatpush1.bf16.msra.mxu0 0
      %1056 = vmatprep.subr.bf16.mxu0 0
      %1057 = vmatpush1.bf16.msra.mxu0 0
      %1058 = vmatprep.subr.bf16.mxu0 0
      %1059 = vmatpush1.bf16.msra.mxu0 0
      %1060 = vmatprep.mubr.bf16.mxu0 0
      %1061 = vmatmul.mubr.bf16.gmra.mrb[0].mxu0 %v642
      %v1062 = vpop.f32.mrb[0].mxu0
      %v1063 = vadd.f32 0.0, %v1062
      %v1064 = vpop.f32.mrb[0].mxu0
      %v1065 = vadd.f32 0.0, %v1064
      %v1066 = vpop.f32.mrb[0].mxu0
      %v1067 = vpop.f32.mrb[0].mxu0
      %1068 = vdwg.mxu0
      %1069 = vmatprep.subr.bf16.mxu0 %v697
      %1070 = vmatpush1.bf16.msra.mxu0 %v694
      %1071 = vmatprep.subr.bf16.mxu0 0
      %1072 = vmatpush1.bf16.msra.mxu0 0
      %1073 = vmatprep.subr.bf16.mxu0 0
      %1074 = vmatpush1.bf16.msra.mxu0 0
      %1075 = vmatprep.subr.bf16.mxu0 0
      %1076 = vmatpush1.bf16.msra.mxu0 0
      %1077 = vmatprep.subr.bf16.mxu0 0
      %1078 = vmatpush1.bf16.msra.mxu0 0
      %1079 = vmatprep.subr.bf16.mxu0 0
      %1080 = vmatpush1.bf16.msra.mxu0 0
      %1081 = vmatprep.subr.bf16.mxu0 0
      %1082 = vmatpush1.bf16.msra.mxu0 0
      %1083 = vmatprep.subr.bf16.mxu0 0
      %1084 = vmatpush1.bf16.msra.mxu0 0
      %1085 = vmatprep.subr.bf16.mxu0 0
      %1086 = vmatpush1.bf16.msra.mxu0 0
      %1087 = vmatprep.subr.bf16.mxu0 0
      %1088 = vmatpush1.bf16.msra.mxu0 0
      %1089 = vmatprep.subr.bf16.mxu0 0
      %1090 = vmatpush1.bf16.msra.mxu0 0
      %1091 = vmatprep.subr.bf16.mxu0 0
      %1092 = vmatpush1.bf16.msra.mxu0 0
      %1093 = vmatprep.subr.bf16.mxu0 0
      %1094 = vmatpush1.bf16.msra.mxu0 0
      %1095 = vmatprep.subr.bf16.mxu0 0
      %1096 = vmatpush1.bf16.msra.mxu0 0
      %1097 = vmatprep.subr.bf16.mxu0 0
      %1098 = vmatpush1.bf16.msra.mxu0 0
      %1099 = vmatprep.subr.bf16.mxu0 0
      %1100 = vmatpush1.bf16.msra.mxu0 0
      %1101 = vmatprep.mubr.bf16.mxu0 0
      %1102 = vmatmul.mubr.bf16.gmra.mrb[0].mxu0 %v642
      %v1103 = vpop.f32.mrb[0].mxu0
      %v1104 = vadd.f32 0.0, %v1103
      %v1105 = vpop.f32.mrb[0].mxu0
      %v1106 = vadd.f32 0.0, %v1105
      %v1107 = vpop.f32.mrb[0].mxu0
      %v1108 = vpop.f32.mrb[0].mxu0
      %1109 = vdwg.mxu0
      %1110 = vmatprep.subr.bf16.mxu0 %v703
      %1111 = vmatpush1.bf16.msra.mxu0 %v700
      %1112 = vmatprep.subr.bf16.mxu0 0
      %1113 = vmatpush1.bf16.msra.mxu0 0
      %1114 = vmatprep.subr.bf16.mxu0 0
      %1115 = vmatpush1.bf16.msra.mxu0 0
      %1116 = vmatprep.subr.bf16.mxu0 0
      %1117 = vmatpush1.bf16.msra.mxu0 0
      %1118 = vmatprep.subr.bf16.mxu0 0
      %1119 = vmatpush1.bf16.msra.mxu0 0
      %1120 = vmatprep.subr.bf16.mxu0 0
      %1121 = vmatpush1.bf16.msra.mxu0 0
      %1122 = vmatprep.subr.bf16.mxu0 0
      %1123 = vmatpush1.bf16.msra.mxu0 0
      %1124 = vmatprep.subr.bf16.mxu0 0
      %1125 = vmatpush1.bf16.msra.mxu0 0
      %1126 = vmatprep.subr.bf16.mxu0 0
      %1127 = vmatpush1.bf16.msra.mxu0 0
      %1128 = vmatprep.subr.bf16.mxu0 0
      %1129 = vmatpush1.bf16.msra.mxu0 0
      %1130 = vmatprep.subr.bf16.mxu0 0
      %1131 = vmatpush1.bf16.msra.mxu0 0
      %1132 = vmatprep.subr.bf16.mxu0 0
      %1133 = vmatpush1.bf16.msra.mxu0 0
      %1134 = vmatprep.subr.bf16.mxu0 0
      %1135 = vmatpush1.bf16.msra.mxu0 0
      %1136 = vmatprep.subr.bf16.mxu0 0
      %1137 = vmatpush1.bf16.msra.mxu0 0
      %1138 = vmatprep.subr.bf16.mxu0 0
      %1139 = vmatpush1.bf16.msra.mxu0 0
      %1140 = vmatprep.subr.bf16.mxu0 0
      %1141 = vmatpush1.bf16.msra.mxu0 0
      %1142 = vmatprep.mubr.bf16.mxu0 0
      %1143 = vmatmul.mubr.bf16.gmra.mrb[0].mxu0 %v642
      %v1144 = vpop.f32.mrb[0].mxu0
      %v1145 = vadd.f32 0.0, %v1144
      %v1146 = vpop.f32.mrb[0].mxu0
      %v1147 = vadd.f32 0.0, %v1146
      %v1148 = vpop.f32.mrb[0].mxu0
      %v1149 = vpop.f32.mrb[0].mxu0
      %1150 = vdwg.mxu0
      %1151 = vmatprep.subr.bf16.mxu0 %v709
      %1152 = vmatpush1.bf16.msra.mxu0 %v706
      %1153 = vmatprep.subr.bf16.mxu0 0
      %1154 = vmatpush1.bf16.msra.mxu0 0
      %1155 = vmatprep.subr.bf16.mxu0 0
      %1156 = vmatpush1.bf16.msra.mxu0 0
      %1157 = vmatprep.subr.bf16.mxu0 0
      %1158 = vmatpush1.bf16.msra.mxu0 0
      %1159 = vmatprep.subr.bf16.mxu0 0
      %1160 = vmatpush1.bf16.msra.mxu0 0
      %1161 = vmatprep.subr.bf16.mxu0 0
      %1162 = vmatpush1.bf16.msra.mxu0 0
      %1163 = vmatprep.subr.bf16.mxu0 0
      %1164 = vmatpush1.bf16.msra.mxu0 0
      %1165 = vmatprep.subr.bf16.mxu0 0
      %1166 = vmatpush1.bf16.msra.mxu0 0
      %1167 = vmatprep.subr.bf16.mxu0 0
      %1168 = vmatpush1.bf16.msra.mxu0 0
      %1169 = vmatprep.subr.bf16.mxu0 0
      %1170 = vmatpush1.bf16.msra.mxu0 0
      %1171 = vmatprep.subr.bf16.mxu0 0
      %1172 = vmatpush1.bf16.msra.mxu0 0
      %1173 = vmatprep.subr.bf16.mxu0 0
      %1174 = vmatpush1.bf16.msra.mxu0 0
      %1175 = vmatprep.subr.bf16.mxu0 0
      %1176 = vmatpush1.bf16.msra.mxu0 0
      %1177 = vmatprep.subr.bf16.mxu0 0
      %1178 = vmatpush1.bf16.msra.mxu0 0
      %1179 = vmatprep.subr.bf16.mxu0 0
      %1180 = vmatpush1.bf16.msra.mxu0 0
      %1181 = vmatprep.subr.bf16.mxu0 0
      %1182 = vmatpush1.bf16.msra.mxu0 0
      %1183 = vmatprep.mubr.bf16.mxu0 0
      %1184 = vmatmul.mubr.bf16.gmra.mrb[0].mxu0 %v642
      %v1185 = vpop.f32.mrb[0].mxu0
      %v1186 = vadd.f32 0.0, %v1185
      %v1187 = vpop.f32.mrb[0].mxu0
      %v1188 = vadd.f32 0.0, %v1187
      %v1189 = vpop.f32.mrb[0].mxu0
      %v1190 = vpop.f32.mrb[0].mxu0
      %1191 = vdwg.mxu0
      %1192 = vmatprep.subr.bf16.mxu0 %v715
      %1193 = vmatpush1.bf16.msra.mxu0 %v712
      %1194 = vmatprep.subr.bf16.mxu0 0
      %1195 = vmatpush1.bf16.msra.mxu0 0
      %1196 = vmatprep.subr.bf16.mxu0 0
      %1197 = vmatpush1.bf16.msra.mxu0 0
      %1198 = vmatprep.subr.bf16.mxu0 0
      %1199 = vmatpush1.bf16.msra.mxu0 0
      %1200 = vmatprep.subr.bf16.mxu0 0
      %1201 = vmatpush1.bf16.msra.mxu0 0
      %1202 = vmatprep.subr.bf16.mxu0 0
      %1203 = vmatpush1.bf16.msra.mxu0 0
      %1204 = vmatprep.subr.bf16.mxu0 0
      %1205 = vmatpush1.bf16.msra.mxu0 0
      %1206 = vmatprep.subr.bf16.mxu0 0
      %1207 = vmatpush1.bf16.msra.mxu0 0
      %1208 = vmatprep.subr.bf16.mxu0 0
      %1209 = vmatpush1.bf16.msra.mxu0 0
      %1210 = vmatprep.subr.bf16.mxu0 0
      %1211 = vmatpush1.bf16.msra.mxu0 0
      %1212 = vmatprep.subr.bf16.mxu0 0
      %1213 = vmatpush1.bf16.msra.mxu0 0
      %1214 = vmatprep.subr.bf16.mxu0 0
      %1215 = vmatpush1.bf16.msra.mxu0 0
      %1216 = vmatprep.subr.bf16.mxu0 0
      %1217 = vmatpush1.bf16.msra.mxu0 0
      %1218 = vmatprep.subr.bf16.mxu0 0
      %1219 = vmatpush1.bf16.msra.mxu0 0
      %1220 = vmatprep.subr.bf16.mxu0 0
      %1221 = vmatpush1.bf16.msra.mxu0 0
      %1222 = vmatprep.subr.bf16.mxu0 0
      %1223 = vmatpush1.bf16.msra.mxu0 0
      %1224 = vmatprep.mubr.bf16.mxu0 0
      %1225 = vmatmul.mubr.bf16.gmra.mrb[0].mxu0 %v642
      %v1226 = vpop.f32.mrb[0].mxu0
      %v1227 = vadd.f32 0.0, %v1226
      %v1228 = vpop.f32.mrb[0].mxu0
      %v1229 = vadd.f32 0.0, %v1228
      %v1230 = vpop.f32.mrb[0].mxu0
      %v1231 = vpop.f32.mrb[0].mxu0
      %1232 = vdwg.mxu0
      %1233 = vmatprep.subr.bf16.mxu0 %v721
      %1234 = vmatpush1.bf16.msra.mxu0 %v718
      %1235 = vmatprep.subr.bf16.mxu0 0
      %1236 = vmatpush1.bf16.msra.mxu0 0
      %1237 = vmatprep.subr.bf16.mxu0 0
      %1238 = vmatpush1.bf16.msra.mxu0 0
      %1239 = vmatprep.subr.bf16.mxu0 0
      %1240 = vmatpush1.bf16.msra.mxu0 0
      %1241 = vmatprep.subr.bf16.mxu0 0
      %1242 = vmatpush1.bf16.msra.mxu0 0
      %1243 = vmatprep.subr.bf16.mxu0 0
      %1244 = vmatpush1.bf16.msra.mxu0 0
      %1245 = vmatprep.subr.bf16.mxu0 0
      %1246 = vmatpush1.bf16.msra.mxu0 0
      %1247 = vmatprep.subr.bf16.mxu0 0
      %1248 = vmatpush1.bf16.msra.mxu0 0
      %1249 = vmatprep.subr.bf16.mxu0 0
      %1250 = vmatpush1.bf16.msra.mxu0 0
      %1251 = vmatprep.subr.bf16.mxu0 0
      %1252 = vmatpush1.bf16.msra.mxu0 0
      %1253 = vmatprep.subr.bf16.mxu0 0
      %1254 = vmatpush1.bf16.msra.mxu0 0
      %1255 = vmatprep.subr.bf16.mxu0 0
      %1256 = vmatpush1.bf16.msra.mxu0 0
      %1257 = vmatprep.subr.bf16.mxu0 0
      %1258 = vmatpush1.bf16.msra.mxu0 0
      %1259 = vmatprep.subr.bf16.mxu0 0
      %1260 = vmatpush1.bf16.msra.mxu0 0
      %1261 = vmatprep.subr.bf16.mxu0 0
      %1262 = vmatpush1.bf16.msra.mxu0 0
      %1263 = vmatprep.subr.bf16.mxu0 0
      %1264 = vmatpush1.bf16.msra.mxu0 0
      %1265 = vmatprep.mubr.bf16.mxu0 0
      %1266 = vmatmul.mubr.bf16.gmra.mrb[0].mxu0 %v642
      %v1267 = vpop.f32.mrb[0].mxu0
      %v1268 = vadd.f32 0.0, %v1267
      %v1269 = vpop.f32.mrb[0].mxu0
      %v1270 = vadd.f32 0.0, %v1269
      %v1271 = vpop.f32.mrb[0].mxu0
      %v1272 = vpop.f32.mrb[0].mxu0
      %1273 = vdwg.mxu0
      %1274 = vmatprep.subr.bf16.mxu0 %v727
      %1275 = vmatpush1.bf16.msra.mxu0 %v724
      %1276 = vmatprep.subr.bf16.mxu0 0
      %1277 = vmatpush1.bf16.msra.mxu0 0
      %1278 = vmatprep.subr.bf16.mxu0 0
      %1279 = vmatpush1.bf16.msra.mxu0 0
      %1280 = vmatprep.subr.bf16.mxu0 0
      %1281 = vmatpush1.bf16.msra.mxu0 0
      %1282 = vmatprep.subr.bf16.mxu0 0
      %1283 = vmatpush1.bf16.msra.mxu0 0
      %1284 = vmatprep.subr.bf16.mxu0 0
      %1285 = vmatpush1.bf16.msra.mxu0 0
      %1286 = vmatprep.subr.bf16.mxu0 0
      %1287 = vmatpush1.bf16.msra.mxu0 0
      %1288 = vmatprep.subr.bf16.mxu0 0
      %1289 = vmatpush1.bf16.msra.mxu0 0
      %1290 = vmatprep.subr.bf16.mxu0 0
      %1291 = vmatpush1.bf16.msra.mxu0 0
      %1292 = vmatprep.subr.bf16.mxu0 0
      %1293 = vmatpush1.bf16.msra.mxu0 0
      %1294 = vmatprep.subr.bf16.mxu0 0
      %1295 = vmatpush1.bf16.msra.mxu0 0
      %1296 = vmatprep.subr.bf16.mxu0 0
      %1297 = vmatpush1.bf16.msra.mxu0 0
      %1298 = vmatprep.subr.bf16.mxu0 0
      %1299 = vmatpush1.bf16.msra.mxu0 0
      %1300 = vmatprep.subr.bf16.mxu0 0
      %1301 = vmatpush1.bf16.msra.mxu0 0
      %1302 = vmatprep.subr.bf16.mxu0 0
      %1303 = vmatpush1.bf16.msra.mxu0 0
      %1304 = vmatprep.subr.bf16.mxu0 0
      %1305 = vmatpush1.bf16.msra.mxu0 0
      %1306 = vmatprep.mubr.bf16.mxu0 0
      %1307 = vmatmul.mubr.bf16.gmra.mrb[0].mxu0 %v642
      %v1308 = vpop.f32.mrb[0].mxu0
      %v1309 = vadd.f32 0.0, %v1308
      %v1310 = vpop.f32.mrb[0].mxu0
      %v1311 = vadd.f32 0.0, %v1310
      %v1312 = vpop.f32.mrb[0].mxu0
      %v1313 = vpop.f32.mrb[0].mxu0
      %1314 = vdwg.mxu0
      %1315 = vmatprep.subr.bf16.mxu0 %v733
      %1316 = vmatpush1.bf16.msra.mxu0 %v730
      %1317 = vmatprep.subr.bf16.mxu0 0
      %1318 = vmatpush1.bf16.msra.mxu0 0
      %1319 = vmatprep.subr.bf16.mxu0 0
      %1320 = vmatpush1.bf16.msra.mxu0 0
      %1321 = vmatprep.subr.bf16.mxu0 0
      %1322 = vmatpush1.bf16.msra.mxu0 0
      %1323 = vmatprep.subr.bf16.mxu0 0
      %1324 = vmatpush1.bf16.msra.mxu0 0
      %1325 = vmatprep.subr.bf16.mxu0 0
      %1326 = vmatpush1.bf16.msra.mxu0 0
      %1327 = vmatprep.subr.bf16.mxu0 0
      %1328 = vmatpush1.bf16.msra.mxu0 0
      %1329 = vmatprep.subr.bf16.mxu0 0
      %1330 = vmatpush1.bf16.msra.mxu0 0
      %1331 = vmatprep.subr.bf16.mxu0 0
      %1332 = vmatpush1.bf16.msra.mxu0 0
      %1333 = vmatprep.subr.bf16.mxu0 0
      %1334 = vmatpush1.bf16.msra.mxu0 0
      %1335 = vmatprep.subr.bf16.mxu0 0
      %1336 = vmatpush1.bf16.msra.mxu0 0
      %1337 = vmatprep.subr.bf16.mxu0 0
      %1338 = vmatpush1.bf16.msra.mxu0 0
      %1339 = vmatprep.subr.bf16.mxu0 0
      %1340 = vmatpush1.bf16.msra.mxu0 0
      %1341 = vmatprep.subr.bf16.mxu0 0
      %1342 = vmatpush1.bf16.msra.mxu0 0
      %1343 = vmatprep.subr.bf16.mxu0 0
      %1344 = vmatpush1.bf16.msra.mxu0 0
      %1345 = vmatprep.subr.bf16.mxu0 0
      %1346 = vmatpush1.bf16.msra.mxu0 0
      %1347 = vmatprep.mubr.bf16.mxu0 0
      %1348 = vmatmul.mubr.bf16.gmra.mrb[0].mxu0 %v642
      %v1349 = vpop.f32.mrb[0].mxu0
      %v1350 = vadd.f32 0.0, %v1349
      %v1351 = vpop.f32.mrb[0].mxu0
      %v1352 = vadd.f32 0.0, %v1351
      %v1353 = vpop.f32.mrb[0].mxu0
      %v1354 = vpop.f32.mrb[0].mxu0
      %1355 = vdwg.mxu0
      %1356 = vmatprep.subr.bf16.mxu0 %v739
      %1357 = vmatpush1.bf16.msra.mxu0 %v736
      %1358 = vmatprep.subr.bf16.mxu0 0
      %1359 = vmatpush1.bf16.msra.mxu0 0
      %1360 = vmatprep.subr.bf16.mxu0 0
      %1361 = vmatpush1.bf16.msra.mxu0 0
      %1362 = vmatprep.subr.bf16.mxu0 0
      %1363 = vmatpush1.bf16.msra.mxu0 0
      %1364 = vmatprep.subr.bf16.mxu0 0
      %1365 = vmatpush1.bf16.msra.mxu0 0
      %1366 = vmatprep.subr.bf16.mxu0 0
      %1367 = vmatpush1.bf16.msra.mxu0 0
      %1368 = vmatprep.subr.bf16.mxu0 0
      %1369 = vmatpush1.bf16.msra.mxu0 0
      %1370 = vmatprep.subr.bf16.mxu0 0
      %1371 = vmatpush1.bf16.msra.mxu0 0
      %1372 = vmatprep.subr.bf16.mxu0 0
      %1373 = vmatpush1.bf16.msra.mxu0 0
      %1374 = vmatprep.subr.bf16.mxu0 0
      %1375 = vmatpush1.bf16.msra.mxu0 0
      %1376 = vmatprep.subr.bf16.mxu0 0
      %1377 = vmatpush1.bf16.msra.mxu0 0
      %1378 = vmatprep.subr.bf16.mxu0 0
      %1379 = vmatpush1.bf16.msra.mxu0 0
      %1380 = vmatprep.subr.bf16.mxu0 0
      %1381 = vmatpush1.bf16.msra.mxu0 0
      %1382 = vmatprep.subr.bf16.mxu0 0
      %1383 = vmatpush1.bf16.msra.mxu0 0
      %1384 = vmatprep.subr.bf16.mxu0 0
      %1385 = vmatpush1.bf16.msra.mxu0 0
      %1386 = vmatprep.subr.bf16.mxu0 0
      %1387 = vmatpush1.bf16.msra.mxu0 0
      %1388 = vmatprep.mubr.bf16.mxu0 0
      %1389 = vmatmul.mubr.bf16.gmra.mrb[0].mxu0 %v642
      %v1390 = vpop.f32.mrb[0].mxu0
      %v1391 = vadd.f32 0.0, %v1390
      %v1392 = vpop.f32.mrb[0].mxu0
      %v1393 = vadd.f32 0.0, %v1392
      %v1394 = vpop.f32.mrb[0].mxu0
      %v1395 = vpop.f32.mrb[0].mxu0
      %1396 = vdwg.mxu0
      %v1397 = vadd.f32 %v776, %v778
      %v1398 = vadd.f32 %v1397, %v817
      %v1399 = vadd.f32 %v1398, %v819
      %v1400 = vadd.f32 %v1399, %v858
      %v1401 = vadd.f32 %v1400, %v860
      %v1402 = vadd.f32 %v1401, %v899
      %v1403 = vadd.f32 %v1402, %v901
      %v1404 = vadd.f32 %v1403, %v940
      %v1405 = vadd.f32 %v1404, %v942
      %v1406 = vadd.f32 %v1405, %v981
      %v1407 = vadd.f32 %v1406, %v983
      %v1408 = vadd.f32 %v1407, %v1022
      %v1409 = vadd.f32 %v1408, %v1024
      %v1410 = vadd.f32 %v1409, %v1063
      %v1411 = vadd.f32 %v1410, %v1065
      %v1412 = vadd.f32 %v1411, %v1104
      %v1413 = vadd.f32 %v1412, %v1106
      %v1414 = vadd.f32 %v1413, %v1145
      %v1415 = vadd.f32 %v1414, %v1147
      %v1416 = vadd.f32 %v1415, %v1186
      %v1417 = vadd.f32 %v1416, %v1188
      %v1418 = vadd.f32 %v1417, %v1227
      %v1419 = vadd.f32 %v1418, %v1229
      %v1420 = vadd.f32 %v1419, %v1268
      %v1421 = vadd.f32 %v1420, %v1270
      %v1422 = vadd.f32 %v1421, %v1309
      %v1423 = vadd.f32 %v1422, %v1311
      %v1424 = vadd.f32 %v1423, %v1350
      %v1425 = vadd.f32 %v1424, %v1352
      %v1426 = vadd.f32 %v1425, %v1391
      %v1427 = vadd.f32 %v1426, %v1393
      %1428 = vadd.xlane.f32.xlu0 %v1427
      %v1429 = vpop.xlane.xlu0 %1428
      %v1430 = vmul.f32 %v1429, 0.00024414063
      %v1431 = vmul.f32 %v776, %v776
      %v1432 = vmul.f32 %v778, %v778
      %v1433 = vmul.f32 %v817, %v817
      %v1434 = vmul.f32 %v819, %v819
      %v1435 = vmul.f32 %v858, %v858
      %v1436 = vmul.f32 %v860, %v860
      %v1437 = vmul.f32 %v899, %v899
      %v1438 = vmul.f32 %v901, %v901
      %v1439 = vmul.f32 %v940, %v940
      %v1440 = vmul.f32 %v942, %v942
      %v1441 = vmul.f32 %v981, %v981
      %v1442 = vmul.f32 %v983, %v983
      %v1443 = vmul.f32 %v1022, %v1022
      %v1444 = vmul.f32 %v1024, %v1024
      %v1445 = vmul.f32 %v1063, %v1063
      %v1446 = vmul.f32 %v1065, %v1065
      %v1447 = vmul.f32 %v1104, %v1104
      %v1448 = vmul.f32 %v1106, %v1106
      %v1449 = vmul.f32 %v1145, %v1145
      %v1450 = vmul.f32 %v1147, %v1147
      %v1451 = vmul.f32 %v1186, %v1186
      %v1452 = vmul.f32 %v1188, %v1188
      %v1453 = vmul.f32 %v1227, %v1227
      %v1454 = vmul.f32 %v1229, %v1229
      %v1455 = vmul.f32 %v1268, %v1268
      %v1456 = vmul.f32 %v1270, %v1270
      %v1457 = vmul.f32 %v1309, %v1309
      %v1458 = vmul.f32 %v1311, %v1311
      %v1459 = vmul.f32 %v1350, %v1350
      %v1460 = vmul.f32 %v1352, %v1352
      %v1461 = vmul.f32 %v1391, %v1391
      %v1462 = vmul.f32 %v1393, %v1393
      %v1463 = vadd.f32 %v1431, %v1432
      %v1464 = vadd.f32 %v1463, %v1433
      %v1465 = vadd.f32 %v1464, %v1434
      %v1466 = vadd.f32 %v1465, %v1435
      %v1467 = vadd.f32 %v1466, %v1436
      %v1468 = vadd.f32 %v1467, %v1437
      %v1469 = vadd.f32 %v1468, %v1438
      %v1470 = vadd.f32 %v1469, %v1439
      %v1471 = vadd.f32 %v1470, %v1440
      %v1472 = vadd.f32 %v1471, %v1441
      %v1473 = vadd.f32 %v1472, %v1442
      %v1474 = vadd.f32 %v1473, %v1443
      %v1475 = vadd.f32 %v1474, %v1444
      %v1476 = vadd.f32 %v1475, %v1445
      %v1477 = vadd.f32 %v1476, %v1446
      %v1478 = vadd.f32 %v1477, %v1447
      %v1479 = vadd.f32 %v1478, %v1448
      %v1480 = vadd.f32 %v1479, %v1449
      %v1481 = vadd.f32 %v1480, %v1450
      %v1482 = vadd.f32 %v1481, %v1451
      %v1483 = vadd.f32 %v1482, %v1452
      %v1484 = vadd.f32 %v1483, %v1453
      %v1485 = vadd.f32 %v1484, %v1454
      %v1486 = vadd.f32 %v1485, %v1455
      %v1487 = vadd.f32 %v1486, %v1456
      %v1488 = vadd.f32 %v1487, %v1457
      %v1489 = vadd.f32 %v1488, %v1458
      %v1490 = vadd.f32 %v1489, %v1459
      %v1491 = vadd.f32 %v1490, %v1460
      %v1492 = vadd.f32 %v1491, %v1461
      %v1493 = vadd.f32 %v1492, %v1462
      %1494 = vadd.xlane.f32.xlu0 %v1493
      %v1495 = vpop.xlane.xlu0 %1494
      %v1496 = vmul.f32 %v1495, 0.00024414063
      %v1497 = vmul.f32 %v1430, %v1430
      %v1498 = vsub.f32 %v1496, %v1497
      %v1499 = vmax.f32 %v1498, 0.0
      %v1500 = vld [vmem:[%s3] sm:$0xff]
      %v1501 = vadd.f32 %v1499, 1e-05
      %v1502 = vrsqrt.pop %v1501
      %v1503 = vmul.f32 %v1500, %v1502
      %v1504 = vmul.f32 %v1430, %v1503
      %1506 = vrot.lane.b32.xlu0 %v1504, 1
      %v1507 = vpop.permute.xlu0 %1506
      %v1509 = vsub.f32 %v1500, %v1507
      %1511 = vset.pattern.permute.xlu0 0
      %1512 = vperm.xlu0 %1511, %v1503
      %v1513 = vpop.permute.xlu0 %1512
      %v1515 = vmul.f32 %v776, %v1513
      %v1516 = vmul.f32 %v778, %v1513
      %v1517 = vmul.f32 %v817, %v1513
      %v1518 = vmul.f32 %v819, %v1513
      %v1519 = vmul.f32 %v858, %v1513
      %v1520 = vmul.f32 %v860, %v1513
      %v1521 = vmul.f32 %v899, %v1513
      %v1522 = vmul.f32 %v901, %v1513
      %v1523 = vmul.f32 %v940, %v1513
      %v1524 = vmul.f32 %v942, %v1513
      %v1525 = vmul.f32 %v981, %v1513
      %v1526 = vmul.f32 %v983, %v1513
      %v1527 = vmul.f32 %v1022, %v1513
      %v1528 = vmul.f32 %v1024, %v1513
      %v1529 = vmul.f32 %v1063, %v1513
      %v1530 = vmul.f32 %v1065, %v1513
      %v1531 = vmul.f32 %v1104, %v1513
      %v1532 = vmul.f32 %v1106, %v1513
      %v1533 = vmul.f32 %v1145, %v1513
      %v1534 = vmul.f32 %v1147, %v1513
      %v1535 = vmul.f32 %v1186, %v1513
      %v1536 = vmul.f32 %v1188, %v1513
      %v1537 = vmul.f32 %v1227, %v1513
      %v1538 = vmul.f32 %v1229, %v1513
      %v1539 = vmul.f32 %v1268, %v1513
      %v1540 = vmul.f32 %v1270, %v1513
      %v1541 = vmul.f32 %v1309, %v1513
      %v1542 = vmul.f32 %v1311, %v1513
      %v1543 = vmul.f32 %v1350, %v1513
      %v1544 = vmul.f32 %v1352, %v1513
      %v1545 = vmul.f32 %v1391, %v1513
      %v1546 = vmul.f32 %v1393, %v1513
      %1548 = vset.pattern.permute.xlu0 1
      %1549 = vperm.xlu0 %1548, %v1509
      %v1550 = vpop.permute.xlu0 %1549
      %v1552 = vadd.f32 %v1515, %v1550
      %v1553 = vadd.f32 %v1516, %v1550
      %v1554 = vadd.f32 %v1517, %v1550
      %v1555 = vadd.f32 %v1518, %v1550
      %v1556 = vadd.f32 %v1519, %v1550
      %v1557 = vadd.f32 %v1520, %v1550
      %v1558 = vadd.f32 %v1521, %v1550
      %v1559 = vadd.f32 %v1522, %v1550
      %v1560 = vadd.f32 %v1523, %v1550
      %v1561 = vadd.f32 %v1524, %v1550
      %v1562 = vadd.f32 %v1525, %v1550
      %v1563 = vadd.f32 %v1526, %v1550
      %v1564 = vadd.f32 %v1527, %v1550
      %v1565 = vadd.f32 %v1528, %v1550
      %v1566 = vadd.f32 %v1529, %v1550
      %v1567 = vadd.f32 %v1530, %v1550
      %v1568 = vadd.f32 %v1531, %v1550
      %v1569 = vadd.f32 %v1532, %v1550
      %v1570 = vadd.f32 %v1533, %v1550
      %v1571 = vadd.f32 %v1534, %v1550
      %v1572 = vadd.f32 %v1535, %v1550
      %v1573 = vadd.f32 %v1536, %v1550
      %v1574 = vadd.f32 %v1537, %v1550
      %v1575 = vadd.f32 %v1538, %v1550
      %v1576 = vadd.f32 %v1539, %v1550
      %v1577 = vadd.f32 %v1540, %v1550
      %v1578 = vadd.f32 %v1541, %v1550
      %v1579 = vadd.f32 %v1542, %v1550
      %v1580 = vadd.f32 %v1543, %v1550
      %v1581 = vadd.f32 %v1544, %v1550
      %v1582 = vadd.f32 %v1545, %v1550
      %v1583 = vadd.f32 %v1546, %v1550
      %v1584 = vmul.f32 %v1552, 0.01
      %v1585 = vmul.f32 %v1553, 0.01
      %v1586 = vmul.f32 %v1554, 0.01
      %v1587 = vmul.f32 %v1555, 0.01
      %v1588 = vmul.f32 %v1556, 0.01
      %v1589 = vmul.f32 %v1557, 0.01
      %v1590 = vmul.f32 %v1558, 0.01
      %v1591 = vmul.f32 %v1559, 0.01
      %v1592 = vmul.f32 %v1560, 0.01
      %v1593 = vmul.f32 %v1561, 0.01
      %v1594 = vmul.f32 %v1562, 0.01
      %v1595 = vmul.f32 %v1563, 0.01
      %v1596 = vmul.f32 %v1564, 0.01
      %v1597 = vmul.f32 %v1565, 0.01
      %v1598 = vmul.f32 %v1566, 0.01
      %v1599 = vmul.f32 %v1567, 0.01
      %v1600 = vmul.f32 %v1568, 0.01
      %v1601 = vmul.f32 %v1569, 0.01
      %v1602 = vmul.f32 %v1570, 0.01
      %v1603 = vmul.f32 %v1571, 0.01
      %v1604 = vmul.f32 %v1572, 0.01
      %v1605 = vmul.f32 %v1573, 0.01
      %v1606 = vmul.f32 %v1574, 0.01
      %v1607 = vmul.f32 %v1575, 0.01
      %v1608 = vmul.f32 %v1576, 0.01
      %v1609 = vmul.f32 %v1577, 0.01
      %v1610 = vmul.f32 %v1578, 0.01
      %v1611 = vmul.f32 %v1579, 0.01
      %v1612 = vmul.f32 %v1580, 0.01
      %v1613 = vmul.f32 %v1581, 0.01
      %v1614 = vmul.f32 %v1582, 0.01
      %v1615 = vmul.f32 %v1583, 0.01
      %v1616 = vmax.f32 %v1552, %v1584
      %v1617 = vmax.f32 %v1553, %v1585
      %v1618 = vmax.f32 %v1554, %v1586
      %v1619 = vmax.f32 %v1555, %v1587
      %v1620 = vmax.f32 %v1556, %v1588
      %v1621 = vmax.f32 %v1557, %v1589
      %v1622 = vmax.f32 %v1558, %v1590
      %v1623 = vmax.f32 %v1559, %v1591
      %v1624 = vmax.f32 %v1560, %v1592
      %v1625 = vmax.f32 %v1561, %v1593
      %v1626 = vmax.f32 %v1562, %v1594
      %v1627 = vmax.f32 %v1563, %v1595
      %v1628 = vmax.f32 %v1564, %v1596
      %v1629 = vmax.f32 %v1565, %v1597
      %v1630 = vmax.f32 %v1566, %v1598
      %v1631 = vmax.f32 %v1567, %v1599
      %v1632 = vmax.f32 %v1568, %v1600
      %v1633 = vmax.f32 %v1569, %v1601
      %v1634 = vmax.f32 %v1570, %v1602
      %v1635 = vmax.f32 %v1571, %v1603
      %v1636 = vmax.f32 %v1572, %v1604
      %v1637 = vmax.f32 %v1573, %v1605
      %v1638 = vmax.f32 %v1574, %v1606
      %v1639 = vmax.f32 %v1575, %v1607
      %v1640 = vmax.f32 %v1576, %v1608
      %v1641 = vmax.f32 %v1577, %v1609
      %v1642 = vmax.f32 %v1578, %v1610
      %v1643 = vmax.f32 %v1579, %v1611
      %v1644 = vmax.f32 %v1580, %v1612
      %v1645 = vmax.f32 %v1581, %v1613
      %v1646 = vmax.f32 %v1582, %v1614
      %v1647 = vmax.f32 %v1583, %v1615
      %v1648 = vlaneseq
      %v1649 = vshrl.u32 %v1648, 7
      %v1650 = vand.u32 %v1649, 1
      %vm1651 = vcmp.eq.s32.totalorder %v1650, 0
      %v1652 = vrot.slane %v1616, 7
      %v1653 = vrot.slane %v1617, 7
      %v1654 = vrot.slane %v1618, 7
      %v1655 = vrot.slane %v1619, 7
      %v1656 = vrot.slane %v1620, 7
      %v1657 = vrot.slane %v1621, 7
      %v1658 = vrot.slane %v1622, 7
      %v1659 = vrot.slane %v1623, 7
      %v1660 = vrot.slane %v1624, 7
      %v1661 = vrot.slane %v1625, 7
      %v1662 = vrot.slane %v1626, 7
      %v1663 = vrot.slane %v1627, 7
      %v1664 = vrot.slane %v1628, 7
      %v1665 = vrot.slane %v1629, 7
      %v1666 = vrot.slane %v1630, 7
      %v1667 = vrot.slane %v1631, 7
      %v1668 = vrot.slane %v1632, 7
      %v1669 = vrot.slane %v1633, 7
      %v1670 = vrot.slane %v1634, 7
      %v1671 = vrot.slane %v1635, 7
      %v1672 = vrot.slane %v1636, 7
      %v1673 = vrot.slane %v1637, 7
      %v1674 = vrot.slane %v1638, 7
      %v1675 = vrot.slane %v1639, 7
      %v1676 = vrot.slane %v1640, 7
      %v1677 = vrot.slane %v1641, 7
      %v1678 = vrot.slane %v1642, 7
      %v1679 = vrot.slane %v1643, 7
      %v1680 = vrot.slane %v1644, 7
      %v1681 = vrot.slane %v1645, 7
      %v1682 = vrot.slane %v1646, 7
      %v1683 = vrot.slane %v1647, 7
      %v1684 = vsel %vm1651, 1, 0
      %vm1685 = vcmp.eq.s32.totalorder %v1684, 1
      %v1686 = vsel %vm1685, %v1616, %v1652
      %v1687 = vsel %vm1685, %v1617, %v1653
      %v1688 = vsel %vm1685, %v1618, %v1654
      %v1689 = vsel %vm1685, %v1619, %v1655
      %v1690 = vsel %vm1685, %v1620, %v1656
      %v1691 = vsel %vm1685, %v1621, %v1657
      %v1692 = vsel %vm1685, %v1622, %v1658
      %v1693 = vsel %vm1685, %v1623, %v1659
      %v1694 = vsel %vm1685, %v1624, %v1660
      %v1695 = vsel %vm1685, %v1625, %v1661
      %v1696 = vsel %vm1685, %v1626, %v1662
      %v1697 = vsel %vm1685, %v1627, %v1663
      %v1698 = vsel %vm1685, %v1628, %v1664
      %v1699 = vsel %vm1685, %v1629, %v1665
      %v1700 = vsel %vm1685, %v1630, %v1666
      %v1701 = vsel %vm1685, %v1631, %v1667
      %v1702 = vsel %vm1685, %v1632, %v1668
      %v1703 = vsel %vm1685, %v1633, %v1669
      %v1704 = vsel %vm1685, %v1634, %v1670
      %v1705 = vsel %vm1685, %v1635, %v1671
      %v1706 = vsel %vm1685, %v1636, %v1672
      %v1707 = vsel %vm1685, %v1637, %v1673
      %v1708 = vsel %vm1685, %v1638, %v1674
      %v1709 = vsel %vm1685, %v1639, %v1675
      %v1710 = vsel %vm1685, %v1640, %v1676
      %v1711 = vsel %vm1685, %v1641, %v1677
      %v1712 = vsel %vm1685, %v1642, %v1678
      %v1713 = vsel %vm1685, %v1643, %v1679
      %v1714 = vsel %vm1685, %v1644, %v1680
      %v1715 = vsel %vm1685, %v1645, %v1681
      %v1716 = vsel %vm1685, %v1646, %v1682
      %v1717 = vsel %vm1685, %v1647, %v1683
      %v1718 = vrot.slane %v1616, 1
      %v1719 = vrot.slane %v1617, 1
      %v1720 = vrot.slane %v1618, 1
      %v1721 = vrot.slane %v1619, 1
      %v1722 = vrot.slane %v1620, 1
      %v1723 = vrot.slane %v1621, 1
      %v1724 = vrot.slane %v1622, 1
      %v1725 = vrot.slane %v1623, 1
      %v1726 = vrot.slane %v1624, 1
      %v1727 = vrot.slane %v1625, 1
      %v1728 = vrot.slane %v1626, 1
      %v1729 = vrot.slane %v1627, 1
      %v1730 = vrot.slane %v1628, 1
      %v1731 = vrot.slane %v1629, 1
      %v1732 = vrot.slane %v1630, 1
      %v1733 = vrot.slane %v1631, 1
      %v1734 = vrot.slane %v1632, 1
      %v1735 = vrot.slane %v1633, 1
      %v1736 = vrot.slane %v1634, 1
      %v1737 = vrot.slane %v1635, 1
      %v1738 = vrot.slane %v1636, 1
      %v1739 = vrot.slane %v1637, 1
      %v1740 = vrot.slane %v1638, 1
      %v1741 = vrot.slane %v1639, 1
      %v1742 = vrot.slane %v1640, 1
      %v1743 = vrot.slane %v1641, 1
      %v1744 = vrot.slane %v1642, 1
      %v1745 = vrot.slane %v1643, 1
      %v1746 = vrot.slane %v1644, 1
      %v1747 = vrot.slane %v1645, 1
      %v1748 = vrot.slane %v1646, 1
      %v1749 = vrot.slane %v1647, 1
      %v1750 = vsel %vm1685, %v1718, %v1616
      %v1751 = vsel %vm1685, %v1719, %v1617
      %v1752 = vsel %vm1685, %v1720, %v1618
      %v1753 = vsel %vm1685, %v1721, %v1619
      %v1754 = vsel %vm1685, %v1722, %v1620
      %v1755 = vsel %vm1685, %v1723, %v1621
      %v1756 = vsel %vm1685, %v1724, %v1622
      %v1757 = vsel %vm1685, %v1725, %v1623
      %v1758 = vsel %vm1685, %v1726, %v1624
      %v1759 = vsel %vm1685, %v1727, %v1625
      %v1760 = vsel %vm1685, %v1728, %v1626
      %v1761 = vsel %vm1685, %v1729, %v1627
      %v1762 = vsel %vm1685, %v1730, %v1628
      %v1763 = vsel %vm1685, %v1731, %v1629
      %v1764 = vsel %vm1685, %v1732, %v1630
      %v1765 = vsel %vm1685, %v1733, %v1631
      %v1766 = vsel %vm1685, %v1734, %v1632
      %v1767 = vsel %vm1685, %v1735, %v1633
      %v1768 = vsel %vm1685, %v1736, %v1634
      %v1769 = vsel %vm1685, %v1737, %v1635
      %v1770 = vsel %vm1685, %v1738, %v1636
      %v1771 = vsel %vm1685, %v1739, %v1637
      %v1772 = vsel %vm1685, %v1740, %v1638
      %v1773 = vsel %vm1685, %v1741, %v1639
      %v1774 = vsel %vm1685, %v1742, %v1640
      %v1775 = vsel %vm1685, %v1743, %v1641
      %v1776 = vsel %vm1685, %v1744, %v1642
      %v1777 = vsel %vm1685, %v1745, %v1643
      %v1778 = vsel %vm1685, %v1746, %v1644
      %v1779 = vsel %vm1685, %v1747, %v1645
      %v1780 = vsel %vm1685, %v1748, %v1646
      %v1781 = vsel %vm1685, %v1749, %v1647
      %1782 = vrot.lane.b32.xlu0 %v1702, 1
      %v1783 = vpop.permute.xlu0 %1782
      %1784 = vrot.lane.b32.xlu0 %v1703, 1
      %v1785 = vpop.permute.xlu0 %1784
      %1786 = vrot.lane.b32.xlu0 %v1704, 1
      %v1787 = vpop.permute.xlu0 %1786
      %1788 = vrot.lane.b32.xlu0 %v1705, 1
      %v1789 = vpop.permute.xlu0 %1788
      %1790 = vrot.lane.b32.xlu0 %v1706, 1
      %v1791 = vpop.permute.xlu0 %1790
      %1792 = vrot.lane.b32.xlu0 %v1707, 1
      %v1793 = vpop.permute.xlu0 %1792
      %1794 = vrot.lane.b32.xlu0 %v1708, 1
      %v1795 = vpop.permute.xlu0 %1794
      %1796 = vrot.lane.b32.xlu0 %v1709, 1
      %v1797 = vpop.permute.xlu0 %1796
      %1798 = vrot.lane.b32.xlu0 %v1710, 1
      %v1799 = vpop.permute.xlu0 %1798
      %1800 = vrot.lane.b32.xlu0 %v1711, 1
      %v1801 = vpop.permute.xlu0 %1800
      %1802 = vrot.lane.b32.xlu0 %v1712, 1
      %v1803 = vpop.permute.xlu0 %1802
      %1804 = vrot.lane.b32.xlu0 %v1713, 1
      %v1805 = vpop.permute.xlu0 %1804
      %1806 = vrot.lane.b32.xlu0 %v1714, 1
      %v1807 = vpop.permute.xlu0 %1806
      %1808 = vrot.lane.b32.xlu0 %v1715, 1
      %v1809 = vpop.permute.xlu0 %1808
      %1810 = vrot.lane.b32.xlu0 %v1716, 1
      %v1811 = vpop.permute.xlu0 %1810
      %1812 = vrot.lane.b32.xlu0 %v1717, 1
      %v1813 = vpop.permute.xlu0 %1812
      %v1814 = vlaneseq
      %v1815 = vand.u32 %v1814, 127
      %vm1816 = vcmp.lt.s32.totalorder %v1815, 1
      %v1817 = vsel %vm1816, %v1811, %v1813
      %v1818 = vsel %vm1816, %v1809, %v1811
      %v1819 = vsel %vm1816, %v1807, %v1809
      %v1820 = vsel %vm1816, %v1805, %v1807
      %v1821 = vsel %vm1816, %v1803, %v1805
      %v1822 = vsel %vm1816, %v1801, %v1803
      %v1823 = vsel %vm1816, %v1799, %v1801
      %v1824 = vsel %vm1816, %v1797, %v1799
      %v1825 = vsel %vm1816, %v1795, %v1797
      %v1826 = vsel %vm1816, %v1793, %v1795
      %v1827 = vsel %vm1816, %v1791, %v1793
      %v1828 = vsel %vm1816, %v1789, %v1791
      %v1829 = vsel %vm1816, %v1787, %v1789
      %v1830 = vsel %vm1816, %v1785, %v1787
      %v1831 = vsel %vm1816, %v1783, %v1785
      %v1832 = vsel %vm1816, %v1813, %v1783
      %v1835 = vlaneseq
      %v1836 = vshrl.u32 %v1835, 7
      %v1837 = vsub.s32 0, %v1836
      %v1838 = vrot.slane %v471, %v1837
      %v1839 = vlaneseq
      %v1840 = vshrl.u32 %v1839, 7
      %v1841 = vsub.s32 1, %v1840
      %v1842 = vrot.slane %v471, %v1841
      %v1843 = vlaneseq
      %v1844 = vshrl.u32 %v1843, 7
      %v1845 = vsub.s32 2, %v1844
      %v1846 = vrot.slane %v471, %v1845
      %v1847 = vlaneseq
      %v1848 = vshrl.u32 %v1847, 7
      %v1849 = vsub.s32 3, %v1848
      %v1850 = vrot.slane %v471, %v1849
      %v1851 = vlaneseq
      %v1852 = vshrl.u32 %v1851, 7
      %v1853 = vsub.s32 4, %v1852
      %v1854 = vrot.slane %v471, %v1853
      %v1855 = vlaneseq
      %v1856 = vshrl.u32 %v1855, 7
      %v1857 = vsub.s32 5, %v1856
      %v1858 = vrot.slane %v471, %v1857
      %v1859 = vlaneseq
      %v1860 = vshrl.u32 %v1859, 7
      %v1861 = vsub.s32 6, %v1860
      %v1862 = vrot.slane %v471, %v1861
      %v1863 = vlaneseq
      %v1864 = vshrl.u32 %v1863, 7
      %v1865 = vsub.s32 7, %v1864
      %v1866 = vrot.slane %v471, %v1865
      %v1867 = vlaneseq
      %v1868 = vshrl.u32 %v1867, 7
      %v1869 = vsub.s32 0, %v1868
      %v1870 = vrot.slane %v475, %v1869
      %v1871 = vlaneseq
      %v1872 = vshrl.u32 %v1871, 7
      %v1873 = vsub.s32 1, %v1872
      %v1874 = vrot.slane %v475, %v1873
      %v1875 = vlaneseq
      %v1876 = vshrl.u32 %v1875, 7
      %v1877 = vsub.s32 2, %v1876
      %v1878 = vrot.slane %v475, %v1877
      %v1879 = vlaneseq
      %v1880 = vshrl.u32 %v1879, 7
      %v1881 = vsub.s32 3, %v1880
      %v1882 = vrot.slane %v475, %v1881
      %v1883 = vlaneseq
      %v1884 = vshrl.u32 %v1883, 7
      %v1885 = vsub.s32 4, %v1884
      %v1886 = vrot.slane %v475, %v1885
      %v1887 = vlaneseq
      %v1888 = vshrl.u32 %v1887, 7
      %v1889 = vsub.s32 5, %v1888
      %v1890 = vrot.slane %v475, %v1889
      %v1891 = vlaneseq
      %v1892 = vshrl.u32 %v1891, 7
      %v1893 = vsub.s32 6, %v1892
      %v1894 = vrot.slane %v475, %v1893
      %v1895 = vlaneseq
      %v1896 = vshrl.u32 %v1895, 7
      %v1897 = vsub.s32 7, %v1896
      %v1898 = vrot.slane %v475, %v1897
      %v1915 = vmul.f32 %v1832, %v1838
      %v1916 = vmul.f32 %v1831, %v1842
      %v1917 = vmul.f32 %v1830, %v1846
      %v1918 = vmul.f32 %v1829, %v1850
      %v1919 = vmul.f32 %v1828, %v1854
      %v1920 = vmul.f32 %v1827, %v1858
      %v1921 = vmul.f32 %v1826, %v1862
      %v1922 = vmul.f32 %v1825, %v1866
      %v1923 = vmul.f32 %v1824, %v1870
      %v1924 = vmul.f32 %v1823, %v1874
      %v1925 = vmul.f32 %v1822, %v1878
      %v1926 = vmul.f32 %v1821, %v1882
      %v1927 = vmul.f32 %v1820, %v1886
      %v1928 = vmul.f32 %v1819, %v1890
      %v1929 = vmul.f32 %v1818, %v1894
      %v1930 = vmul.f32 %v1817, %v1898
      %1931 = vrot.lane.b32.xlu0 %v1766, 1
      %v1932 = vpop.permute.xlu0 %1931
      %1933 = vrot.lane.b32.xlu0 %v1767, 1
      %v1934 = vpop.permute.xlu0 %1933
      %1935 = vrot.lane.b32.xlu0 %v1768, 1
      %v1936 = vpop.permute.xlu0 %1935
      %1937 = vrot.lane.b32.xlu0 %v1769, 1
      %v1938 = vpop.permute.xlu0 %1937
      %1939 = vrot.lane.b32.xlu0 %v1770, 1
      %v1940 = vpop.permute.xlu0 %1939
      %1941 = vrot.lane.b32.xlu0 %v1771, 1
      %v1942 = vpop.permute.xlu0 %1941
      %1943 = vrot.lane.b32.xlu0 %v1772, 1
      %v1944 = vpop.permute.xlu0 %1943
      %1945 = vrot.lane.b32.xlu0 %v1773, 1
      %v1946 = vpop.permute.xlu0 %1945
      %1947 = vrot.lane.b32.xlu0 %v1774, 1
      %v1948 = vpop.permute.xlu0 %1947
      %1949 = vrot.lane.b32.xlu0 %v1775, 1
      %v1950 = vpop.permute.xlu0 %1949
      %1951 = vrot.lane.b32.xlu0 %v1776, 1
      %v1952 = vpop.permute.xlu0 %1951
      %1953 = vrot.lane.b32.xlu0 %v1777, 1
      %v1954 = vpop.permute.xlu0 %1953
      %1955 = vrot.lane.b32.xlu0 %v1778, 1
      %v1956 = vpop.permute.xlu0 %1955
      %1957 = vrot.lane.b32.xlu0 %v1779, 1
      %v1958 = vpop.permute.xlu0 %1957
      %1959 = vrot.lane.b32.xlu0 %v1780, 1
      %v1960 = vpop.permute.xlu0 %1959
      %1961 = vrot.lane.b32.xlu0 %v1781, 1
      %v1962 = vpop.permute.xlu0 %1961
      %v1963 = vsel %vm1816, %v1960, %v1962
      %v1964 = vsel %vm1816, %v1958, %v1960
      %v1965 = vsel %vm1816, %v1956, %v1958
      %v1966 = vsel %vm1816, %v1954, %v1956
      %v1967 = vsel %vm1816, %v1952, %v1954
      %v1968 = vsel %vm1816, %v1950, %v1952
      %v1969 = vsel %vm1816, %v1948, %v1950
      %v1970 = vsel %vm1816, %v1946, %v1948
      %v1971 = vsel %vm1816, %v1944, %v1946
      %v1972 = vsel %vm1816, %v1942, %v1944
      %v1973 = vsel %vm1816, %v1940, %v1942
      %v1974 = vsel %vm1816, %v1938, %v1940
      %v1975 = vsel %vm1816, %v1936, %v1938
      %v1976 = vsel %vm1816, %v1934, %v1936
      %v1977 = vsel %vm1816, %v1932, %v1934
      %v1978 = vsel %vm1816, %v1962, %v1932
      %v1979 = vmul.f32 %v1978, %v1838
      %v1980 = vmul.f32 %v1977, %v1842
      %v1981 = vmul.f32 %v1976, %v1846
      %v1982 = vmul.f32 %v1975, %v1850
      %v1983 = vmul.f32 %v1974, %v1854
      %v1984 = vmul.f32 %v1973, %v1858
      %v1985 = vmul.f32 %v1972, %v1862
      %v1986 = vmul.f32 %v1971, %v1866
      %v1987 = vmul.f32 %v1970, %v1870
      %v1988 = vmul.f32 %v1969, %v1874
      %v1989 = vmul.f32 %v1968, %v1878
      %v1990 = vmul.f32 %v1967, %v1882
      %v1991 = vmul.f32 %v1966, %v1886
      %v1992 = vmul.f32 %v1965, %v1890
      %v1993 = vmul.f32 %v1964, %v1894
      %v1994 = vmul.f32 %v1963, %v1898
      %v1995 = vld [vmem:[%s4] sm:$0xff]
      %1997 = vset.pattern.permute.xlu0 0
      %1998 = vperm.xlu0 %1997, %v1995
      %v1999 = vpop.permute.xlu0 %1998
      %v2001 = vmul.f32 %v1999, %v1927
      %v2002 = vmul.f32 %v1999, %v1928
      %v2003 = vmul.f32 %v1999, %v1929
      %v2004 = vmul.f32 %v1999, %v1930
      %2005 = vset.pattern.permute.xlu0 1
      %2006 = vperm.xlu0 %2005, %v1995
      %v2007 = vpop.permute.xlu0 %2006
      %v2009 = vmul.f32 %v2007, %v1991
      %v2010 = vmul.f32 %v2007, %v1992
      %v2011 = vmul.f32 %v2007, %v1993
      %v2012 = vmul.f32 %v2007, %v1994
      %v2013 = vadd.f32 %v2001, %v2009
      %v2014 = vadd.f32 %v2002, %v2010
      %v2015 = vadd.f32 %v2003, %v2011
      %v2016 = vadd.f32 %v2004, %v2012
      %2017 = vset.pattern.permute.xlu0 2
      %2018 = vperm.xlu0 %2017, %v1995
      %v2019 = vpop.permute.xlu0 %2018
      %v2021 = vmul.f32 %v2019, %v1698
      %v2022 = vmul.f32 %v2019, %v1699
      %v2023 = vmul.f32 %v2019, %v1700
      %v2024 = vmul.f32 %v2019, %v1701
      %2025 = vset.pattern.permute.xlu0 3
      %2026 = vperm.xlu0 %2025, %v1995
      %v2027 = vpop.permute.xlu0 %2026
      %v2029 = vmul.f32 %v2027, %v1762
      %v2030 = vmul.f32 %v2027, %v1763
      %v2031 = vmul.f32 %v2027, %v1764
      %v2032 = vmul.f32 %v2027, %v1765
      %v2033 = vadd.f32 %v2021, %v2029
      %v2034 = vadd.f32 %v2022, %v2030
      %v2035 = vadd.f32 %v2023, %v2031
      %v2036 = vadd.f32 %v2024, %v2032
      %v2037 = vadd.f32 %v2013, %v2033
      %v2038 = vadd.f32 %v2014, %v2034
      %v2039 = vadd.f32 %v2015, %v2035
      %v2040 = vadd.f32 %v2016, %v2036
      %2041 = vset.pattern.permute.xlu0 4
      %2042 = vperm.xlu0 %2041, %v1995
      %v2043 = vpop.permute.xlu0 %2042
      %v2045 = vmul.f32 %v2043, %v1714
      %v2046 = vmul.f32 %v2043, %v1715
      %v2047 = vmul.f32 %v2043, %v1716
      %v2048 = vmul.f32 %v2043, %v1717
      %2049 = vset.pattern.permute.xlu0 5
      %2050 = vperm.xlu0 %2049, %v1995
      %v2051 = vpop.permute.xlu0 %2050
      %v2053 = vmul.f32 %v2051, %v1778
      %v2054 = vmul.f32 %v2051, %v1779
      %v2055 = vmul.f32 %v2051, %v1780
      %v2056 = vmul.f32 %v2051, %v1781
      %v2057 = vadd.f32 %v2045, %v2053
      %v2058 = vadd.f32 %v2046, %v2054
      %v2059 = vadd.f32 %v2047, %v2055
      %v2060 = vadd.f32 %v2048, %v2056
      %v2061 = vadd.f32 %v2037, %v2057
      %v2062 = vadd.f32 %v2038, %v2058
      %v2063 = vadd.f32 %v2039, %v2059
      %v2064 = vadd.f32 %v2040, %v2060
      %2065 = vset.pattern.permute.xlu0 6
      %2066 = vperm.xlu0 %2065, %v1995
      %v2067 = vpop.permute.xlu0 %2066
      %v2069 = vmul.f32 %v2067, %v1923
      %v2070 = vmul.f32 %v2067, %v1924
      %v2071 = vmul.f32 %v2067, %v1925
      %v2072 = vmul.f32 %v2067, %v1926
      %2073 = vset.pattern.permute.xlu0 7
      %2074 = vperm.xlu0 %2073, %v1995
      %v2075 = vpop.permute.xlu0 %2074
      %v2077 = vmul.f32 %v2075, %v1987
      %v2078 = vmul.f32 %v2075, %v1988
      %v2079 = vmul.f32 %v2075, %v1989
      %v2080 = vmul.f32 %v2075, %v1990
      %v2081 = vadd.f32 %v2069, %v2077
      %v2082 = vadd.f32 %v2070, %v2078
      %v2083 = vadd.f32 %v2071, %v2079
      %v2084 = vadd.f32 %v2072, %v2080
      %2085 = vset.pattern.permute.xlu0 8
      %2086 = vperm.xlu0 %2085, %v1995
      %v2087 = vpop.permute.xlu0 %2086
      %v2089 = vmul.f32 %v2087, %v1694
      %v2090 = vmul.f32 %v2087, %v1695
      %v2091 = vmul.f32 %v2087, %v1696
      %v2092 = vmul.f32 %v2087, %v1697
      %2093 = vset.pattern.permute.xlu0 9
      %2094 = vperm.xlu0 %2093, %v1995
      %v2095 = vpop.permute.xlu0 %2094
      %v2097 = vmul.f32 %v2095, %v1758
      %v2098 = vmul.f32 %v2095, %v1759
      %v2099 = vmul.f32 %v2095, %v1760
      %v2100 = vmul.f32 %v2095, %v1761
      %v2101 = vadd.f32 %v2089, %v2097
      %v2102 = vadd.f32 %v2090, %v2098
      %v2103 = vadd.f32 %v2091, %v2099
      %v2104 = vadd.f32 %v2092, %v2100
      %v2105 = vadd.f32 %v2081, %v2101
      %v2106 = vadd.f32 %v2082, %v2102
      %v2107 = vadd.f32 %v2083, %v2103
      %v2108 = vadd.f32 %v2084, %v2104
      %2109 = vset.pattern.permute.xlu0 10
      %2110 = vperm.xlu0 %2109, %v1995
      %v2111 = vpop.permute.xlu0 %2110
      %v2113 = vmul.f32 %v2111, %v1710
      %v2114 = vmul.f32 %v2111, %v1711
      %v2115 = vmul.f32 %v2111, %v1712
      %v2116 = vmul.f32 %v2111, %v1713
      %2117 = vset.pattern.permute.xlu0 11
      %2118 = vperm.xlu0 %2117, %v1995
      %v2119 = vpop.permute.xlu0 %2118
      %v2121 = vmul.f32 %v2119, %v1774
      %v2122 = vmul.f32 %v2119, %v1775
      %v2123 = vmul.f32 %v2119, %v1776
      %v2124 = vmul.f32 %v2119, %v1777
      %v2125 = vadd.f32 %v2113, %v2121
      %v2126 = vadd.f32 %v2114, %v2122
      %v2127 = vadd.f32 %v2115, %v2123
      %v2128 = vadd.f32 %v2116, %v2124
      %v2129 = vadd.f32 %v2105, %v2125
      %v2130 = vadd.f32 %v2106, %v2126
      %v2131 = vadd.f32 %v2107, %v2127
      %v2132 = vadd.f32 %v2108, %v2128
      %2133 = vset.pattern.permute.xlu0 12
      %2134 = vperm.xlu0 %2133, %v1995
      %v2135 = vpop.permute.xlu0 %2134
      %v2137 = vmul.f32 %v2135, %v1927
      %v2138 = vmul.f32 %v2135, %v1928
      %v2139 = vmul.f32 %v2135, %v1929
      %v2140 = vmul.f32 %v2135, %v1930
      %2141 = vset.pattern.permute.xlu0 13
      %2142 = vperm.xlu0 %2141, %v1995
      %v2143 = vpop.permute.xlu0 %2142
      %v2145 = vmul.f32 %v2143, %v1991
      %v2146 = vmul.f32 %v2143, %v1992
      %v2147 = vmul.f32 %v2143, %v1993
      %v2148 = vmul.f32 %v2143, %v1994
      %v2149 = vadd.f32 %v2137, %v2145
      %v2150 = vadd.f32 %v2138, %v2146
      %v2151 = vadd.f32 %v2139, %v2147
      %v2152 = vadd.f32 %v2140, %v2148
      %2153 = vset.pattern.permute.xlu0 14
      %2154 = vperm.xlu0 %2153, %v1995
      %v2155 = vpop.permute.xlu0 %2154
      %v2157 = vmul.f32 %v2155, %v1698
      %v2158 = vmul.f32 %v2155, %v1699
      %v2159 = vmul.f32 %v2155, %v1700
      %v2160 = vmul.f32 %v2155, %v1701
      %2161 = vset.pattern.permute.xlu0 15
      %2162 = vperm.xlu0 %2161, %v1995
      %v2163 = vpop.permute.xlu0 %2162
      %v2165 = vmul.f32 %v2163, %v1762
      %v2166 = vmul.f32 %v2163, %v1763
      %v2167 = vmul.f32 %v2163, %v1764
      %v2168 = vmul.f32 %v2163, %v1765
      %v2169 = vadd.f32 %v2157, %v2165
      %v2170 = vadd.f32 %v2158, %v2166
      %v2171 = vadd.f32 %v2159, %v2167
      %v2172 = vadd.f32 %v2160, %v2168
      %v2173 = vadd.f32 %v2149, %v2169
      %v2174 = vadd.f32 %v2150, %v2170
      %v2175 = vadd.f32 %v2151, %v2171
      %v2176 = vadd.f32 %v2152, %v2172
      %2177 = vset.pattern.permute.xlu0 16
      %2178 = vperm.xlu0 %2177, %v1995
      %v2179 = vpop.permute.xlu0 %2178
      %v2181 = vmul.f32 %v2179, %v1714
      %v2182 = vmul.f32 %v2179, %v1715
      %v2183 = vmul.f32 %v2179, %v1716
      %v2184 = vmul.f32 %v2179, %v1717
      %2185 = vset.pattern.permute.xlu0 17
      %2186 = vperm.xlu0 %2185, %v1995
      %v2187 = vpop.permute.xlu0 %2186
      %v2189 = vmul.f32 %v2187, %v1778
      %v2190 = vmul.f32 %v2187, %v1779
      %v2191 = vmul.f32 %v2187, %v1780
      %v2192 = vmul.f32 %v2187, %v1781
      %v2193 = vadd.f32 %v2181, %v2189
      %v2194 = vadd.f32 %v2182, %v2190
      %v2195 = vadd.f32 %v2183, %v2191
      %v2196 = vadd.f32 %v2184, %v2192
      %v2197 = vadd.f32 %v2173, %v2193
      %v2198 = vadd.f32 %v2174, %v2194
      %v2199 = vadd.f32 %v2175, %v2195
      %v2200 = vadd.f32 %v2176, %v2196
      %2201 = vrot.lane.b32.xlu0 %v2061, 8
      %v2202 = vpop.permute.xlu0 %2201
      %2203 = vrot.lane.b32.xlu0 %v2062, 8
      %v2204 = vpop.permute.xlu0 %2203
      %2205 = vrot.lane.b32.xlu0 %v2063, 8
      %v2206 = vpop.permute.xlu0 %2205
      %2207 = vrot.lane.b32.xlu0 %v2064, 8
      %v2208 = vpop.permute.xlu0 %2207
      %vm2209 = vcmp.lt.s32.totalorder %v1815, 8
      %v2210 = vsel %vm2209, %v2206, %v2208
      %v2211 = vsel %vm2209, %v2204, %v2206
      %v2212 = vsel %vm2209, %v2202, %v2204
      %v2213 = vsel %vm2209, %v2208, %v2202
      %v2215 = vlaneseq
      %v2216 = vshrl.u32 %v2215, 7
      %v2217 = vsub.s32 0, %v2216
      %v2218 = vrot.slane %v480, %v2217
      %v2219 = vlaneseq
      %v2220 = vshrl.u32 %v2219, 7
      %v2221 = vsub.s32 1, %v2220
      %v2222 = vrot.slane %v480, %v2221
      %v2223 = vlaneseq
      %v2224 = vshrl.u32 %v2223, 7
      %v2225 = vsub.s32 2, %v2224
      %v2226 = vrot.slane %v480, %v2225
      %v2227 = vlaneseq
      %v2228 = vshrl.u32 %v2227, 7
      %v2229 = vsub.s32 3, %v2228
      %v2230 = vrot.slane %v480, %v2229
      %v2235 = vmul.f32 %v2213, %v2218
      %v2236 = vmul.f32 %v2212, %v2222
      %v2237 = vmul.f32 %v2211, %v2226
      %v2238 = vmul.f32 %v2210, %v2230
      %v2239 = vadd.f32 %v2235, %v2129
      %v2240 = vadd.f32 %v2236, %v2130
      %v2241 = vadd.f32 %v2237, %v2131
      %v2242 = vadd.f32 %v2238, %v2132
      %v2243 = vadd.f32 %v2239, %v2197
      %v2244 = vadd.f32 %v2240, %v2198
      %v2245 = vadd.f32 %v2241, %v2199
      %v2246 = vadd.f32 %v2242, %v2200
      %2247 = vset.pattern.permute.xlu0 18
      %2248 = vperm.xlu0 %2247, %v1995
      %v2249 = vpop.permute.xlu0 %2248
      %v2251 = vmul.f32 %v2249, %v1919
      %v2252 = vmul.f32 %v2249, %v1920
      %v2253 = vmul.f32 %v2249, %v1921
      %v2254 = vmul.f32 %v2249, %v1922
      %2255 = vset.pattern.permute.xlu0 19
      %2256 = vperm.xlu0 %2255, %v1995
      %v2257 = vpop.permute.xlu0 %2256
      %v2259 = vmul.f32 %v2257, %v1983
      %v2260 = vmul.f32 %v2257, %v1984
      %v2261 = vmul.f32 %v2257, %v1985
      %v2262 = vmul.f32 %v2257, %v1986
      %v2263 = vadd.f32 %v2251, %v2259
      %v2264 = vadd.f32 %v2252, %v2260
      %v2265 = vadd.f32 %v2253, %v2261
      %v2266 = vadd.f32 %v2254, %v2262
      %2267 = vset.pattern.permute.xlu0 20
      %2268 = vperm.xlu0 %2267, %v1995
      %v2269 = vpop.permute.xlu0 %2268
      %v2271 = vmul.f32 %v2269, %v1690
      %v2272 = vmul.f32 %v2269, %v1691
      %v2273 = vmul.f32 %v2269, %v1692
      %v2274 = vmul.f32 %v2269, %v1693
      %2275 = vset.pattern.permute.xlu0 21
      %2276 = vperm.xlu0 %2275, %v1995
      %v2277 = vpop.permute.xlu0 %2276
      %v2279 = vmul.f32 %v2277, %v1754
      %v2280 = vmul.f32 %v2277, %v1755
      %v2281 = vmul.f32 %v2277, %v1756
      %v2282 = vmul.f32 %v2277, %v1757
      %v2283 = vadd.f32 %v2271, %v2279
      %v2284 = vadd.f32 %v2272, %v2280
      %v2285 = vadd.f32 %v2273, %v2281
      %v2286 = vadd.f32 %v2274, %v2282
      %v2287 = vadd.f32 %v2263, %v2283
      %v2288 = vadd.f32 %v2264, %v2284
      %v2289 = vadd.f32 %v2265, %v2285
      %v2290 = vadd.f32 %v2266, %v2286
      %2291 = vset.pattern.permute.xlu0 22
      %2292 = vperm.xlu0 %2291, %v1995
      %v2293 = vpop.permute.xlu0 %2292
      %v2295 = vmul.f32 %v2293, %v1706
      %v2296 = vmul.f32 %v2293, %v1707
      %v2297 = vmul.f32 %v2293, %v1708
      %v2298 = vmul.f32 %v2293, %v1709
      %2299 = vset.pattern.permute.xlu0 23
      %2300 = vperm.xlu0 %2299, %v1995
      %v2301 = vpop.permute.xlu0 %2300
      %v2303 = vmul.f32 %v2301, %v1770
      %v2304 = vmul.f32 %v2301, %v1771
      %v2305 = vmul.f32 %v2301, %v1772
      %v2306 = vmul.f32 %v2301, %v1773
      %v2307 = vadd.f32 %v2295, %v2303
      %v2308 = vadd.f32 %v2296, %v2304
      %v2309 = vadd.f32 %v2297, %v2305
      %v2310 = vadd.f32 %v2298, %v2306
      %v2311 = vadd.f32 %v2287, %v2307
      %v2312 = vadd.f32 %v2288, %v2308
      %v2313 = vadd.f32 %v2289, %v2309
      %v2314 = vadd.f32 %v2290, %v2310
      %2315 = vset.pattern.permute.xlu0 24
      %2316 = vperm.xlu0 %2315, %v1995
      %v2317 = vpop.permute.xlu0 %2316
      %v2319 = vmul.f32 %v2317, %v1915
      %v2320 = vmul.f32 %v2317, %v1916
      %v2321 = vmul.f32 %v2317, %v1917
      %v2322 = vmul.f32 %v2317, %v1918
      %2323 = vset.pattern.permute.xlu0 25
      %2324 = vperm.xlu0 %2323, %v1995
      %v2325 = vpop.permute.xlu0 %2324
      %v2327 = vmul.f32 %v2325, %v1979
      %v2328 = vmul.f32 %v2325, %v1980
      %v2329 = vmul.f32 %v2325, %v1981
      %v2330 = vmul.f32 %v2325, %v1982
      %v2331 = vadd.f32 %v2319, %v2327
      %v2332 = vadd.f32 %v2320, %v2328
      %v2333 = vadd.f32 %v2321, %v2329
      %v2334 = vadd.f32 %v2322, %v2330
      %2335 = vset.pattern.permute.xlu0 26
      %2336 = vperm.xlu0 %2335, %v1995
      %v2337 = vpop.permute.xlu0 %2336
      %v2339 = vmul.f32 %v2337, %v1686
      %v2340 = vmul.f32 %v2337, %v1687
      %v2341 = vmul.f32 %v2337, %v1688
      %v2342 = vmul.f32 %v2337, %v1689
      %2343 = vset.pattern.permute.xlu0 27
      %2344 = vperm.xlu0 %2343, %v1995
      %v2345 = vpop.permute.xlu0 %2344
      %v2347 = vmul.f32 %v2345, %v1750
      %v2348 = vmul.f32 %v2345, %v1751
      %v2349 = vmul.f32 %v2345, %v1752
      %v2350 = vmul.f32 %v2345, %v1753
      %v2351 = vadd.f32 %v2339, %v2347
      %v2352 = vadd.f32 %v2340, %v2348
      %v2353 = vadd.f32 %v2341, %v2349
      %v2354 = vadd.f32 %v2342, %v2350
      %v2355 = vadd.f32 %v2331, %v2351
      %v2356 = vadd.f32 %v2332, %v2352
      %v2357 = vadd.f32 %v2333, %v2353
      %v2358 = vadd.f32 %v2334, %v2354
      %2359 = vset.pattern.permute.xlu0 28
      %2360 = vperm.xlu0 %2359, %v1995
      %v2361 = vpop.permute.xlu0 %2360
      %v2363 = vmul.f32 %v2361, %v1702
      %v2364 = vmul.f32 %v2361, %v1703
      %v2365 = vmul.f32 %v2361, %v1704
      %v2366 = vmul.f32 %v2361, %v1705
      %2367 = vset.pattern.permute.xlu0 29
      %2368 = vperm.xlu0 %2367, %v1995
      %v2369 = vpop.permute.xlu0 %2368
      %v2371 = vmul.f32 %v2369, %v1766
      %v2372 = vmul.f32 %v2369, %v1767
      %v2373 = vmul.f32 %v2369, %v1768
      %v2374 = vmul.f32 %v2369, %v1769
      %v2375 = vadd.f32 %v2363, %v2371
      %v2376 = vadd.f32 %v2364, %v2372
      %v2377 = vadd.f32 %v2365, %v2373
      %v2378 = vadd.f32 %v2366, %v2374
      %v2379 = vadd.f32 %v2355, %v2375
      %v2380 = vadd.f32 %v2356, %v2376
      %v2381 = vadd.f32 %v2357, %v2377
      %v2382 = vadd.f32 %v2358, %v2378
      %2383 = vset.pattern.permute.xlu0 30
      %2384 = vperm.xlu0 %2383, %v1995
      %v2385 = vpop.permute.xlu0 %2384
      %v2387 = vmul.f32 %v2385, %v1919
      %v2388 = vmul.f32 %v2385, %v1920
      %v2389 = vmul.f32 %v2385, %v1921
      %v2390 = vmul.f32 %v2385, %v1922
      %2391 = vset.pattern.permute.xlu0 31
      %2392 = vperm.xlu0 %2391, %v1995
      %v2393 = vpop.permute.xlu0 %2392
      %v2395 = vmul.f32 %v2393, %v1983
      %v2396 = vmul.f32 %v2393, %v1984
      %v2397 = vmul.f32 %v2393, %v1985
      %v2398 = vmul.f32 %v2393, %v1986
      %v2399 = vadd.f32 %v2387, %v2395
      %v2400 = vadd.f32 %v2388, %v2396
      %v2401 = vadd.f32 %v2389, %v2397
      %v2402 = vadd.f32 %v2390, %v2398
      %2403 = vset.pattern.permute.xlu0 32
      %2404 = vperm.xlu0 %2403, %v1995
      %v2405 = vpop.permute.xlu0 %2404
      %v2407 = vmul.f32 %v2405, %v1690
      %v2408 = vmul.f32 %v2405, %v1691
      %v2409 = vmul.f32 %v2405, %v1692
      %v2410 = vmul.f32 %v2405, %v1693
      %2411 = vset.pattern.permute.xlu0 33
      %2412 = vperm.xlu0 %2411, %v1995
      %v2413 = vpop.permute.xlu0 %2412
      %v2415 = vmul.f32 %v2413, %v1754
      %v2416 = vmul.f32 %v2413, %v1755
      %v2417 = vmul.f32 %v2413, %v1756
      %v2418 = vmul.f32 %v2413, %v1757
      %v2419 = vadd.f32 %v2407, %v2415
      %v2420 = vadd.f32 %v2408, %v2416
      %v2421 = vadd.f32 %v2409, %v2417
      %v2422 = vadd.f32 %v2410, %v2418
      %v2423 = vadd.f32 %v2399, %v2419
      %v2424 = vadd.f32 %v2400, %v2420
      %v2425 = vadd.f32 %v2401, %v2421
      %v2426 = vadd.f32 %v2402, %v2422
      %2427 = vset.pattern.permute.xlu0 34
      %2428 = vperm.xlu0 %2427, %v1995
      %v2429 = vpop.permute.xlu0 %2428
      %v2431 = vmul.f32 %v2429, %v1706
      %v2432 = vmul.f32 %v2429, %v1707
      %v2433 = vmul.f32 %v2429, %v1708
      %v2434 = vmul.f32 %v2429, %v1709
      %2435 = vset.pattern.permute.xlu0 35
      %2436 = vperm.xlu0 %2435, %v1995
      %v2437 = vpop.permute.xlu0 %2436
      %v2439 = vmul.f32 %v2437, %v1770
      %v2440 = vmul.f32 %v2437, %v1771
      %v2441 = vmul.f32 %v2437, %v1772
      %v2442 = vmul.f32 %v2437, %v1773
      %v2443 = vadd.f32 %v2431, %v2439
      %v2444 = vadd.f32 %v2432, %v2440
      %v2445 = vadd.f32 %v2433, %v2441
      %v2446 = vadd.f32 %v2434, %v2442
      %v2447 = vadd.f32 %v2423, %v2443
      %v2448 = vadd.f32 %v2424, %v2444
      %v2449 = vadd.f32 %v2425, %v2445
      %v2450 = vadd.f32 %v2426, %v2446
      %2451 = vrot.lane.b32.xlu0 %v2311, 8
      %v2452 = vpop.permute.xlu0 %2451
      %2453 = vrot.lane.b32.xlu0 %v2312, 8
      %v2454 = vpop.permute.xlu0 %2453
      %2455 = vrot.lane.b32.xlu0 %v2313, 8
      %v2456 = vpop.permute.xlu0 %2455
      %2457 = vrot.lane.b32.xlu0 %v2314, 8
      %v2458 = vpop.permute.xlu0 %2457
      %v2459 = vsel %vm2209, %v2456, %v2458
      %v2460 = vsel %vm2209, %v2454, %v2456
      %v2461 = vsel %vm2209, %v2452, %v2454
      %v2462 = vsel %vm2209, %v2458, %v2452
      %v2463 = vmul.f32 %v2462, %v2218
      %v2464 = vmul.f32 %v2461, %v2222
      %v2465 = vmul.f32 %v2460, %v2226
      %v2466 = vmul.f32 %v2459, %v2230
      %v2467 = vadd.f32 %v2463, %v2379
      %v2468 = vadd.f32 %v2464, %v2380
      %v2469 = vadd.f32 %v2465, %v2381
      %v2470 = vadd.f32 %v2466, %v2382
      %v2471 = vadd.f32 %v2467, %v2447
      %v2472 = vadd.f32 %v2468, %v2448
      %v2473 = vadd.f32 %v2469, %v2449
      %v2474 = vadd.f32 %v2470, %v2450
      %2475 = vset.pattern.permute.xlu0 36
      %2476 = vperm.xlu0 %2475, %v1995
      %v2477 = vpop.permute.xlu0 %2476
      %v2479 = vmul.f32 %v2477, %v1927
      %v2480 = vmul.f32 %v2477, %v1928
      %v2481 = vmul.f32 %v2477, %v1929
      %v2482 = vmul.f32 %v2477, %v1930
      %2483 = vset.pattern.permute.xlu0 37
      %2484 = vperm.xlu0 %2483, %v1995
      %v2485 = vpop.permute.xlu0 %2484
      %v2487 = vmul.f32 %v2485, %v1991
      %v2488 = vmul.f32 %v2485, %v1992
      %v2489 = vmul.f32 %v2485, %v1993
      %v2490 = vmul.f32 %v2485, %v1994
      %v2491 = vadd.f32 %v2479, %v2487
      %v2492 = vadd.f32 %v2480, %v2488
      %v2493 = vadd.f32 %v2481, %v2489
      %v2494 = vadd.f32 %v2482, %v2490
      %2495 = vset.pattern.permute.xlu0 38
      %2496 = vperm.xlu0 %2495, %v1995
      %v2497 = vpop.permute.xlu0 %2496
      %v2499 = vmul.f32 %v2497, %v1698
      %v2500 = vmul.f32 %v2497, %v1699
      %v2501 = vmul.f32 %v2497, %v1700
      %v2502 = vmul.f32 %v2497, %v1701
      %2503 = vset.pattern.permute.xlu0 39
      %2504 = vperm.xlu0 %2503, %v1995
      %v2505 = vpop.permute.xlu0 %2504
      %v2507 = vmul.f32 %v2505, %v1762
      %v2508 = vmul.f32 %v2505, %v1763
      %v2509 = vmul.f32 %v2505, %v1764
      %v2510 = vmul.f32 %v2505, %v1765
      %v2511 = vadd.f32 %v2499, %v2507
      %v2512 = vadd.f32 %v2500, %v2508
      %v2513 = vadd.f32 %v2501, %v2509
      %v2514 = vadd.f32 %v2502, %v2510
      %v2515 = vadd.f32 %v2491, %v2511
      %v2516 = vadd.f32 %v2492, %v2512
      %v2517 = vadd.f32 %v2493, %v2513
      %v2518 = vadd.f32 %v2494, %v2514
      %2519 = vset.pattern.permute.xlu0 40
      %2520 = vperm.xlu0 %2519, %v1995
      %v2521 = vpop.permute.xlu0 %2520
      %v2523 = vmul.f32 %v2521, %v1714
      %v2524 = vmul.f32 %v2521, %v1715
      %v2525 = vmul.f32 %v2521, %v1716
      %v2526 = vmul.f32 %v2521, %v1717
      %2527 = vset.pattern.permute.xlu0 41
      %2528 = vperm.xlu0 %2527, %v1995
      %v2529 = vpop.permute.xlu0 %2528
      %v2531 = vmul.f32 %v2529, %v1778
      %v2532 = vmul.f32 %v2529, %v1779
      %v2533 = vmul.f32 %v2529, %v1780
      %v2534 = vmul.f32 %v2529, %v1781
      %v2535 = vadd.f32 %v2523, %v2531
      %v2536 = vadd.f32 %v2524, %v2532
      %v2537 = vadd.f32 %v2525, %v2533
      %v2538 = vadd.f32 %v2526, %v2534
      %v2539 = vadd.f32 %v2515, %v2535
      %v2540 = vadd.f32 %v2516, %v2536
      %v2541 = vadd.f32 %v2517, %v2537
      %v2542 = vadd.f32 %v2518, %v2538
      %2543 = vset.pattern.permute.xlu0 42
      %2544 = vperm.xlu0 %2543, %v1995
      %v2545 = vpop.permute.xlu0 %2544
      %v2547 = vmul.f32 %v2545, %v1923
      %v2548 = vmul.f32 %v2545, %v1924
      %v2549 = vmul.f32 %v2545, %v1925
      %v2550 = vmul.f32 %v2545, %v1926
      %2551 = vset.pattern.permute.xlu0 43
      %2552 = vperm.xlu0 %2551, %v1995
      %v2553 = vpop.permute.xlu0 %2552
      %v2555 = vmul.f32 %v2553, %v1987
      %v2556 = vmul.f32 %v2553, %v1988
      %v2557 = vmul.f32 %v2553, %v1989
      %v2558 = vmul.f32 %v2553, %v1990
      %v2559 = vadd.f32 %v2547, %v2555
      %v2560 = vadd.f32 %v2548, %v2556
      %v2561 = vadd.f32 %v2549, %v2557
      %v2562 = vadd.f32 %v2550, %v2558
      %2563 = vset.pattern.permute.xlu0 44
      %2564 = vperm.xlu0 %2563, %v1995
      %v2565 = vpop.permute.xlu0 %2564
      %v2567 = vmul.f32 %v2565, %v1694
      %v2568 = vmul.f32 %v2565, %v1695
      %v2569 = vmul.f32 %v2565, %v1696
      %v2570 = vmul.f32 %v2565, %v1697
      %2571 = vset.pattern.permute.xlu0 45
      %2572 = vperm.xlu0 %2571, %v1995
      %v2573 = vpop.permute.xlu0 %2572
      %v2575 = vmul.f32 %v2573, %v1758
      %v2576 = vmul.f32 %v2573, %v1759
      %v2577 = vmul.f32 %v2573, %v1760
      %v2578 = vmul.f32 %v2573, %v1761
      %v2579 = vadd.f32 %v2567, %v2575
      %v2580 = vadd.f32 %v2568, %v2576
      %v2581 = vadd.f32 %v2569, %v2577
      %v2582 = vadd.f32 %v2570, %v2578
      %v2583 = vadd.f32 %v2559, %v2579
      %v2584 = vadd.f32 %v2560, %v2580
      %v2585 = vadd.f32 %v2561, %v2581
      %v2586 = vadd.f32 %v2562, %v2582
      %2587 = vset.pattern.permute.xlu0 46
      %2588 = vperm.xlu0 %2587, %v1995
      %v2589 = vpop.permute.xlu0 %2588
      %v2591 = vmul.f32 %v2589, %v1710
      %v2592 = vmul.f32 %v2589, %v1711
      %v2593 = vmul.f32 %v2589, %v1712
      %v2594 = vmul.f32 %v2589, %v1713
      %2595 = vset.pattern.permute.xlu0 47
      %2596 = vperm.xlu0 %2595, %v1995
      %v2597 = vpop.permute.xlu0 %2596
      %v2599 = vmul.f32 %v2597, %v1774
      %v2600 = vmul.f32 %v2597, %v1775
      %v2601 = vmul.f32 %v2597, %v1776
      %v2602 = vmul.f32 %v2597, %v1777
      %v2603 = vadd.f32 %v2591, %v2599
      %v2604 = vadd.f32 %v2592, %v2600
      %v2605 = vadd.f32 %v2593, %v2601
      %v2606 = vadd.f32 %v2594, %v2602
      %v2607 = vadd.f32 %v2583, %v2603
      %v2608 = vadd.f32 %v2584, %v2604
      %v2609 = vadd.f32 %v2585, %v2605
      %v2610 = vadd.f32 %v2586, %v2606
      %2611 = vset.pattern.permute.xlu0 48
      %2612 = vperm.xlu0 %2611, %v1995
      %v2613 = vpop.permute.xlu0 %2612
      %v2615 = vmul.f32 %v2613, %v1927
      %v2616 = vmul.f32 %v2613, %v1928
      %v2617 = vmul.f32 %v2613, %v1929
      %v2618 = vmul.f32 %v2613, %v1930
      %2619 = vset.pattern.permute.xlu0 49
      %2620 = vperm.xlu0 %2619, %v1995
      %v2621 = vpop.permute.xlu0 %2620
      %v2623 = vmul.f32 %v2621, %v1991
      %v2624 = vmul.f32 %v2621, %v1992
      %v2625 = vmul.f32 %v2621, %v1993
      %v2626 = vmul.f32 %v2621, %v1994
      %v2627 = vadd.f32 %v2615, %v2623
      %v2628 = vadd.f32 %v2616, %v2624
      %v2629 = vadd.f32 %v2617, %v2625
      %v2630 = vadd.f32 %v2618, %v2626
      %2631 = vset.pattern.permute.xlu0 50
      %2632 = vperm.xlu0 %2631, %v1995
      %v2633 = vpop.permute.xlu0 %2632
      %v2635 = vmul.f32 %v2633, %v1698
      %v2636 = vmul.f32 %v2633, %v1699
      %v2637 = vmul.f32 %v2633, %v1700
      %v2638 = vmul.f32 %v2633, %v1701
      %2639 = vset.pattern.permute.xlu0 51
      %2640 = vperm.xlu0 %2639, %v1995
      %v2641 = vpop.permute.xlu0 %2640
      %v2643 = vmul.f32 %v2641, %v1762
      %v2644 = vmul.f32 %v2641, %v1763
      %v2645 = vmul.f32 %v2641, %v1764
      %v2646 = vmul.f32 %v2641, %v1765
      %v2647 = vadd.f32 %v2635, %v2643
      %v2648 = vadd.f32 %v2636, %v2644
      %v2649 = vadd.f32 %v2637, %v2645
      %v2650 = vadd.f32 %v2638, %v2646
      %v2651 = vadd.f32 %v2627, %v2647
      %v2652 = vadd.f32 %v2628, %v2648
      %v2653 = vadd.f32 %v2629, %v2649
      %v2654 = vadd.f32 %v2630, %v2650
      %2655 = vset.pattern.permute.xlu0 52
      %2656 = vperm.xlu0 %2655, %v1995
      %v2657 = vpop.permute.xlu0 %2656
      %v2659 = vmul.f32 %v2657, %v1714
      %v2660 = vmul.f32 %v2657, %v1715
      %v2661 = vmul.f32 %v2657, %v1716
      %v2662 = vmul.f32 %v2657, %v1717
      %2663 = vset.pattern.permute.xlu0 53
      %2664 = vperm.xlu0 %2663, %v1995
      %v2665 = vpop.permute.xlu0 %2664
      %v2667 = vmul.f32 %v2665, %v1778
      %v2668 = vmul.f32 %v2665, %v1779
      %v2669 = vmul.f32 %v2665, %v1780
      %v2670 = vmul.f32 %v2665, %v1781
      %v2671 = vadd.f32 %v2659, %v2667
      %v2672 = vadd.f32 %v2660, %v2668
      %v2673 = vadd.f32 %v2661, %v2669
      %v2674 = vadd.f32 %v2662, %v2670
      %v2675 = vadd.f32 %v2651, %v2671
      %v2676 = vadd.f32 %v2652, %v2672
      %v2677 = vadd.f32 %v2653, %v2673
      %v2678 = vadd.f32 %v2654, %v2674
      %2679 = vrot.lane.b32.xlu0 %v2539, 8
      %v2680 = vpop.permute.xlu0 %2679
      %2681 = vrot.lane.b32.xlu0 %v2540, 8
      %v2682 = vpop.permute.xlu0 %2681
      %2683 = vrot.lane.b32.xlu0 %v2541, 8
      %v2684 = vpop.permute.xlu0 %2683
      %2685 = vrot.lane.b32.xlu0 %v2542, 8
      %v2686 = vpop.permute.xlu0 %2685
      %v2687 = vsel %vm2209, %v2684, %v2686
      %v2688 = vsel %vm2209, %v2682, %v2684
      %v2689 = vsel %vm2209, %v2680, %v2682
      %v2690 = vsel %vm2209, %v2686, %v2680
      %v2691 = vmul.f32 %v2690, %v2218
      %v2692 = vmul.f32 %v2689, %v2222
      %v2693 = vmul.f32 %v2688, %v2226
      %v2694 = vmul.f32 %v2687, %v2230
      %v2695 = vadd.f32 %v2691, %v2607
      %v2696 = vadd.f32 %v2692, %v2608
      %v2697 = vadd.f32 %v2693, %v2609
      %v2698 = vadd.f32 %v2694, %v2610
      %v2699 = vadd.f32 %v2695, %v2675
      %v2700 = vadd.f32 %v2696, %v2676
      %v2701 = vadd.f32 %v2697, %v2677
      %v2702 = vadd.f32 %v2698, %v2678
      %2703 = vrot.lane.b32.xlu0 %v2243, 64
      %v2704 = vpop.permute.xlu0 %2703
      %2705 = vrot.lane.b32.xlu0 %v2244, 64
      %v2706 = vpop.permute.xlu0 %2705
      %2707 = vrot.lane.b32.xlu0 %v2245, 64
      %v2708 = vpop.permute.xlu0 %2707
      %2709 = vrot.lane.b32.xlu0 %v2246, 64
      %v2710 = vpop.permute.xlu0 %2709
      %vm2711 = vcmp.lt.s32.totalorder %v1815, 64
      %v2712 = vsel %vm2711, %v2708, %v2710
      %v2713 = vsel %vm2711, %v2706, %v2708
      %v2714 = vsel %vm2711, %v2704, %v2706
      %v2715 = vsel %vm2711, %v2710, %v2704
      %v2717 = vlaneseq
      %v2718 = vshrl.u32 %v2717, 7
      %v2719 = vsub.s32 0, %v2718
      %v2720 = vrot.slane %v484, %v2719
      %v2721 = vlaneseq
      %v2722 = vshrl.u32 %v2721, 7
      %v2723 = vsub.s32 1, %v2722
      %v2724 = vrot.slane %v484, %v2723
      %v2725 = vlaneseq
      %v2726 = vshrl.u32 %v2725, 7
      %v2727 = vsub.s32 2, %v2726
      %v2728 = vrot.slane %v484, %v2727
      %v2729 = vlaneseq
      %v2730 = vshrl.u32 %v2729, 7
      %v2731 = vsub.s32 3, %v2730
      %v2732 = vrot.slane %v484, %v2731
      %v2737 = vmul.f32 %v2715, %v2720
      %v2738 = vmul.f32 %v2714, %v2724
      %v2739 = vmul.f32 %v2713, %v2728
      %v2740 = vmul.f32 %v2712, %v2732
      %v2741 = vadd.f32 %v2737, %v2471
      %v2742 = vadd.f32 %v2738, %v2472
      %v2743 = vadd.f32 %v2739, %v2473
      %v2744 = vadd.f32 %v2740, %v2474
      %v2745 = vadd.f32 %v2741, %v2699
      %v2746 = vadd.f32 %v2742, %v2700
      %v2747 = vadd.f32 %v2743, %v2701
      %v2748 = vadd.f32 %v2744, %v2702
      %v2749 = vadd.f32 %v2745, %v2746
      %v2750 = vadd.f32 %v2749, %v2747
      %v2751 = vadd.f32 %v2750, %v2748
      %2752 = vadd.xlane.f32.xlu0 %v2751
      %v2753 = vpop.xlane.xlu0 %2752
      %v2754 = vmul.f32 %v2753, 0.001953125
      %v2755 = vmul.f32 %v2745, %v2745
      %v2756 = vmul.f32 %v2746, %v2746
      %v2757 = vmul.f32 %v2747, %v2747
      %v2758 = vmul.f32 %v2748, %v2748
      %v2759 = vadd.f32 %v2755, %v2756
      %v2760 = vadd.f32 %v2759, %v2757
      %v2761 = vadd.f32 %v2760, %v2758
      %2762 = vadd.xlane.f32.xlu0 %v2761
      %v2763 = vpop.xlane.xlu0 %2762
      %v2764 = vmul.f32 %v2763, 0.001953125
      %v2765 = vmul.f32 %v2754, %v2754
      %v2766 = vsub.f32 %v2764, %v2765
      %v2767 = vmax.f32 %v2766, 0.0
      %v2768 = vld [vmem:[%s5] sm:$0xff]
      %v2769 = vadd.f32 %v2767, 1e-05
      %v2770 = vrsqrt.pop %v2769
      %v2771 = vmul.f32 %v2768, %v2770
      %v2772 = vmul.f32 %v2754, %v2771
      %2774 = vrot.lane.b32.xlu0 %v2772, 1
      %v2775 = vpop.permute.xlu0 %2774
      %v2777 = vsub.f32 %v2768, %v2775
      %2779 = vset.pattern.permute.xlu0 0
      %2780 = vperm.xlu0 %2779, %v2771
      %v2781 = vpop.permute.xlu0 %2780
      %v2783 = vmul.f32 %v2745, %v2781
      %v2784 = vmul.f32 %v2746, %v2781
      %v2785 = vmul.f32 %v2747, %v2781
      %v2786 = vmul.f32 %v2748, %v2781
      %2788 = vset.pattern.permute.xlu0 1
      %2789 = vperm.xlu0 %2788, %v2777
      %v2790 = vpop.permute.xlu0 %2789
      %v2792 = vadd.f32 %v2783, %v2790
      %v2793 = vadd.f32 %v2784, %v2790
      %v2794 = vadd.f32 %v2785, %v2790
      %v2795 = vadd.f32 %v2786, %v2790
      %v2796 = vmul.f32 %v2792, 0.01
      %v2797 = vmul.f32 %v2793, 0.01
      %v2798 = vmul.f32 %v2794, 0.01
      %v2799 = vmul.f32 %v2795, 0.01
      %v2800 = vmax.f32 %v2792, %v2796
      %v2801 = vmax.f32 %v2793, %v2797
      %v2802 = vmax.f32 %v2794, %v2798
      %v2803 = vmax.f32 %v2795, %v2799
      %v2804 = vld [vmem:[%s6] sm:$0x3]
      %v2805 = vpack.c.bf16 %v2800, %v2800
      %v2806 = vpack.c.bf16 %v2801, %v2801
      %v2807 = vpack.c.bf16 %v2802, %v2802
      %v2808 = vpack.c.bf16 %v2803, %v2803
      %vm2809 = vcmask 64512
      %v2811 = vsel %vm2809, %v2804, 0
      %vm2813 = vcmask 1043456
      %v2815 = vsel %vm2813, %v2805, 0
      %v2818 = vsel %vm2813, %v2806, 0
      %v2821 = vsel %vm2813, %v2807, 0
      %v2824 = vsel %vm2813, %v2808, 0
      %2826 = vmatprep.subr.bf16.mxu0 %v2818
      %2827 = vmatpush1.bf16.msra.mxu0 %v2815
      %2828 = vmatprep.subr.bf16.mxu0 0
      %2829 = vmatpush1.bf16.msra.mxu0 0
      %2830 = vmatprep.subr.bf16.mxu0 0
      %2831 = vmatpush1.bf16.msra.mxu0 0
      %2832 = vmatprep.subr.bf16.mxu0 0
      %2833 = vmatpush1.bf16.msra.mxu0 0
      %2834 = vmatprep.subr.bf16.mxu0 0
      %2835 = vmatpush1.bf16.msra.mxu0 0
      %2836 = vmatprep.subr.bf16.mxu0 0
      %2837 = vmatpush1.bf16.msra.mxu0 0
      %2838 = vmatprep.subr.bf16.mxu0 0
      %2839 = vmatpush1.bf16.msra.mxu0 0
      %2840 = vmatprep.subr.bf16.mxu0 0
      %2841 = vmatpush1.bf16.msra.mxu0 0
      %2842 = vmatprep.subr.bf16.mxu0 0
      %2843 = vmatpush1.bf16.msra.mxu0 0
      %2844 = vmatprep.subr.bf16.mxu0 0
      %2845 = vmatpush1.bf16.msra.mxu0 0
      %2846 = vmatprep.subr.bf16.mxu0 0
      %2847 = vmatpush1.bf16.msra.mxu0 0
      %2848 = vmatprep.subr.bf16.mxu0 0
      %2849 = vmatpush1.bf16.msra.mxu0 0
      %2850 = vmatprep.subr.bf16.mxu0 0
      %2851 = vmatpush1.bf16.msra.mxu0 0
      %2852 = vmatprep.subr.bf16.mxu0 0
      %2853 = vmatpush1.bf16.msra.mxu0 0
      %2854 = vmatprep.subr.bf16.mxu0 0
      %2855 = vmatpush1.bf16.msra.mxu0 0
      %2856 = vmatprep.subr.bf16.mxu0 0
      %2857 = vmatpush1.bf16.msra.mxu0 0
      %2858 = vmatprep.mubr.bf16.mxu0 0
      %2859 = vmatmul.mubr.bf16.gmra.mrb[0].mxu0 %v2811
      %v2860 = vpop.f32.mrb[0].mxu0
      %v2861 = vadd.f32 0.0, %v2860
      %v2862 = vpop.f32.mrb[0].mxu0
      %v2863 = vadd.f32 0.0, %v2862
      %v2864 = vpop.f32.mrb[0].mxu0
      %v2865 = vpop.f32.mrb[0].mxu0
      %2866 = vdwg.mxu0
      %2867 = vmatprep.subr.bf16.mxu0 %v2824
      %2868 = vmatpush1.bf16.msra.mxu0 %v2821
      %2869 = vmatprep.subr.bf16.mxu0 0
      %2870 = vmatpush1.bf16.msra.mxu0 0
      %2871 = vmatprep.subr.bf16.mxu0 0
      %2872 = vmatpush1.bf16.msra.mxu0 0
      %2873 = vmatprep.subr.bf16.mxu0 0
      %2874 = vmatpush1.bf16.msra.mxu0 0
      %2875 = vmatprep.subr.bf16.mxu0 0
      %2876 = vmatpush1.bf16.msra.mxu0 0
      %2877 = vmatprep.subr.bf16.mxu0 0
      %2878 = vmatpush1.bf16.msra.mxu0 0
      %2879 = vmatprep.subr.bf16.mxu0 0
      %2880 = vmatpush1.bf16.msra.mxu0 0
      %2881 = vmatprep.subr.bf16.mxu0 0
      %2882 = vmatpush1.bf16.msra.mxu0 0
      %2883 = vmatprep.subr.bf16.mxu0 0
      %2884 = vmatpush1.bf16.msra.mxu0 0
      %2885 = vmatprep.subr.bf16.mxu0 0
      %2886 = vmatpush1.bf16.msra.mxu0 0
      %2887 = vmatprep.subr.bf16.mxu0 0
      %2888 = vmatpush1.bf16.msra.mxu0 0
      %2889 = vmatprep.subr.bf16.mxu0 0
      %2890 = vmatpush1.bf16.msra.mxu0 0
      %2891 = vmatprep.subr.bf16.mxu0 0
      %2892 = vmatpush1.bf16.msra.mxu0 0
      %2893 = vmatprep.subr.bf16.mxu0 0
      %2894 = vmatpush1.bf16.msra.mxu0 0
      %2895 = vmatprep.subr.bf16.mxu0 0
      %2896 = vmatpush1.bf16.msra.mxu0 0
      %2897 = vmatprep.subr.bf16.mxu0 0
      %2898 = vmatpush1.bf16.msra.mxu0 0
      %2899 = vmatprep.mubr.bf16.mxu0 0
      %2900 = vmatmul.mubr.bf16.gmra.mrb[0].mxu0 %v2811
      %v2901 = vpop.f32.mrb[0].mxu0
      %v2902 = vadd.f32 0.0, %v2901
      %v2903 = vpop.f32.mrb[0].mxu0
      %v2904 = vadd.f32 0.0, %v2903
      %v2905 = vpop.f32.mrb[0].mxu0
      %v2906 = vpop.f32.mrb[0].mxu0
      %2907 = vdwg.mxu0
      %v2908 = vsel %vm2813, %v2861, 0.0
      %v2909 = vsel %vm2813, %v2863, 0.0
      %v2910 = vadd.f32 %v2908, %v2909
      %v2911 = vsel %vm2813, %v2902, 0.0
      %v2912 = vadd.f32 %v2910, %v2911
      %v2913 = vsel %vm2813, %v2904, 0.0
      %v2914 = vadd.f32 %v2912, %v2913
      %2915 = vadd.xlane.f32.xlu0 %v2914
      %v2916 = vpop.xlane.xlu0 %2915
      %v2917 = vmul.f32 %v2916, 0.001953125
      %v2918 = vmul.f32 %v2861, %v2861
      %v2919 = vmul.f32 %v2863, %v2863
      %v2920 = vmul.f32 %v2902, %v2902
      %v2921 = vmul.f32 %v2904, %v2904
      %v2922 = vsel %vm2813, %v2918, 0.0
      %v2923 = vsel %vm2813, %v2919, 0.0
      %v2924 = vadd.f32 %v2922, %v2923
      %v2925 = vsel %vm2813, %v2920, 0.0
      %v2926 = vadd.f32 %v2924, %v2925
      %v2927 = vsel %vm2813, %v2921, 0.0
      %v2928 = vadd.f32 %v2926, %v2927
      %2929 = vadd.xlane.f32.xlu0 %v2928
      %v2930 = vpop.xlane.xlu0 %2929
      %v2931 = vmul.f32 %v2930, 0.001953125
      %v2932 = vmul.f32 %v2917, %v2917
      %v2933 = vsub.f32 %v2931, %v2932
      %v2934 = vmax.f32 %v2933, 0.0
      %v2935 = vld [vmem:[%s7] sm:$0xf]
      %v2936 = vadd.f32 %v2934, 1e-05
      %v2937 = vrsqrt.pop %v2936
      %v2938 = vmul.f32 %v2935, %v2937
      %v2939 = vmul.f32 %v2917, %v2938
      %2941 = vrot.lane.b32.xlu0 %v2939, 1
      %v2942 = vpop.permute.xlu0 %2941
      %v2944 = vsub.f32 %v2935, %v2942
      %2946 = vset.pattern.permute.xlu0 0
      %2947 = vperm.xlu0 %2946, %v2938
      %v2948 = vpop.permute.xlu0 %2947
      %v2950 = vmul.f32 %v2861, %v2948
      %v2951 = vmul.f32 %v2863, %v2948
      %v2952 = vmul.f32 %v2902, %v2948
      %v2953 = vmul.f32 %v2904, %v2948
      %2955 = vset.pattern.permute.xlu0 1
      %2956 = vperm.xlu0 %2955, %v2944
      %v2957 = vpop.permute.xlu0 %2956
      %v2959 = vadd.f32 %v2950, %v2957
      %v2960 = vadd.f32 %v2951, %v2957
      %v2961 = vadd.f32 %v2952, %v2957
      %v2962 = vadd.f32 %v2953, %v2957
      %v2963 = vmul.f32 %v2959, 0.01
      %v2964 = vmul.f32 %v2960, 0.01
      %v2965 = vmul.f32 %v2961, 0.01
      %v2966 = vmul.f32 %v2962, 0.01
      %v2967 = vmax.f32 %v2959, %v2963
      %v2968 = vmax.f32 %v2960, %v2964
      %v2969 = vmax.f32 %v2961, %v2965
      %v2970 = vmax.f32 %v2962, %v2966
      %v2971 = vunpack.c.l.bf16 %v487
      %v2972 = vunpack.c.h.bf16 %v487
      %v2973 = vunpack.c.l.bf16 %v488
      %v2974 = vunpack.c.h.bf16 %v488
      %v2975 = vadd.f32 %v2971, %v2973
      %v2976 = vadd.f32 %v2972, %v2974
      %v2977 = vunpack.c.l.bf16 %v489
      %v2978 = vunpack.c.h.bf16 %v489
      %v2979 = vadd.f32 %v2975, %v2977
      %v2980 = vadd.f32 %v2976, %v2978
      %v2981 = vunpack.c.l.bf16 %v490
      %v2982 = vunpack.c.h.bf16 %v490
      %v2983 = vadd.f32 %v2979, %v2981
      %v2984 = vadd.f32 %v2980, %v2982
      %v2985 = vunpack.c.l.bf16 %v491
      %v2986 = vunpack.c.h.bf16 %v491
      %v2987 = vadd.f32 %v2983, %v2985
      %v2988 = vadd.f32 %v2984, %v2986
      %v2989 = vunpack.c.l.bf16 %v492
      %v2990 = vunpack.c.h.bf16 %v492
      %v2991 = vadd.f32 %v2987, %v2989
      %v2992 = vadd.f32 %v2988, %v2990
      %v2993 = vunpack.c.l.bf16 %v493
      %v2994 = vunpack.c.h.bf16 %v493
      %v2995 = vadd.f32 %v2991, %v2993
      %v2996 = vadd.f32 %v2992, %v2994
      %v2997 = vunpack.c.l.bf16 %v494
      %v2998 = vunpack.c.h.bf16 %v494
      %v2999 = vadd.f32 %v2995, %v2997
      %v3000 = vadd.f32 %v2996, %v2998
      %v3001 = vmul.f32 %v2999, 0.125
      %v3002 = vmul.f32 %v3000, 0.125
      %v3005 = vcombine.high %v3001, %v3001
      %v3006 = vcombine.high %v3002, %v3002
      %v3009 = vadd.f32 %v2967, %v3001
      %v3010 = vadd.f32 %v2968, %v3005
      %v3011 = vadd.f32 %v2969, %v3002
      %v3012 = vadd.f32 %v2970, %v3006
      %v3013 = vld [vmem:[%s8] sm:$0xf]
      %v3014 = vpack.c.bf16 %v3009, %v3009
      %v3015 = vpack.c.bf16 %v3010, %v3010
      %v3016 = vpack.c.bf16 %v3011, %v3011
      %v3017 = vpack.c.bf16 %v3012, %v3012
      %v3019 = vsel %vm640, %v3013, 0
      %v3022 = vsel %vm644, %v3014, 0
      %v3025 = vsel %vm644, %v3015, 0
      %v3028 = vsel %vm644, %v3016, 0
      %v3031 = vsel %vm644, %v3017, 0
      %3033 = vmatprep.subr.bf16.mxu0 %v3025
      %3034 = vmatpush1.bf16.msra.mxu0 %v3022
      %3035 = vmatprep.subr.bf16.mxu0 0
      %3036 = vmatpush1.bf16.msra.mxu0 0
      %3037 = vmatprep.subr.bf16.mxu0 0
      %3038 = vmatpush1.bf16.msra.mxu0 0
      %3039 = vmatprep.subr.bf16.mxu0 0
      %3040 = vmatpush1.bf16.msra.mxu0 0
      %3041 = vmatprep.subr.bf16.mxu0 0
      %3042 = vmatpush1.bf16.msra.mxu0 0
      %3043 = vmatprep.subr.bf16.mxu0 0
      %3044 = vmatpush1.bf16.msra.mxu0 0
      %3045 = vmatprep.subr.bf16.mxu0 0
      %3046 = vmatpush1.bf16.msra.mxu0 0
      %3047 = vmatprep.subr.bf16.mxu0 0
      %3048 = vmatpush1.bf16.msra.mxu0 0
      %3049 = vmatprep.subr.bf16.mxu0 0
      %3050 = vmatpush1.bf16.msra.mxu0 0
      %3051 = vmatprep.subr.bf16.mxu0 0
      %3052 = vmatpush1.bf16.msra.mxu0 0
      %3053 = vmatprep.subr.bf16.mxu0 0
      %3054 = vmatpush1.bf16.msra.mxu0 0
      %3055 = vmatprep.subr.bf16.mxu0 0
      %3056 = vmatpush1.bf16.msra.mxu0 0
      %3057 = vmatprep.subr.bf16.mxu0 0
      %3058 = vmatpush1.bf16.msra.mxu0 0
      %3059 = vmatprep.subr.bf16.mxu0 0
      %3060 = vmatpush1.bf16.msra.mxu0 0
      %3061 = vmatprep.subr.bf16.mxu0 0
      %3062 = vmatpush1.bf16.msra.mxu0 0
      %3063 = vmatprep.subr.bf16.mxu0 0
      %3064 = vmatpush1.bf16.msra.mxu0 0
      %3065 = vmatprep.mubr.bf16.mxu0 0
      %3066 = vmatmul.mubr.bf16.gmra.mrb[0].mxu0 %v3019
      %v3067 = vpop.f32.mrb[0].mxu0
      %v3068 = vadd.f32 0.0, %v3067
      %v3069 = vpop.f32.mrb[0].mxu0
      %v3070 = vadd.f32 0.0, %v3069
      %v3071 = vpop.f32.mrb[0].mxu0
      %v3072 = vpop.f32.mrb[0].mxu0
      %3073 = vdwg.mxu0
      %3074 = vmatprep.subr.bf16.mxu0 %v3031
      %3075 = vmatpush1.bf16.msra.mxu0 %v3028
      %3076 = vmatprep.subr.bf16.mxu0 0
      %3077 = vmatpush1.bf16.msra.mxu0 0
      %3078 = vmatprep.subr.bf16.mxu0 0
      %3079 = vmatpush1.bf16.msra.mxu0 0
      %3080 = vmatprep.subr.bf16.mxu0 0
      %3081 = vmatpush1.bf16.msra.mxu0 0
      %3082 = vmatprep.subr.bf16.mxu0 0
      %3083 = vmatpush1.bf16.msra.mxu0 0
      %3084 = vmatprep.subr.bf16.mxu0 0
      %3085 = vmatpush1.bf16.msra.mxu0 0
      %3086 = vmatprep.subr.bf16.mxu0 0
      %3087 = vmatpush1.bf16.msra.mxu0 0
      %3088 = vmatprep.subr.bf16.mxu0 0
      %3089 = vmatpush1.bf16.msra.mxu0 0
      %3090 = vmatprep.subr.bf16.mxu0 0
      %3091 = vmatpush1.bf16.msra.mxu0 0
      %3092 = vmatprep.subr.bf16.mxu0 0
      %3093 = vmatpush1.bf16.msra.mxu0 0
      %3094 = vmatprep.subr.bf16.mxu0 0
      %3095 = vmatpush1.bf16.msra.mxu0 0
      %3096 = vmatprep.subr.bf16.mxu0 0
      %3097 = vmatpush1.bf16.msra.mxu0 0
      %3098 = vmatprep.subr.bf16.mxu0 0
      %3099 = vmatpush1.bf16.msra.mxu0 0
      %3100 = vmatprep.subr.bf16.mxu0 0
      %3101 = vmatpush1.bf16.msra.mxu0 0
      %3102 = vmatprep.subr.bf16.mxu0 0
      %3103 = vmatpush1.bf16.msra.mxu0 0
      %3104 = vmatprep.subr.bf16.mxu0 0
      %3105 = vmatpush1.bf16.msra.mxu0 0
      %3106 = vmatprep.mubr.bf16.mxu0 0
      %3107 = vmatmul.mubr.bf16.gmra.mrb[0].mxu0 %v3019
      %v3108 = vpop.f32.mrb[0].mxu0
      %v3109 = vadd.f32 0.0, %v3108
      %v3110 = vpop.f32.mrb[0].mxu0
      %v3111 = vadd.f32 0.0, %v3110
      %v3112 = vpop.f32.mrb[0].mxu0
      %v3113 = vpop.f32.mrb[0].mxu0
      %3114 = vdwg.mxu0
      %v3115 = vadd.f32 %v3068, %v3070
      %v3116 = vadd.f32 %v3115, %v3109
      %v3117 = vadd.f32 %v3116, %v3111
      %3118 = vadd.xlane.f32.xlu0 %v3117
      %v3119 = vpop.xlane.xlu0 %3118
      %v3120 = vmul.f32 %v3119, 0.001953125
      %v3121 = vmul.f32 %v3068, %v3068
      %v3122 = vmul.f32 %v3070, %v3070
      %v3123 = vmul.f32 %v3109, %v3109
      %v3124 = vmul.f32 %v3111, %v3111
      %v3125 = vadd.f32 %v3121, %v3122
      %v3126 = vadd.f32 %v3125, %v3123
      %v3127 = vadd.f32 %v3126, %v3124
      %3128 = vadd.xlane.f32.xlu0 %v3127
      %v3129 = vpop.xlane.xlu0 %3128
      %v3130 = vmul.f32 %v3129, 0.001953125
      %v3131 = vmul.f32 %v3120, %v3120
      %v3132 = vsub.f32 %v3130, %v3131
      %v3133 = vmax.f32 %v3132, 0.0
      %v3134 = vld [vmem:[%s9] sm:$0xff]
      %v3135 = vadd.f32 %v3133, 1e-05
      %v3136 = vrsqrt.pop %v3135
      %v3137 = vmul.f32 %v3134, %v3136
      %v3138 = vmul.f32 %v3120, %v3137
      %3140 = vrot.lane.b32.xlu0 %v3138, 1
      %v3141 = vpop.permute.xlu0 %3140
      %v3143 = vsub.f32 %v3134, %v3141
      %3145 = vset.pattern.permute.xlu0 0
      %3146 = vperm.xlu0 %3145, %v3137
      %v3147 = vpop.permute.xlu0 %3146
      %v3149 = vmul.f32 %v3068, %v3147
      %v3150 = vmul.f32 %v3070, %v3147
      %v3151 = vmul.f32 %v3109, %v3147
      %v3152 = vmul.f32 %v3111, %v3147
      %3154 = vset.pattern.permute.xlu0 1
      %3155 = vperm.xlu0 %3154, %v3143
      %v3156 = vpop.permute.xlu0 %3155
      %v3158 = vadd.f32 %v3149, %v3156
      %v3159 = vadd.f32 %v3150, %v3156
      %v3160 = vadd.f32 %v3151, %v3156
      %v3161 = vadd.f32 %v3152, %v3156
      %v3162 = vmul.f32 %v3158, 0.01
      %v3163 = vmul.f32 %v3159, 0.01
      %v3164 = vmul.f32 %v3160, 0.01
      %v3165 = vmul.f32 %v3161, 0.01
      %v3166 = vmax.f32 %v3158, %v3162
      %v3167 = vmax.f32 %v3159, %v3163
      %v3168 = vmax.f32 %v3160, %v3164
      %v3169 = vmax.f32 %v3161, %v3165
      %v3170 = vrot.slane %v3166, 7
      %v3171 = vrot.slane %v3167, 7
      %v3172 = vrot.slane %v3168, 7
      %v3173 = vrot.slane %v3169, 7
      %v3174 = vsel %vm1685, %v3166, %v3170
      %v3175 = vsel %vm1685, %v3167, %v3171
      %v3176 = vsel %vm1685, %v3168, %v3172
      %v3177 = vsel %vm1685, %v3169, %v3173
      %v3178 = vrot.slane %v3166, 1
      %v3179 = vrot.slane %v3167, 1
      %v3180 = vrot.slane %v3168, 1
      %v3181 = vrot.slane %v3169, 1
      %v3182 = vsel %vm1685, %v3178, %v3166
      %v3183 = vsel %vm1685, %v3179, %v3167
      %v3184 = vsel %vm1685, %v3180, %v3168
      %v3185 = vsel %vm1685, %v3181, %v3169
      %3186 = vrot.lane.b32.xlu0 %v3174, 1
      %v3187 = vpop.permute.xlu0 %3186
      %3188 = vrot.lane.b32.xlu0 %v3175, 1
      %v3189 = vpop.permute.xlu0 %3188
      %3190 = vrot.lane.b32.xlu0 %v3176, 1
      %v3191 = vpop.permute.xlu0 %3190
      %3192 = vrot.lane.b32.xlu0 %v3177, 1
      %v3193 = vpop.permute.xlu0 %3192
      %v3194 = vsel %vm1816, %v3191, %v3193
      %v3195 = vsel %vm1816, %v3189, %v3191
      %v3196 = vsel %vm1816, %v3187, %v3189
      %v3197 = vsel %vm1816, %v3193, %v3187
      %v3199 = vlaneseq
      %v3200 = vshrl.u32 %v3199, 7
      %v3201 = vsub.s32 0, %v3200
      %v3202 = vrot.slane %v476, %v3201
      %v3203 = vlaneseq
      %v3204 = vshrl.u32 %v3203, 7
      %v3205 = vsub.s32 1, %v3204
      %v3206 = vrot.slane %v476, %v3205
      %v3207 = vlaneseq
      %v3208 = vshrl.u32 %v3207, 7
      %v3209 = vsub.s32 2, %v3208
      %v3210 = vrot.slane %v476, %v3209
      %v3211 = vlaneseq
      %v3212 = vshrl.u32 %v3211, 7
      %v3213 = vsub.s32 3, %v3212
      %v3214 = vrot.slane %v476, %v3213
      %v3219 = vmul.f32 %v3197, %v3202
      %v3220 = vmul.f32 %v3196, %v3206
      %v3221 = vmul.f32 %v3195, %v3210
      %v3222 = vmul.f32 %v3194, %v3214
      %3223 = vrot.lane.b32.xlu0 %v3174, 127
      %v3224 = vpop.permute.xlu0 %3223
      %3225 = vrot.lane.b32.xlu0 %v3175, 127
      %v3226 = vpop.permute.xlu0 %3225
      %3227 = vrot.lane.b32.xlu0 %v3176, 127
      %v3228 = vpop.permute.xlu0 %3227
      %3229 = vrot.lane.b32.xlu0 %v3177, 127
      %v3230 = vpop.permute.xlu0 %3229
      %vm3231 = vcmp.lt.s32.totalorder %v1815, 127
      %v3232 = vsel %vm3231, %v3228, %v3230
      %v3233 = vsel %vm3231, %v3226, %v3228
      %v3234 = vsel %vm3231, %v3224, %v3226
      %v3235 = vsel %vm3231, %v3230, %v3224
      %v3237 = vlaneseq
      %v3238 = vshrl.u32 %v3237, 7
      %v3239 = vsub.s32 0, %v3238
      %v3240 = vrot.slane %v478, %v3239
      %v3241 = vlaneseq
      %v3242 = vshrl.u32 %v3241, 7
      %v3243 = vsub.s32 1, %v3242
      %v3244 = vrot.slane %v478, %v3243
      %v3245 = vlaneseq
      %v3246 = vshrl.u32 %v3245, 7
      %v3247 = vsub.s32 2, %v3246
      %v3248 = vrot.slane %v478, %v3247
      %v3249 = vlaneseq
      %v3250 = vshrl.u32 %v3249, 7
      %v3251 = vsub.s32 3, %v3250
      %v3252 = vrot.slane %v478, %v3251
      %v3257 = vmul.f32 %v3234, %v3240
      %v3258 = vmul.f32 %v3233, %v3244
      %v3259 = vmul.f32 %v3232, %v3248
      %v3260 = vmul.f32 %v3235, %v3252
      %3261 = vrot.lane.b32.xlu0 %v3182, 1
      %v3262 = vpop.permute.xlu0 %3261
      %3263 = vrot.lane.b32.xlu0 %v3183, 1
      %v3264 = vpop.permute.xlu0 %3263
      %3265 = vrot.lane.b32.xlu0 %v3184, 1
      %v3266 = vpop.permute.xlu0 %3265
      %3267 = vrot.lane.b32.xlu0 %v3185, 1
      %v3268 = vpop.permute.xlu0 %3267
      %v3269 = vsel %vm1816, %v3266, %v3268
      %v3270 = vsel %vm1816, %v3264, %v3266
      %v3271 = vsel %vm1816, %v3262, %v3264
      %v3272 = vsel %vm1816, %v3268, %v3262
      %v3273 = vmul.f32 %v3272, %v3202
      %v3274 = vmul.f32 %v3271, %v3206
      %v3275 = vmul.f32 %v3270, %v3210
      %v3276 = vmul.f32 %v3269, %v3214
      %3277 = vrot.lane.b32.xlu0 %v3182, 127
      %v3278 = vpop.permute.xlu0 %3277
      %3279 = vrot.lane.b32.xlu0 %v3183, 127
      %v3280 = vpop.permute.xlu0 %3279
      %3281 = vrot.lane.b32.xlu0 %v3184, 127
      %v3282 = vpop.permute.xlu0 %3281
      %3283 = vrot.lane.b32.xlu0 %v3185, 127
      %v3284 = vpop.permute.xlu0 %3283
      %v3285 = vsel %vm3231, %v3282, %v3284
      %v3286 = vsel %vm3231, %v3280, %v3282
      %v3287 = vsel %vm3231, %v3278, %v3280
      %v3288 = vsel %vm3231, %v3284, %v3278
      %v3289 = vmul.f32 %v3287, %v3240
      %v3290 = vmul.f32 %v3286, %v3244
      %v3291 = vmul.f32 %v3285, %v3248
      %v3292 = vmul.f32 %v3288, %v3252
      %v3293 = vld [vmem:[%s10] sm:$0xff]
      %3295 = vset.pattern.permute.xlu0 0
      %3296 = vperm.xlu0 %3295, %v3293
      %v3297 = vpop.permute.xlu0 %3296
      %v3299 = vmul.f32 %v3297, %v3219
      %v3300 = vmul.f32 %v3297, %v3220
      %v3301 = vmul.f32 %v3297, %v3221
      %v3302 = vmul.f32 %v3297, %v3222
      %3303 = vset.pattern.permute.xlu0 1
      %3304 = vperm.xlu0 %3303, %v3293
      %v3305 = vpop.permute.xlu0 %3304
      %v3307 = vmul.f32 %v3305, %v3273
      %v3308 = vmul.f32 %v3305, %v3274
      %v3309 = vmul.f32 %v3305, %v3275
      %v3310 = vmul.f32 %v3305, %v3276
      %v3311 = vadd.f32 %v3299, %v3307
      %v3312 = vadd.f32 %v3300, %v3308
      %v3313 = vadd.f32 %v3301, %v3309
      %v3314 = vadd.f32 %v3302, %v3310
      %3315 = vset.pattern.permute.xlu0 2
      %3316 = vperm.xlu0 %3315, %v3293
      %v3317 = vpop.permute.xlu0 %3316
      %v3319 = vmul.f32 %v3317, %v3174
      %v3320 = vmul.f32 %v3317, %v3175
      %v3321 = vmul.f32 %v3317, %v3176
      %v3322 = vmul.f32 %v3317, %v3177
      %3323 = vset.pattern.permute.xlu0 3
      %3324 = vperm.xlu0 %3323, %v3293
      %v3325 = vpop.permute.xlu0 %3324
      %v3327 = vmul.f32 %v3325, %v3182
      %v3328 = vmul.f32 %v3325, %v3183
      %v3329 = vmul.f32 %v3325, %v3184
      %v3330 = vmul.f32 %v3325, %v3185
      %v3331 = vadd.f32 %v3319, %v3327
      %v3332 = vadd.f32 %v3320, %v3328
      %v3333 = vadd.f32 %v3321, %v3329
      %v3334 = vadd.f32 %v3322, %v3330
      %v3335 = vadd.f32 %v3311, %v3331
      %v3336 = vadd.f32 %v3312, %v3332
      %v3337 = vadd.f32 %v3313, %v3333
      %v3338 = vadd.f32 %v3314, %v3334
      %3339 = vset.pattern.permute.xlu0 4
      %3340 = vperm.xlu0 %3339, %v3293
      %v3341 = vpop.permute.xlu0 %3340
      %v3343 = vmul.f32 %v3341, %v3257
      %v3344 = vmul.f32 %v3341, %v3258
      %v3345 = vmul.f32 %v3341, %v3259
      %v3346 = vmul.f32 %v3341, %v3260
      %3347 = vset.pattern.permute.xlu0 5
      %3348 = vperm.xlu0 %3347, %v3293
      %v3349 = vpop.permute.xlu0 %3348
      %v3351 = vmul.f32 %v3349, %v3289
      %v3352 = vmul.f32 %v3349, %v3290
      %v3353 = vmul.f32 %v3349, %v3291
      %v3354 = vmul.f32 %v3349, %v3292
      %v3355 = vadd.f32 %v3343, %v3351
      %v3356 = vadd.f32 %v3344, %v3352
      %v3357 = vadd.f32 %v3345, %v3353
      %v3358 = vadd.f32 %v3346, %v3354
      %v3359 = vadd.f32 %v3335, %v3355
      %v3360 = vadd.f32 %v3336, %v3356
      %v3361 = vadd.f32 %v3337, %v3357
      %v3362 = vadd.f32 %v3338, %v3358
      %3363 = vset.pattern.permute.xlu0 6
      %3364 = vperm.xlu0 %3363, %v3293
      %v3365 = vpop.permute.xlu0 %3364
      %v3367 = vmul.f32 %v3365, %v3219
      %v3368 = vmul.f32 %v3365, %v3220
      %v3369 = vmul.f32 %v3365, %v3221
      %v3370 = vmul.f32 %v3365, %v3222
      %3371 = vset.pattern.permute.xlu0 7
      %3372 = vperm.xlu0 %3371, %v3293
      %v3373 = vpop.permute.xlu0 %3372
      %v3375 = vmul.f32 %v3373, %v3273
      %v3376 = vmul.f32 %v3373, %v3274
      %v3377 = vmul.f32 %v3373, %v3275
      %v3378 = vmul.f32 %v3373, %v3276
      %v3379 = vadd.f32 %v3367, %v3375
      %v3380 = vadd.f32 %v3368, %v3376
      %v3381 = vadd.f32 %v3369, %v3377
      %v3382 = vadd.f32 %v3370, %v3378
      %3383 = vset.pattern.permute.xlu0 8
      %3384 = vperm.xlu0 %3383, %v3293
      %v3385 = vpop.permute.xlu0 %3384
      %v3387 = vmul.f32 %v3385, %v3174
      %v3388 = vmul.f32 %v3385, %v3175
      %v3389 = vmul.f32 %v3385, %v3176
      %v3390 = vmul.f32 %v3385, %v3177
      %3391 = vset.pattern.permute.xlu0 9
      %3392 = vperm.xlu0 %3391, %v3293
      %v3393 = vpop.permute.xlu0 %3392
      %v3395 = vmul.f32 %v3393, %v3182
      %v3396 = vmul.f32 %v3393, %v3183
      %v3397 = vmul.f32 %v3393, %v3184
      %v3398 = vmul.f32 %v3393, %v3185
      %v3399 = vadd.f32 %v3387, %v3395
      %v3400 = vadd.f32 %v3388, %v3396
      %v3401 = vadd.f32 %v3389, %v3397
      %v3402 = vadd.f32 %v3390, %v3398
      %v3403 = vadd.f32 %v3379, %v3399
      %v3404 = vadd.f32 %v3380, %v3400
      %v3405 = vadd.f32 %v3381, %v3401
      %v3406 = vadd.f32 %v3382, %v3402
      %3407 = vset.pattern.permute.xlu0 10
      %3408 = vperm.xlu0 %3407, %v3293
      %v3409 = vpop.permute.xlu0 %3408
      %v3411 = vmul.f32 %v3409, %v3257
      %v3412 = vmul.f32 %v3409, %v3258
      %v3413 = vmul.f32 %v3409, %v3259
      %v3414 = vmul.f32 %v3409, %v3260
      %3415 = vset.pattern.permute.xlu0 11
      %3416 = vperm.xlu0 %3415, %v3293
      %v3417 = vpop.permute.xlu0 %3416
      %v3419 = vmul.f32 %v3417, %v3289
      %v3420 = vmul.f32 %v3417, %v3290
      %v3421 = vmul.f32 %v3417, %v3291
      %v3422 = vmul.f32 %v3417, %v3292
      %v3423 = vadd.f32 %v3411, %v3419
      %v3424 = vadd.f32 %v3412, %v3420
      %v3425 = vadd.f32 %v3413, %v3421
      %v3426 = vadd.f32 %v3414, %v3422
      %v3427 = vadd.f32 %v3403, %v3423
      %v3428 = vadd.f32 %v3404, %v3424
      %v3429 = vadd.f32 %v3405, %v3425
      %v3430 = vadd.f32 %v3406, %v3426
      %3431 = vset.pattern.permute.xlu0 12
      %3432 = vperm.xlu0 %3431, %v3293
      %v3433 = vpop.permute.xlu0 %3432
      %v3435 = vmul.f32 %v3433, %v3219
      %v3436 = vmul.f32 %v3433, %v3220
      %v3437 = vmul.f32 %v3433, %v3221
      %v3438 = vmul.f32 %v3433, %v3222
      %3439 = vset.pattern.permute.xlu0 13
      %3440 = vperm.xlu0 %3439, %v3293
      %v3441 = vpop.permute.xlu0 %3440
      %v3443 = vmul.f32 %v3441, %v3273
      %v3444 = vmul.f32 %v3441, %v3274
      %v3445 = vmul.f32 %v3441, %v3275
      %v3446 = vmul.f32 %v3441, %v3276
      %v3447 = vadd.f32 %v3435, %v3443
      %v3448 = vadd.f32 %v3436, %v3444
      %v3449 = vadd.f32 %v3437, %v3445
      %v3450 = vadd.f32 %v3438, %v3446
      %3451 = vset.pattern.permute.xlu0 14
      %3452 = vperm.xlu0 %3451, %v3293
      %v3453 = vpop.permute.xlu0 %3452
      %v3455 = vmul.f32 %v3453, %v3174
      %v3456 = vmul.f32 %v3453, %v3175
      %v3457 = vmul.f32 %v3453, %v3176
      %v3458 = vmul.f32 %v3453, %v3177
      %3459 = vset.pattern.permute.xlu0 15
      %3460 = vperm.xlu0 %3459, %v3293
      %v3461 = vpop.permute.xlu0 %3460
      %v3463 = vmul.f32 %v3461, %v3182
      %v3464 = vmul.f32 %v3461, %v3183
      %v3465 = vmul.f32 %v3461, %v3184
      %v3466 = vmul.f32 %v3461, %v3185
      %v3467 = vadd.f32 %v3455, %v3463
      %v3468 = vadd.f32 %v3456, %v3464
      %v3469 = vadd.f32 %v3457, %v3465
      %v3470 = vadd.f32 %v3458, %v3466
      %v3471 = vadd.f32 %v3447, %v3467
      %v3472 = vadd.f32 %v3448, %v3468
      %v3473 = vadd.f32 %v3449, %v3469
      %v3474 = vadd.f32 %v3450, %v3470
      %3475 = vset.pattern.permute.xlu0 16
      %3476 = vperm.xlu0 %3475, %v3293
      %v3477 = vpop.permute.xlu0 %3476
      %v3479 = vmul.f32 %v3477, %v3257
      %v3480 = vmul.f32 %v3477, %v3258
      %v3481 = vmul.f32 %v3477, %v3259
      %v3482 = vmul.f32 %v3477, %v3260
      %3483 = vset.pattern.permute.xlu0 17
      %3484 = vperm.xlu0 %3483, %v3293
      %v3485 = vpop.permute.xlu0 %3484
      %v3487 = vmul.f32 %v3485, %v3289
      %v3488 = vmul.f32 %v3485, %v3290
      %v3489 = vmul.f32 %v3485, %v3291
      %v3490 = vmul.f32 %v3485, %v3292
      %v3491 = vadd.f32 %v3479, %v3487
      %v3492 = vadd.f32 %v3480, %v3488
      %v3493 = vadd.f32 %v3481, %v3489
      %v3494 = vadd.f32 %v3482, %v3490
      %v3495 = vadd.f32 %v3471, %v3491
      %v3496 = vadd.f32 %v3472, %v3492
      %v3497 = vadd.f32 %v3473, %v3493
      %v3498 = vadd.f32 %v3474, %v3494
      %3499 = vrot.lane.b32.xlu0 %v3359, 8
      %v3500 = vpop.permute.xlu0 %3499
      %3501 = vrot.lane.b32.xlu0 %v3360, 8
      %v3502 = vpop.permute.xlu0 %3501
      %3503 = vrot.lane.b32.xlu0 %v3361, 8
      %v3504 = vpop.permute.xlu0 %3503
      %3505 = vrot.lane.b32.xlu0 %v3362, 8
      %v3506 = vpop.permute.xlu0 %3505
      %v3507 = vsel %vm2209, %v3504, %v3506
      %v3508 = vsel %vm2209, %v3502, %v3504
      %v3509 = vsel %vm2209, %v3500, %v3502
      %v3510 = vsel %vm2209, %v3506, %v3500
      %v3511 = vmul.f32 %v3510, %v2218
      %v3512 = vmul.f32 %v3509, %v2222
      %v3513 = vmul.f32 %v3508, %v2226
      %v3514 = vmul.f32 %v3507, %v2230
      %v3515 = vadd.f32 %v3511, %v3427
      %v3516 = vadd.f32 %v3512, %v3428
      %v3517 = vadd.f32 %v3513, %v3429
      %v3518 = vadd.f32 %v3514, %v3430
      %3519 = vrot.lane.b32.xlu0 %v3495, 120
      %v3520 = vpop.permute.xlu0 %3519
      %3521 = vrot.lane.b32.xlu0 %v3496, 120
      %v3522 = vpop.permute.xlu0 %3521
      %3523 = vrot.lane.b32.xlu0 %v3497, 120
      %v3524 = vpop.permute.xlu0 %3523
      %3525 = vrot.lane.b32.xlu0 %v3498, 120
      %v3526 = vpop.permute.xlu0 %3525
      %vm3527 = vcmp.lt.s32.totalorder %v1815, 120
      %v3528 = vsel %vm3527, %v3524, %v3526
      %v3529 = vsel %vm3527, %v3522, %v3524
      %v3530 = vsel %vm3527, %v3520, %v3522
      %v3531 = vsel %vm3527, %v3526, %v3520
      %v3533 = vlaneseq
      %v3534 = vshrl.u32 %v3533, 7
      %v3535 = vsub.s32 0, %v3534
      %v3536 = vrot.slane %v482, %v3535
      %v3537 = vlaneseq
      %v3538 = vshrl.u32 %v3537, 7
      %v3539 = vsub.s32 1, %v3538
      %v3540 = vrot.slane %v482, %v3539
      %v3541 = vlaneseq
      %v3542 = vshrl.u32 %v3541, 7
      %v3543 = vsub.s32 2, %v3542
      %v3544 = vrot.slane %v482, %v3543
      %v3545 = vlaneseq
      %v3546 = vshrl.u32 %v3545, 7
      %v3547 = vsub.s32 3, %v3546
      %v3548 = vrot.slane %v482, %v3547
      %v3553 = vmul.f32 %v3530, %v3536
      %v3554 = vmul.f32 %v3529, %v3540
      %v3555 = vmul.f32 %v3528, %v3544
      %v3556 = vmul.f32 %v3531, %v3548
      %v3557 = vadd.f32 %v3515, %v3553
      %v3558 = vadd.f32 %v3516, %v3554
      %v3559 = vadd.f32 %v3517, %v3555
      %v3560 = vadd.f32 %v3518, %v3556
      %3561 = vset.pattern.permute.xlu0 18
      %3562 = vperm.xlu0 %3561, %v3293
      %v3563 = vpop.permute.xlu0 %3562
      %v3565 = vmul.f32 %v3563, %v3219
      %v3566 = vmul.f32 %v3563, %v3220
      %v3567 = vmul.f32 %v3563, %v3221
      %v3568 = vmul.f32 %v3563, %v3222
      %3569 = vset.pattern.permute.xlu0 19
      %3570 = vperm.xlu0 %3569, %v3293
      %v3571 = vpop.permute.xlu0 %3570
      %v3573 = vmul.f32 %v3571, %v3273
      %v3574 = vmul.f32 %v3571, %v3274
      %v3575 = vmul.f32 %v3571, %v3275
      %v3576 = vmul.f32 %v3571, %v3276
      %v3577 = vadd.f32 %v3565, %v3573
      %v3578 = vadd.f32 %v3566, %v3574
      %v3579 = vadd.f32 %v3567, %v3575
      %v3580 = vadd.f32 %v3568, %v3576
      %3581 = vset.pattern.permute.xlu0 20
      %3582 = vperm.xlu0 %3581, %v3293
      %v3583 = vpop.permute.xlu0 %3582
      %v3585 = vmul.f32 %v3583, %v3174
      %v3586 = vmul.f32 %v3583, %v3175
      %v3587 = vmul.f32 %v3583, %v3176
      %v3588 = vmul.f32 %v3583, %v3177
      %3589 = vset.pattern.permute.xlu0 21
      %3590 = vperm.xlu0 %3589, %v3293
      %v3591 = vpop.permute.xlu0 %3590
      %v3593 = vmul.f32 %v3591, %v3182
      %v3594 = vmul.f32 %v3591, %v3183
      %v3595 = vmul.f32 %v3591, %v3184
      %v3596 = vmul.f32 %v3591, %v3185
      %v3597 = vadd.f32 %v3585, %v3593
      %v3598 = vadd.f32 %v3586, %v3594
      %v3599 = vadd.f32 %v3587, %v3595
      %v3600 = vadd.f32 %v3588, %v3596
      %v3601 = vadd.f32 %v3577, %v3597
      %v3602 = vadd.f32 %v3578, %v3598
      %v3603 = vadd.f32 %v3579, %v3599
      %v3604 = vadd.f32 %v3580, %v3600
      %3605 = vset.pattern.permute.xlu0 22
      %3606 = vperm.xlu0 %3605, %v3293
      %v3607 = vpop.permute.xlu0 %3606
      %v3609 = vmul.f32 %v3607, %v3257
      %v3610 = vmul.f32 %v3607, %v3258
      %v3611 = vmul.f32 %v3607, %v3259
      %v3612 = vmul.f32 %v3607, %v3260
      %3613 = vset.pattern.permute.xlu0 23
      %3614 = vperm.xlu0 %3613, %v3293
      %v3615 = vpop.permute.xlu0 %3614
      %v3617 = vmul.f32 %v3615, %v3289
      %v3618 = vmul.f32 %v3615, %v3290
      %v3619 = vmul.f32 %v3615, %v3291
      %v3620 = vmul.f32 %v3615, %v3292
      %v3621 = vadd.f32 %v3609, %v3617
      %v3622 = vadd.f32 %v3610, %v3618
      %v3623 = vadd.f32 %v3611, %v3619
      %v3624 = vadd.f32 %v3612, %v3620
      %v3625 = vadd.f32 %v3601, %v3621
      %v3626 = vadd.f32 %v3602, %v3622
      %v3627 = vadd.f32 %v3603, %v3623
      %v3628 = vadd.f32 %v3604, %v3624
      %3629 = vset.pattern.permute.xlu0 24
      %3630 = vperm.xlu0 %3629, %v3293
      %v3631 = vpop.permute.xlu0 %3630
      %v3633 = vmul.f32 %v3631, %v3219
      %v3634 = vmul.f32 %v3631, %v3220
      %v3635 = vmul.f32 %v3631, %v3221
      %v3636 = vmul.f32 %v3631, %v3222
      %3637 = vset.pattern.permute.xlu0 25
      %3638 = vperm.xlu0 %3637, %v3293
      %v3639 = vpop.permute.xlu0 %3638
      %v3641 = vmul.f32 %v3639, %v3273
      %v3642 = vmul.f32 %v3639, %v3274
      %v3643 = vmul.f32 %v3639, %v3275
      %v3644 = vmul.f32 %v3639, %v3276
      %v3645 = vadd.f32 %v3633, %v3641
      %v3646 = vadd.f32 %v3634, %v3642
      %v3647 = vadd.f32 %v3635, %v3643
      %v3648 = vadd.f32 %v3636, %v3644
      %3649 = vset.pattern.permute.xlu0 26
      %3650 = vperm.xlu0 %3649, %v3293
      %v3651 = vpop.permute.xlu0 %3650
      %v3653 = vmul.f32 %v3651, %v3174
      %v3654 = vmul.f32 %v3651, %v3175
      %v3655 = vmul.f32 %v3651, %v3176
      %v3656 = vmul.f32 %v3651, %v3177
      %3657 = vset.pattern.permute.xlu0 27
      %3658 = vperm.xlu0 %3657, %v3293
      %v3659 = vpop.permute.xlu0 %3658
      %v3661 = vmul.f32 %v3659, %v3182
      %v3662 = vmul.f32 %v3659, %v3183
      %v3663 = vmul.f32 %v3659, %v3184
      %v3664 = vmul.f32 %v3659, %v3185
      %v3665 = vadd.f32 %v3653, %v3661
      %v3666 = vadd.f32 %v3654, %v3662
      %v3667 = vadd.f32 %v3655, %v3663
      %v3668 = vadd.f32 %v3656, %v3664
      %v3669 = vadd.f32 %v3645, %v3665
      %v3670 = vadd.f32 %v3646, %v3666
      %v3671 = vadd.f32 %v3647, %v3667
      %v3672 = vadd.f32 %v3648, %v3668
      %3673 = vset.pattern.permute.xlu0 28
      %3674 = vperm.xlu0 %3673, %v3293
      %v3675 = vpop.permute.xlu0 %3674
      %v3677 = vmul.f32 %v3675, %v3257
      %v3678 = vmul.f32 %v3675, %v3258
      %v3679 = vmul.f32 %v3675, %v3259
      %v3680 = vmul.f32 %v3675, %v3260
      %3681 = vset.pattern.permute.xlu0 29
      %3682 = vperm.xlu0 %3681, %v3293
      %v3683 = vpop.permute.xlu0 %3682
      %v3685 = vmul.f32 %v3683, %v3289
      %v3686 = vmul.f32 %v3683, %v3290
      %v3687 = vmul.f32 %v3683, %v3291
      %v3688 = vmul.f32 %v3683, %v3292
      %v3689 = vadd.f32 %v3677, %v3685
      %v3690 = vadd.f32 %v3678, %v3686
      %v3691 = vadd.f32 %v3679, %v3687
      %v3692 = vadd.f32 %v3680, %v3688
      %v3693 = vadd.f32 %v3669, %v3689
      %v3694 = vadd.f32 %v3670, %v3690
      %v3695 = vadd.f32 %v3671, %v3691
      %v3696 = vadd.f32 %v3672, %v3692
      %3697 = vset.pattern.permute.xlu0 30
      %3698 = vperm.xlu0 %3697, %v3293
      %v3699 = vpop.permute.xlu0 %3698
      %v3701 = vmul.f32 %v3699, %v3219
      %v3702 = vmul.f32 %v3699, %v3220
      %v3703 = vmul.f32 %v3699, %v3221
      %v3704 = vmul.f32 %v3699, %v3222
      %3705 = vset.pattern.permute.xlu0 31
      %3706 = vperm.xlu0 %3705, %v3293
      %v3707 = vpop.permute.xlu0 %3706
      %v3709 = vmul.f32 %v3707, %v3273
      %v3710 = vmul.f32 %v3707, %v3274
      %v3711 = vmul.f32 %v3707, %v3275
      %v3712 = vmul.f32 %v3707, %v3276
      %v3713 = vadd.f32 %v3701, %v3709
      %v3714 = vadd.f32 %v3702, %v3710
      %v3715 = vadd.f32 %v3703, %v3711
      %v3716 = vadd.f32 %v3704, %v3712
      %3717 = vset.pattern.permute.xlu0 32
      %3718 = vperm.xlu0 %3717, %v3293
      %v3719 = vpop.permute.xlu0 %3718
      %v3721 = vmul.f32 %v3719, %v3174
      %v3722 = vmul.f32 %v3719, %v3175
      %v3723 = vmul.f32 %v3719, %v3176
      %v3724 = vmul.f32 %v3719, %v3177
      %3725 = vset.pattern.permute.xlu0 33
      %3726 = vperm.xlu0 %3725, %v3293
      %v3727 = vpop.permute.xlu0 %3726
      %v3729 = vmul.f32 %v3727, %v3182
      %v3730 = vmul.f32 %v3727, %v3183
      %v3731 = vmul.f32 %v3727, %v3184
      %v3732 = vmul.f32 %v3727, %v3185
      %v3733 = vadd.f32 %v3721, %v3729
      %v3734 = vadd.f32 %v3722, %v3730
      %v3735 = vadd.f32 %v3723, %v3731
      %v3736 = vadd.f32 %v3724, %v3732
      %v3737 = vadd.f32 %v3713, %v3733
      %v3738 = vadd.f32 %v3714, %v3734
      %v3739 = vadd.f32 %v3715, %v3735
      %v3740 = vadd.f32 %v3716, %v3736
      %3741 = vset.pattern.permute.xlu0 34
      %3742 = vperm.xlu0 %3741, %v3293
      %v3743 = vpop.permute.xlu0 %3742
      %v3745 = vmul.f32 %v3743, %v3257
      %v3746 = vmul.f32 %v3743, %v3258
      %v3747 = vmul.f32 %v3743, %v3259
      %v3748 = vmul.f32 %v3743, %v3260
      %3749 = vset.pattern.permute.xlu0 35
      %3750 = vperm.xlu0 %3749, %v3293
      %v3751 = vpop.permute.xlu0 %3750
      %v3753 = vmul.f32 %v3751, %v3289
      %v3754 = vmul.f32 %v3751, %v3290
      %v3755 = vmul.f32 %v3751, %v3291
      %v3756 = vmul.f32 %v3751, %v3292
      %v3757 = vadd.f32 %v3745, %v3753
      %v3758 = vadd.f32 %v3746, %v3754
      %v3759 = vadd.f32 %v3747, %v3755
      %v3760 = vadd.f32 %v3748, %v3756
      %v3761 = vadd.f32 %v3737, %v3757
      %v3762 = vadd.f32 %v3738, %v3758
      %v3763 = vadd.f32 %v3739, %v3759
      %v3764 = vadd.f32 %v3740, %v3760
      %3765 = vrot.lane.b32.xlu0 %v3625, 8
      %v3766 = vpop.permute.xlu0 %3765
      %3767 = vrot.lane.b32.xlu0 %v3626, 8
      %v3768 = vpop.permute.xlu0 %3767
      %3769 = vrot.lane.b32.xlu0 %v3627, 8
      %v3770 = vpop.permute.xlu0 %3769
      %3771 = vrot.lane.b32.xlu0 %v3628, 8
      %v3772 = vpop.permute.xlu0 %3771
      %v3773 = vsel %vm2209, %v3770, %v3772
      %v3774 = vsel %vm2209, %v3768, %v3770
      %v3775 = vsel %vm2209, %v3766, %v3768
      %v3776 = vsel %vm2209, %v3772, %v3766
      %v3777 = vmul.f32 %v3776, %v2218
      %v3778 = vmul.f32 %v3775, %v2222
      %v3779 = vmul.f32 %v3774, %v2226
      %v3780 = vmul.f32 %v3773, %v2230
      %v3781 = vadd.f32 %v3777, %v3693
      %v3782 = vadd.f32 %v3778, %v3694
      %v3783 = vadd.f32 %v3779, %v3695
      %v3784 = vadd.f32 %v3780, %v3696
      %3785 = vrot.lane.b32.xlu0 %v3761, 120
      %v3786 = vpop.permute.xlu0 %3785
      %3787 = vrot.lane.b32.xlu0 %v3762, 120
      %v3788 = vpop.permute.xlu0 %3787
      %3789 = vrot.lane.b32.xlu0 %v3763, 120
      %v3790 = vpop.permute.xlu0 %3789
      %3791 = vrot.lane.b32.xlu0 %v3764, 120
      %v3792 = vpop.permute.xlu0 %3791
      %v3793 = vsel %vm3527, %v3790, %v3792
      %v3794 = vsel %vm3527, %v3788, %v3790
      %v3795 = vsel %vm3527, %v3786, %v3788
      %v3796 = vsel %vm3527, %v3792, %v3786
      %v3797 = vmul.f32 %v3795, %v3536
      %v3798 = vmul.f32 %v3794, %v3540
      %v3799 = vmul.f32 %v3793, %v3544
      %v3800 = vmul.f32 %v3796, %v3548
      %v3801 = vadd.f32 %v3781, %v3797
      %v3802 = vadd.f32 %v3782, %v3798
      %v3803 = vadd.f32 %v3783, %v3799
      %v3804 = vadd.f32 %v3784, %v3800
      %3805 = vset.pattern.permute.xlu0 36
      %3806 = vperm.xlu0 %3805, %v3293
      %v3807 = vpop.permute.xlu0 %3806
      %v3809 = vmul.f32 %v3807, %v3219
      %v3810 = vmul.f32 %v3807, %v3220
      %v3811 = vmul.f32 %v3807, %v3221
      %v3812 = vmul.f32 %v3807, %v3222
      %3813 = vset.pattern.permute.xlu0 37
      %3814 = vperm.xlu0 %3813, %v3293
      %v3815 = vpop.permute.xlu0 %3814
      %v3817 = vmul.f32 %v3815, %v3273
      %v3818 = vmul.f32 %v3815, %v3274
      %v3819 = vmul.f32 %v3815, %v3275
      %v3820 = vmul.f32 %v3815, %v3276
      %v3821 = vadd.f32 %v3809, %v3817
      %v3822 = vadd.f32 %v3810, %v3818
      %v3823 = vadd.f32 %v3811, %v3819
      %v3824 = vadd.f32 %v3812, %v3820
      %3825 = vset.pattern.permute.xlu0 38
      %3826 = vperm.xlu0 %3825, %v3293
      %v3827 = vpop.permute.xlu0 %3826
      %v3829 = vmul.f32 %v3827, %v3174
      %v3830 = vmul.f32 %v3827, %v3175
      %v3831 = vmul.f32 %v3827, %v3176
      %v3832 = vmul.f32 %v3827, %v3177
      %3833 = vset.pattern.permute.xlu0 39
      %3834 = vperm.xlu0 %3833, %v3293
      %v3835 = vpop.permute.xlu0 %3834
      %v3837 = vmul.f32 %v3835, %v3182
      %v3838 = vmul.f32 %v3835, %v3183
      %v3839 = vmul.f32 %v3835, %v3184
      %v3840 = vmul.f32 %v3835, %v3185
      %v3841 = vadd.f32 %v3829, %v3837
      %v3842 = vadd.f32 %v3830, %v3838
      %v3843 = vadd.f32 %v3831, %v3839
      %v3844 = vadd.f32 %v3832, %v3840
      %v3845 = vadd.f32 %v3821, %v3841
      %v3846 = vadd.f32 %v3822, %v3842
      %v3847 = vadd.f32 %v3823, %v3843
      %v3848 = vadd.f32 %v3824, %v3844
      %3849 = vset.pattern.permute.xlu0 40
      %3850 = vperm.xlu0 %3849, %v3293
      %v3851 = vpop.permute.xlu0 %3850
      %v3853 = vmul.f32 %v3851, %v3257
      %v3854 = vmul.f32 %v3851, %v3258
      %v3855 = vmul.f32 %v3851, %v3259
      %v3856 = vmul.f32 %v3851, %v3260
      %3857 = vset.pattern.permute.xlu0 41
      %3858 = vperm.xlu0 %3857, %v3293
      %v3859 = vpop.permute.xlu0 %3858
      %v3861 = vmul.f32 %v3859, %v3289
      %v3862 = vmul.f32 %v3859, %v3290
      %v3863 = vmul.f32 %v3859, %v3291
      %v3864 = vmul.f32 %v3859, %v3292
      %v3865 = vadd.f32 %v3853, %v3861
      %v3866 = vadd.f32 %v3854, %v3862
      %v3867 = vadd.f32 %v3855, %v3863
      %v3868 = vadd.f32 %v3856, %v3864
      %v3869 = vadd.f32 %v3845, %v3865
      %v3870 = vadd.f32 %v3846, %v3866
      %v3871 = vadd.f32 %v3847, %v3867
      %v3872 = vadd.f32 %v3848, %v3868
      %3873 = vset.pattern.permute.xlu0 42
      %3874 = vperm.xlu0 %3873, %v3293
      %v3875 = vpop.permute.xlu0 %3874
      %v3877 = vmul.f32 %v3875, %v3219
      %v3878 = vmul.f32 %v3875, %v3220
      %v3879 = vmul.f32 %v3875, %v3221
      %v3880 = vmul.f32 %v3875, %v3222
      %3881 = vset.pattern.permute.xlu0 43
      %3882 = vperm.xlu0 %3881, %v3293
      %v3883 = vpop.permute.xlu0 %3882
      %v3885 = vmul.f32 %v3883, %v3273
      %v3886 = vmul.f32 %v3883, %v3274
      %v3887 = vmul.f32 %v3883, %v3275
      %v3888 = vmul.f32 %v3883, %v3276
      %v3889 = vadd.f32 %v3877, %v3885
      %v3890 = vadd.f32 %v3878, %v3886
      %v3891 = vadd.f32 %v3879, %v3887
      %v3892 = vadd.f32 %v3880, %v3888
      %3893 = vset.pattern.permute.xlu0 44
      %3894 = vperm.xlu0 %3893, %v3293
      %v3895 = vpop.permute.xlu0 %3894
      %v3897 = vmul.f32 %v3895, %v3174
      %v3898 = vmul.f32 %v3895, %v3175
      %v3899 = vmul.f32 %v3895, %v3176
      %v3900 = vmul.f32 %v3895, %v3177
      %3901 = vset.pattern.permute.xlu0 45
      %3902 = vperm.xlu0 %3901, %v3293
      %v3903 = vpop.permute.xlu0 %3902
      %v3905 = vmul.f32 %v3903, %v3182
      %v3906 = vmul.f32 %v3903, %v3183
      %v3907 = vmul.f32 %v3903, %v3184
      %v3908 = vmul.f32 %v3903, %v3185
      %v3909 = vadd.f32 %v3897, %v3905
      %v3910 = vadd.f32 %v3898, %v3906
      %v3911 = vadd.f32 %v3899, %v3907
      %v3912 = vadd.f32 %v3900, %v3908
      %v3913 = vadd.f32 %v3889, %v3909
      %v3914 = vadd.f32 %v3890, %v3910
      %v3915 = vadd.f32 %v3891, %v3911
      %v3916 = vadd.f32 %v3892, %v3912
      %3917 = vset.pattern.permute.xlu0 46
      %3918 = vperm.xlu0 %3917, %v3293
      %v3919 = vpop.permute.xlu0 %3918
      %v3921 = vmul.f32 %v3919, %v3257
      %v3922 = vmul.f32 %v3919, %v3258
      %v3923 = vmul.f32 %v3919, %v3259
      %v3924 = vmul.f32 %v3919, %v3260
      %3925 = vset.pattern.permute.xlu0 47
      %3926 = vperm.xlu0 %3925, %v3293
      %v3927 = vpop.permute.xlu0 %3926
      %v3929 = vmul.f32 %v3927, %v3289
      %v3930 = vmul.f32 %v3927, %v3290
      %v3931 = vmul.f32 %v3927, %v3291
      %v3932 = vmul.f32 %v3927, %v3292
      %v3933 = vadd.f32 %v3921, %v3929
      %v3934 = vadd.f32 %v3922, %v3930
      %v3935 = vadd.f32 %v3923, %v3931
      %v3936 = vadd.f32 %v3924, %v3932
      %v3937 = vadd.f32 %v3913, %v3933
      %v3938 = vadd.f32 %v3914, %v3934
      %v3939 = vadd.f32 %v3915, %v3935
      %v3940 = vadd.f32 %v3916, %v3936
      %3941 = vset.pattern.permute.xlu0 48
      %3942 = vperm.xlu0 %3941, %v3293
      %v3943 = vpop.permute.xlu0 %3942
      %v3945 = vmul.f32 %v3943, %v3219
      %v3946 = vmul.f32 %v3943, %v3220
      %v3947 = vmul.f32 %v3943, %v3221
      %v3948 = vmul.f32 %v3943, %v3222
      %3949 = vset.pattern.permute.xlu0 49
      %3950 = vperm.xlu0 %3949, %v3293
      %v3951 = vpop.permute.xlu0 %3950
      %v3953 = vmul.f32 %v3951, %v3273
      %v3954 = vmul.f32 %v3951, %v3274
      %v3955 = vmul.f32 %v3951, %v3275
      %v3956 = vmul.f32 %v3951, %v3276
      %v3957 = vadd.f32 %v3945, %v3953
      %v3958 = vadd.f32 %v3946, %v3954
      %v3959 = vadd.f32 %v3947, %v3955
      %v3960 = vadd.f32 %v3948, %v3956
      %3961 = vset.pattern.permute.xlu0 50
      %3962 = vperm.xlu0 %3961, %v3293
      %v3963 = vpop.permute.xlu0 %3962
      %v3965 = vmul.f32 %v3963, %v3174
      %v3966 = vmul.f32 %v3963, %v3175
      %v3967 = vmul.f32 %v3963, %v3176
      %v3968 = vmul.f32 %v3963, %v3177
      %3969 = vset.pattern.permute.xlu0 51
      %3970 = vperm.xlu0 %3969, %v3293
      %v3971 = vpop.permute.xlu0 %3970
      %v3973 = vmul.f32 %v3971, %v3182
      %v3974 = vmul.f32 %v3971, %v3183
      %v3975 = vmul.f32 %v3971, %v3184
      %v3976 = vmul.f32 %v3971, %v3185
      %v3977 = vadd.f32 %v3965, %v3973
      %v3978 = vadd.f32 %v3966, %v3974
      %v3979 = vadd.f32 %v3967, %v3975
      %v3980 = vadd.f32 %v3968, %v3976
      %v3981 = vadd.f32 %v3957, %v3977
      %v3982 = vadd.f32 %v3958, %v3978
      %v3983 = vadd.f32 %v3959, %v3979
      %v3984 = vadd.f32 %v3960, %v3980
      %3985 = vset.pattern.permute.xlu0 52
      %3986 = vperm.xlu0 %3985, %v3293
      %v3987 = vpop.permute.xlu0 %3986
      %v3989 = vmul.f32 %v3987, %v3257
      %v3990 = vmul.f32 %v3987, %v3258
      %v3991 = vmul.f32 %v3987, %v3259
      %v3992 = vmul.f32 %v3987, %v3260
      %3993 = vset.pattern.permute.xlu0 53
      %3994 = vperm.xlu0 %3993, %v3293
      %v3995 = vpop.permute.xlu0 %3994
      %v3997 = vmul.f32 %v3995, %v3289
      %v3998 = vmul.f32 %v3995, %v3290
      %v3999 = vmul.f32 %v3995, %v3291
      %v4000 = vmul.f32 %v3995, %v3292
      %v4001 = vadd.f32 %v3989, %v3997
      %v4002 = vadd.f32 %v3990, %v3998
      %v4003 = vadd.f32 %v3991, %v3999
      %v4004 = vadd.f32 %v3992, %v4000
      %v4005 = vadd.f32 %v3981, %v4001
      %v4006 = vadd.f32 %v3982, %v4002
      %v4007 = vadd.f32 %v3983, %v4003
      %v4008 = vadd.f32 %v3984, %v4004
      %4009 = vrot.lane.b32.xlu0 %v3869, 8
      %v4010 = vpop.permute.xlu0 %4009
      %4011 = vrot.lane.b32.xlu0 %v3870, 8
      %v4012 = vpop.permute.xlu0 %4011
      %4013 = vrot.lane.b32.xlu0 %v3871, 8
      %v4014 = vpop.permute.xlu0 %4013
      %4015 = vrot.lane.b32.xlu0 %v3872, 8
      %v4016 = vpop.permute.xlu0 %4015
      %v4017 = vsel %vm2209, %v4014, %v4016
      %v4018 = vsel %vm2209, %v4012, %v4014
      %v4019 = vsel %vm2209, %v4010, %v4012
      %v4020 = vsel %vm2209, %v4016, %v4010
      %v4021 = vmul.f32 %v4020, %v2218
      %v4022 = vmul.f32 %v4019, %v2222
      %v4023 = vmul.f32 %v4018, %v2226
      %v4024 = vmul.f32 %v4017, %v2230
      %v4025 = vadd.f32 %v4021, %v3937
      %v4026 = vadd.f32 %v4022, %v3938
      %v4027 = vadd.f32 %v4023, %v3939
      %v4028 = vadd.f32 %v4024, %v3940
      %4029 = vrot.lane.b32.xlu0 %v4005, 120
      %v4030 = vpop.permute.xlu0 %4029
      %4031 = vrot.lane.b32.xlu0 %v4006, 120
      %v4032 = vpop.permute.xlu0 %4031
      %4033 = vrot.lane.b32.xlu0 %v4007, 120
      %v4034 = vpop.permute.xlu0 %4033
      %4035 = vrot.lane.b32.xlu0 %v4008, 120
      %v4036 = vpop.permute.xlu0 %4035
      %v4037 = vsel %vm3527, %v4034, %v4036
      %v4038 = vsel %vm3527, %v4032, %v4034
      %v4039 = vsel %vm3527, %v4030, %v4032
      %v4040 = vsel %vm3527, %v4036, %v4030
      %v4041 = vmul.f32 %v4039, %v3536
      %v4042 = vmul.f32 %v4038, %v3540
      %v4043 = vmul.f32 %v4037, %v3544
      %v4044 = vmul.f32 %v4040, %v3548
      %v4045 = vadd.f32 %v4025, %v4041
      %v4046 = vadd.f32 %v4026, %v4042
      %v4047 = vadd.f32 %v4027, %v4043
      %v4048 = vadd.f32 %v4028, %v4044
      %4049 = vrot.lane.b32.xlu0 %v3557, 64
      %v4050 = vpop.permute.xlu0 %4049
      %4051 = vrot.lane.b32.xlu0 %v3558, 64
      %v4052 = vpop.permute.xlu0 %4051
      %4053 = vrot.lane.b32.xlu0 %v3559, 64
      %v4054 = vpop.permute.xlu0 %4053
      %4055 = vrot.lane.b32.xlu0 %v3560, 64
      %v4056 = vpop.permute.xlu0 %4055
      %v4057 = vsel %vm2711, %v4054, %v4056
      %v4058 = vsel %vm2711, %v4052, %v4054
      %v4059 = vsel %vm2711, %v4050, %v4052
      %v4060 = vsel %vm2711, %v4056, %v4050
      %v4061 = vmul.f32 %v4060, %v2720
      %v4062 = vmul.f32 %v4059, %v2724
      %v4063 = vmul.f32 %v4058, %v2728
      %v4064 = vmul.f32 %v4057, %v2732
      %v4065 = vadd.f32 %v4061, %v3801
      %v4066 = vadd.f32 %v4062, %v3802
      %v4067 = vadd.f32 %v4063, %v3803
      %v4068 = vadd.f32 %v4064, %v3804
      %4069 = vrot.lane.b32.xlu0 %v4045, 64
      %v4070 = vpop.permute.xlu0 %4069
      %4071 = vrot.lane.b32.xlu0 %v4046, 64
      %v4072 = vpop.permute.xlu0 %4071
      %4073 = vrot.lane.b32.xlu0 %v4047, 64
      %v4074 = vpop.permute.xlu0 %4073
      %4075 = vrot.lane.b32.xlu0 %v4048, 64
      %v4076 = vpop.permute.xlu0 %4075
      %v4077 = vsel %vm2711, %v4074, %v4076
      %v4078 = vsel %vm2711, %v4072, %v4074
      %v4079 = vsel %vm2711, %v4070, %v4072
      %v4080 = vsel %vm2711, %v4076, %v4070
      %v4082 = vlaneseq
      %v4083 = vshrl.u32 %v4082, 7
      %v4084 = vsub.s32 0, %v4083
      %v4085 = vrot.slane %v486, %v4084
      %v4086 = vlaneseq
      %v4087 = vshrl.u32 %v4086, 7
      %v4088 = vsub.s32 1, %v4087
      %v4089 = vrot.slane %v486, %v4088
      %v4090 = vlaneseq
      %v4091 = vshrl.u32 %v4090, 7
      %v4092 = vsub.s32 2, %v4091
      %v4093 = vrot.slane %v486, %v4092
      %v4094 = vlaneseq
      %v4095 = vshrl.u32 %v4094, 7
      %v4096 = vsub.s32 3, %v4095
      %v4097 = vrot.slane %v486, %v4096
      %v4102 = vmul.f32 %v4079, %v4085
      %v4103 = vmul.f32 %v4078, %v4089
      %v4104 = vmul.f32 %v4077, %v4093
      %v4105 = vmul.f32 %v4080, %v4097
      %v4106 = vadd.f32 %v4065, %v4102
      %v4107 = vadd.f32 %v4066, %v4103
      %v4108 = vadd.f32 %v4067, %v4104
      %v4109 = vadd.f32 %v4068, %v4105
      %v4110 = vadd.f32 %v4106, %v4107
      %v4111 = vadd.f32 %v4110, %v4108
      %v4112 = vadd.f32 %v4111, %v4109
      %4113 = vadd.xlane.f32.xlu0 %v4112
      %v4114 = vpop.xlane.xlu0 %4113
      %v4115 = vmul.f32 %v4114, 0.001953125
      %v4116 = vmul.f32 %v4106, %v4106
      %v4117 = vmul.f32 %v4107, %v4107
      %v4118 = vmul.f32 %v4108, %v4108
      %v4119 = vmul.f32 %v4109, %v4109
      %v4120 = vadd.f32 %v4116, %v4117
      %v4121 = vadd.f32 %v4120, %v4118
      %v4122 = vadd.f32 %v4121, %v4119
      %4123 = vadd.xlane.f32.xlu0 %v4122
      %v4124 = vpop.xlane.xlu0 %4123
      %v4125 = vmul.f32 %v4124, 0.001953125
      %v4126 = vmul.f32 %v4115, %v4115
      %v4127 = vsub.f32 %v4125, %v4126
      %v4128 = vmax.f32 %v4127, 0.0
      %v4129 = vld [vmem:[%s11] sm:$0xff]
      %v4130 = vadd.f32 %v4128, 1e-05
      %v4131 = vrsqrt.pop %v4130
      %v4132 = vmul.f32 %v4129, %v4131
      %v4133 = vmul.f32 %v4115, %v4132
      %4135 = vrot.lane.b32.xlu0 %v4133, 1
      %v4136 = vpop.permute.xlu0 %4135
      %v4138 = vsub.f32 %v4129, %v4136
      %4140 = vset.pattern.permute.xlu0 0
      %4141 = vperm.xlu0 %4140, %v4132
      %v4142 = vpop.permute.xlu0 %4141
      %v4144 = vmul.f32 %v4106, %v4142
      %v4145 = vmul.f32 %v4107, %v4142
      %v4146 = vmul.f32 %v4108, %v4142
      %v4147 = vmul.f32 %v4109, %v4142
      %4149 = vset.pattern.permute.xlu0 1
      %4150 = vperm.xlu0 %4149, %v4138
      %v4151 = vpop.permute.xlu0 %4150
      %v4153 = vadd.f32 %v4144, %v4151
      %v4154 = vadd.f32 %v4145, %v4151
      %v4155 = vadd.f32 %v4146, %v4151
      %v4156 = vadd.f32 %v4147, %v4151
      %v4157 = vmul.f32 %v4153, 0.01
      %v4158 = vmul.f32 %v4154, 0.01
      %v4159 = vmul.f32 %v4155, 0.01
      %v4160 = vmul.f32 %v4156, 0.01
      %v4161 = vmax.f32 %v4153, %v4157
      %v4162 = vmax.f32 %v4154, %v4158
      %v4163 = vmax.f32 %v4155, %v4159
      %v4164 = vmax.f32 %v4156, %v4160
      %v4165 = vld [vmem:[%s12] sm:$0xf]
      %v4166 = vpack.c.bf16 %v4161, %v4161
      %v4167 = vpack.c.bf16 %v4162, %v4162
      %v4168 = vpack.c.bf16 %v4163, %v4163
      %v4169 = vpack.c.bf16 %v4164, %v4164
      %v4171 = vsel %vm2809, %v4165, 0
      %v4174 = vsel %vm2813, %v4166, 0
      %v4177 = vsel %vm2813, %v4167, 0
      %v4180 = vsel %vm2813, %v4168, 0
      %v4183 = vsel %vm2813, %v4169, 0
      %4185 = vmatprep.subr.bf16.mxu0 %v4177
      %4186 = vmatpush1.bf16.msra.mxu0 %v4174
      %4187 = vmatprep.subr.bf16.mxu0 0
      %4188 = vmatpush1.bf16.msra.mxu0 0
      %4189 = vmatprep.subr.bf16.mxu0 0
      %4190 = vmatpush1.bf16.msra.mxu0 0
      %4191 = vmatprep.subr.bf16.mxu0 0
      %4192 = vmatpush1.bf16.msra.mxu0 0
      %4193 = vmatprep.subr.bf16.mxu0 0
      %4194 = vmatpush1.bf16.msra.mxu0 0
      %4195 = vmatprep.subr.bf16.mxu0 0
      %4196 = vmatpush1.bf16.msra.mxu0 0
      %4197 = vmatprep.subr.bf16.mxu0 0
      %4198 = vmatpush1.bf16.msra.mxu0 0
      %4199 = vmatprep.subr.bf16.mxu0 0
      %4200 = vmatpush1.bf16.msra.mxu0 0
      %4201 = vmatprep.subr.bf16.mxu0 0
      %4202 = vmatpush1.bf16.msra.mxu0 0
      %4203 = vmatprep.subr.bf16.mxu0 0
      %4204 = vmatpush1.bf16.msra.mxu0 0
      %4205 = vmatprep.subr.bf16.mxu0 0
      %4206 = vmatpush1.bf16.msra.mxu0 0
      %4207 = vmatprep.subr.bf16.mxu0 0
      %4208 = vmatpush1.bf16.msra.mxu0 0
      %4209 = vmatprep.subr.bf16.mxu0 0
      %4210 = vmatpush1.bf16.msra.mxu0 0
      %4211 = vmatprep.subr.bf16.mxu0 0
      %4212 = vmatpush1.bf16.msra.mxu0 0
      %4213 = vmatprep.subr.bf16.mxu0 0
      %4214 = vmatpush1.bf16.msra.mxu0 0
      %4215 = vmatprep.subr.bf16.mxu0 0
      %4216 = vmatpush1.bf16.msra.mxu0 0
      %4217 = vmatprep.mubr.bf16.mxu0 0
      %4218 = vmatmul.mubr.bf16.gmra.mrb[0].mxu0 %v4171
      %v4219 = vpop.f32.mrb[0].mxu0
      %v4220 = vadd.f32 0.0, %v4219
      %v4221 = vpop.f32.mrb[0].mxu0
      %v4222 = vadd.f32 0.0, %v4221
      %v4223 = vpop.f32.mrb[0].mxu0
      %v4224 = vpop.f32.mrb[0].mxu0
      %4225 = vdwg.mxu0
      %4226 = vmatprep.subr.bf16.mxu0 %v4183
      %4227 = vmatpush1.bf16.msra.mxu0 %v4180
      %4228 = vmatprep.subr.bf16.mxu0 0
      %4229 = vmatpush1.bf16.msra.mxu0 0
      %4230 = vmatprep.subr.bf16.mxu0 0
      %4231 = vmatpush1.bf16.msra.mxu0 0
      %4232 = vmatprep.subr.bf16.mxu0 0
      %4233 = vmatpush1.bf16.msra.mxu0 0
      %4234 = vmatprep.subr.bf16.mxu0 0
      %4235 = vmatpush1.bf16.msra.mxu0 0
      %4236 = vmatprep.subr.bf16.mxu0 0
      %4237 = vmatpush1.bf16.msra.mxu0 0
      %4238 = vmatprep.subr.bf16.mxu0 0
      %4239 = vmatpush1.bf16.msra.mxu0 0
      %4240 = vmatprep.subr.bf16.mxu0 0
      %4241 = vmatpush1.bf16.msra.mxu0 0
      %4242 = vmatprep.subr.bf16.mxu0 0
      %4243 = vmatpush1.bf16.msra.mxu0 0
      %4244 = vmatprep.subr.bf16.mxu0 0
      %4245 = vmatpush1.bf16.msra.mxu0 0
      %4246 = vmatprep.subr.bf16.mxu0 0
      %4247 = vmatpush1.bf16.msra.mxu0 0
      %4248 = vmatprep.subr.bf16.mxu0 0
      %4249 = vmatpush1.bf16.msra.mxu0 0
      %4250 = vmatprep.subr.bf16.mxu0 0
      %4251 = vmatpush1.bf16.msra.mxu0 0
      %4252 = vmatprep.subr.bf16.mxu0 0
      %4253 = vmatpush1.bf16.msra.mxu0 0
      %4254 = vmatprep.subr.bf16.mxu0 0
      %4255 = vmatpush1.bf16.msra.mxu0 0
      %4256 = vmatprep.subr.bf16.mxu0 0
      %4257 = vmatpush1.bf16.msra.mxu0 0
      %4258 = vmatprep.mubr.bf16.mxu0 0
      %4259 = vmatmul.mubr.bf16.gmra.mrb[0].mxu0 %v4171
      %v4260 = vpop.f32.mrb[0].mxu0
      %v4261 = vadd.f32 0.0, %v4260
      %v4262 = vpop.f32.mrb[0].mxu0
      %v4263 = vadd.f32 0.0, %v4262
      %v4264 = vpop.f32.mrb[0].mxu0
      %v4265 = vpop.f32.mrb[0].mxu0
      %4266 = vdwg.mxu0
      %v4267 = vadd.f32 %v4220, %v4222
      %v4268 = vadd.f32 %v4267, %v4261
      %v4269 = vadd.f32 %v4268, %v4263
      %4270 = vadd.xlane.f32.xlu0 %v4269
      %v4271 = vpop.xlane.xlu0 %4270
      %v4272 = vmul.f32 %v4271, 0.001953125
      %v4273 = vmul.f32 %v4220, %v4220
      %v4274 = vmul.f32 %v4222, %v4222
      %v4275 = vmul.f32 %v4261, %v4261
      %v4276 = vmul.f32 %v4263, %v4263
      %v4277 = vadd.f32 %v4273, %v4274
      %v4278 = vadd.f32 %v4277, %v4275
      %v4279 = vadd.f32 %v4278, %v4276
      %4280 = vadd.xlane.f32.xlu0 %v4279
      %v4281 = vpop.xlane.xlu0 %4280
      %v4282 = vmul.f32 %v4281, 0.001953125
      %v4283 = vmul.f32 %v4272, %v4272
      %v4284 = vsub.f32 %v4282, %v4283
      %v4285 = vmax.f32 %v4284, 0.0
      %v4286 = vld [vmem:[%s13] sm:$0xff]
      %v4287 = vadd.f32 %v4285, 1e-05
      %v4288 = vrsqrt.pop %v4287
      %v4289 = vmul.f32 %v4286, %v4288
      %v4290 = vmul.f32 %v4272, %v4289
      %4292 = vrot.lane.b32.xlu0 %v4290, 1
      %v4293 = vpop.permute.xlu0 %4292
      %v4295 = vsub.f32 %v4286, %v4293
      %4297 = vset.pattern.permute.xlu0 0
      %4298 = vperm.xlu0 %4297, %v4289
      %v4299 = vpop.permute.xlu0 %4298
      %v4301 = vmul.f32 %v4220, %v4299
      %v4302 = vmul.f32 %v4222, %v4299
      %v4303 = vmul.f32 %v4261, %v4299
      %v4304 = vmul.f32 %v4263, %v4299
      %4306 = vset.pattern.permute.xlu0 1
      %4307 = vperm.xlu0 %4306, %v4295
      %v4308 = vpop.permute.xlu0 %4307
      %v4310 = vadd.f32 %v4301, %v4308
      %v4311 = vadd.f32 %v4302, %v4308
      %v4312 = vadd.f32 %v4303, %v4308
      %v4313 = vadd.f32 %v4304, %v4308
      %v4314 = vmul.f32 %v4310, 0.01
      %v4315 = vmul.f32 %v4311, 0.01
      %v4316 = vmul.f32 %v4312, 0.01
      %v4317 = vmul.f32 %v4313, 0.01
      %v4318 = vmax.f32 %v4310, %v4314
      %v4319 = vmax.f32 %v4311, %v4315
      %v4320 = vmax.f32 %v4312, %v4316
      %v4321 = vmax.f32 %v4313, %v4317
      %4322 = vst [vmem:[%s467] sm:$0xff] %v4318
      %4323 = vst [vmem:[%s467 + $0x8] sm:$0xff] %v4319
      %4324 = vst [vmem:[%s467 + $0x10] sm:$0xff] %v4320
      %4325 = vst [vmem:[%s467 + $0x18] sm:$0xff] %v4321
      %p4326 = scmp.lt.s32.totalorder %s25, 1
      %s4327 = scalar_select %p4326, %s25, 1
      %s4328 = smul.addr %s4327, 4
      %s4329 = smul.addr %s4328, 8
      %s4330 = scalar_lea.vmem %s14, %s4329
      // Predicated region
      $region77: #{down_forward.1} parent=75 // pred_check
        %p4331 = pneg %p342
      $region78: #{down_forward.1} parent=75 // pred_check_branch
        %4333 = sbr.rel (%p4331) target = $region80
      $region79: #{down_forward.1} parent=75 // pred_region
        _
      $region80: #{down_forward.1} parent=75 // pred_fallthru
        _
    $region76: #{down_forward.1} parent=5 // pred_fallthru
      _
    %p4334 = scmp.le.s32.totalorder 2, %s20
    // Predicated region
    $region81: #{down_forward.1} parent=5 // pred_check
      %p4335 = pneg %p4334
    $region82: #{down_forward.1} parent=5 // pred_check_branch
      %4337 = sbr.rel (%p4335) target = $region84
    $region83: #{down_forward.1} parent=5 // pred_region
      %s4338 = ssub.s32 %s20, 2
      // Predicated region
      $region85: #{down_forward.1} parent=83 // pred_check
        %p4339 = pneg %p348
      $region86: #{down_forward.1} parent=83 // pred_check_branch
        %4341 = sbr.rel (%p4339) target = $region88
      $region87: #{down_forward.1} parent=83 // pred_region
        %p4342 = scmp.lt.s32.totalorder %s26, 1
        %s4343 = scalar_select %p4342, %s26, 1
        %s4344 = smul.addr %s4343, 4
        %s4345 = smul.addr %s4344, 8
        %s4346 = scalar_lea.vmem %s14, %s4345
      $region88: #{down_forward.1} parent=83 // pred_fallthru
        _
    $region84: #{down_forward.1} parent=5 // pred_fallthru
      _
  $region6: #{down_forward.1} parent=0 // loop_footer
    %s24 = sadd.s32 1, %s20
  $region7: #{down_forward.1} parent=0 // loop_footer_branch
    %19 = sbr.rel target = $region3
  $region8: #{down_forward.1} parent=0 // loop_exit
    _

</llo_original>
